<compile_context>
chip_gen: v7x
topology: tpu7x:2x2x1
jax: 0.10.0
libtpu: 0.0.40
codegen_flags: <defaults>
</compile_context>

<pallas_src>
import functools

import jax
import jax.numpy as jnp
import numpy as np
from jax import lax
from jax.experimental import pallas as pl
from jax.experimental.pallas import tpu as pltpu

LANE = 128


def _round_up(x, m):
    return ((x + m - 1) // m) * m


def _leaky_relu(x, slope=0.1):
    return jnp.where(x > 0, x, slope * x)


def _vmem_capacity_bytes(default=64 * 1024 * 1024):
    """Per-TensorCore VMEM (128 MiB v5e/v6e, 64 MiB v7x); safe fallback = 64 MiB."""
    try:
        info = pltpu.get_tpu_info()
        cap = getattr(info, "vmem_capacity_bytes", None)
        if cap:
            return int(cap)
    except Exception:
        pass
    return default


def _vmem_bytes_estimate(tile_h, W, Cp, C1p, C2p, out_itemsize):
    bf = 2
    body_io = 2 * tile_h * (W + 2) * Cp * bf            # double-buffered body block
    halo_io = 2 * 2 * (W + 2) * Cp * bf                 # double-buffered halo block
    out_io = 2 * tile_h * W * C2p * out_itemsize        # double-buffered output block
    bias_io = 2 * (C1p + C2p) * 4
    weights = Cp * C1p * bf + 9 * C1p * C2p * bf        # single-buffered scratch
    y1 = (tile_h + 2) * (W + 2) * C1p * bf              # y1 window scratch
    work = tile_h * W * (C2p * 4 + C1p * bf) * 2        # f32 acc + tap patch temps
    return int(1.25 * (body_io + halo_io + out_io + bias_io + weights + y1 + work))


def _auto_tile_h(H, W, Cp, C1p, C2p, out_itemsize, budget_bytes):
    """Largest even divisor of H that fits the VMEM budget; stop growing once
    tile_h*W >= 512 (enough matmul M-rows per step for the 256-wide MXU)."""
    best = None
    for d in range(2, H + 1, 2):
        if H % d:
            continue
        if _vmem_bytes_estimate(d, W, Cp, C1p, C2p, out_itemsize) > budget_bytes:
            break
        best = d
        if d * W >= 512:
            break
    return best if best is not None else 2


def basic_block_kernel(body_ref, halo_ref, w1_hbm, w2_hbm, b1_ref, b2_ref,
                       o_ref, y1_ref, w1_ref, w2_ref, w_sem,
                       *, tile_h, shortcut):
    # body_ref : (1, tile_h, W+2, Cp) bf16  rows [t*tile_h, (t+1)*tile_h) of padded x
    # halo_ref : (1, 2,      W+2, Cp) bf16  rows [(t+1)*tile_h, (t+1)*tile_h + 2)
    # w1_hbm   : (Cp, C1p)      bf16, memory_space=ANY (BN scale folded in)
    # w2_hbm   : (9, C1p, C2p)  bf16, memory_space=ANY, tap k = dy*3 + dx
    # b1/b2    : (1, C1p)/(1, C2p) f32 folded-BN biases
    # y1_ref   : (tile_h+2, W+2, C1p) bf16 scratch (conv1 output window)
    # w1_ref/w2_ref : single-buffered VMEM weight scratch, w_sem: DMA sems (2,)
    to = pl.program_id(1)
    ti = pl.program_id(2)
    n_inner = pl.num_programs(2)
    t = to * n_inner + ti                         # row-tile index
    nt = pl.num_programs(1) * n_inner             # total row tiles

    TH = tile_h
    Wp = body_ref.shape[2]
    W = Wp - 2
    Cp = body_ref.shape[3]
    C1p = w1_ref.shape[1]
    C2p = w2_ref.shape[2]

    # --- grid-invariant weights: DMA once per sequential (n, outer) chunk ---
    @pl.when(ti == 0)
    def _load_weights():
        c1 = pltpu.make_async_copy(w1_hbm, w1_ref, w_sem.at[0])
        c2 = pltpu.make_async_copy(w2_hbm, w2_ref, w_sem.at[1])
        c1.start()
        c2.start()
        c1.wait()
        c2.wait()

    body = body_ref[0]                            # (TH, W+2, Cp)
    halo = halo_ref[0]                            # (2,  W+2, Cp)

    # --- conv1x1 (+folded BN) + bias + LeakyReLU into a contiguous window ---
    def conv1_rows(src):                          # src: (R, W+2, Cp) bf16
        r = src.shape[0]
        y = jnp.dot(src.reshape(r * Wp, Cp), w1_ref[...],
                    preferred_element_type=jnp.float32)
        y = _leaky_relu(y + b1_ref[...])
        return y.reshape(r, Wp, C1p).astype(y1_ref.dtype)

    y1_ref[0:TH] = conv1_rows(body)               # window rows 0..TH-1
    y1_ref[TH:TH + 2] = conv1_rows(halo)          # window rows TH..TH+1

    # conv2's zero padding acts on y1 (not x): zero the two halo columns always,
    # and the halo row only at the image top/bottom (targeted stores, no
    # full-slab select).
    zc = jnp.zeros((TH + 2, 1, C1p), y1_ref.dtype)
    y1_ref[:, 0:1, :] = zc
    y1_ref[:, Wp - 1:Wp, :] = zc
    zr = jnp.zeros((1, Wp, C1p), y1_ref.dtype)

    @pl.when(t == 0)
    def _zero_top():
        y1_ref[0:1] = zr

    @pl.when(t == nt - 1)
    def _zero_bottom():
        y1_ref[TH + 1:TH + 2] = zr

    # --- conv3x3 (+folded BN) as 9 K=C1p tap matmuls, f32 accumulation ---
    acc = jnp.zeros((TH * W, C2p), jnp.float32)
    for dy in range(3):
        for dx in range(3):
            patch = y1_ref[dy:dy + TH, dx:dx + W, :].reshape(TH * W, C1p)
            acc = acc + jnp.dot(patch, w2_ref[dy * 3 + dx],
                                preferred_element_type=jnp.float32)
    y2 = _leaky_relu(acc + b2_ref[...]).reshape(TH, W, C2p)

    # --- residual ---
    if shortcut:
        # Output positions = window rows 1..TH, cols 1..W. Rows 1..TH-1 live in
        # the body block, row TH is halo row 0. (Residual is bf16 like the MXU
        # inputs; padded channel lanes are zero.)
        res = jnp.concatenate(
            [body[1:TH, 1:1 + W, :], halo[0:1, 1:1 + W, :]], axis=0)
        y2 = y2 + res.astype(jnp.float32)

    o_ref[0] = y2.astype(o_ref.dtype)


def basic_block_pallas(x_nchw, w1, s1, b1, w2, s2, b2, *, shortcut,
                       tile_h=None, out_dtype=None):
    """x_nchw: (N, Cin, H, W) f32; w1: (Cin, C1); w2: (3, 3, C1, C2) HWIO.
    s*/b*: folded BatchNorm scale/bias (f32). Returns (N, C2, H, W)."""
    N, Cin, H, W = x_nchw.shape
    C1 = w1.shape[1]
    C2 = w2.shape[3]
    if shortcut and Cin != C2:
        raise ValueError(
            f"shortcut requires in_channels == out_channels (got {Cin} vs {C2})")
    if H % 2 != 0:
        # TODO(synk): odd H needs a 1-row halo BlockSpec variant.
        raise ValueError("this kernel requires an even spatial height")

    Cp = max(LANE, _round_up(Cin, LANE))
    C1p = max(LANE, _round_up(C1, LANE))
    C2p = max(LANE, _round_up(C2, LANE))
    out_dtype = out_dtype or x_nchw.dtype
    out_itemsize = jnp.dtype(out_dtype).itemsize

    # Per-generation VMEM sizing (48 MiB budget on v7x's 64 MiB, ~96 MiB on
    # v5e/v6e's 128 MiB) + explicit scoped-VMEM limit.
    vmem_cap = _vmem_capacity_bytes()
    budget = min(int(0.75 * vmem_cap), 100 * 1024 * 1024)
    if tile_h is None:
        tile_h = _auto_tile_h(H, W, Cp, C1p, C2p, out_itemsize, budget)
    assert H % tile_h == 0 and tile_h % 2 == 0, "tile_h must be an even divisor of H"
    T = H // tile_h
    half = tile_h // 2
    vmem_limit = int(min(int(0.9 * vmem_cap), budget + 16 * 1024 * 1024))

    # Feed both v7x TensorCores even when N == 1: split the row-tile axis into a
    # small outer 'parallel' factor; weights are reloaded once per outer chunk.
    t_outer = 1
    if N == 1 and T > 1:
        for cand in (2, 4, 3):
            if T % cand == 0:
                t_outer = cand
                break
    t_inner = T // t_outer

    # NCHW -> NHWC, pad H/W by 1 (3x3 halo), pad channels to lane width, bf16 for
    # the MXU. No halo duplication: the kernel reads non-overlapping body blocks
    # plus a separate 2-row halo block from this same array.
    x = jnp.transpose(x_nchw, (0, 2, 3, 1))
    xp = jnp.pad(x, ((0, 0), (1, 1), (1, 1), (0, Cp - Cin))).astype(jnp.bfloat16)

    # Weights with the BN scale folded into the output channels.
    w1f = jnp.zeros((Cp, C1p), jnp.float32).at[:Cin, :C1].set(w1 * s1[None, :])
    w1f = w1f.astype(jnp.bfloat16)
    w2f = jnp.zeros((3, 3, C1p, C2p), jnp.float32).at[:, :, :C1, :C2].set(
        w2 * s2[None, None, None, :])
    w2f = w2f.astype(jnp.bfloat16).reshape(9, C1p, C2p)       # tap k = dy*3 + dx
    b1p = jnp.zeros((1, C1p), jnp.float32).at[0, :C1].set(b1)
    b2p = jnp.zeros((1, C2p), jnp.float32).at[0, :C2].set(b2)

    kernel = functools.partial(basic_block_kernel, tile_h=tile_h,
                               shortcut=shortcut)

    out_nhwc = pl.pallas_call(
        kernel,
        out_shape=jax.ShapeDtypeStruct((N, H, W, C2p), out_dtype),
        grid_spec=pltpu.PrefetchScalarGridSpec(
            num_scalar_prefetch=0,
            grid=(N, t_outer, t_inner),
            in_specs=[
                # non-overlapping tile_h-row body block of padded x
                pl.BlockSpec((1, tile_h, W + 2, Cp),
                             lambda n, to, ti: (n, to * t_inner + ti, 0, 0)),
                # 2-row bottom halo of the same padded x
                pl.BlockSpec((1, 2, W + 2, Cp),
                             lambda n, to, ti:
                             (n, (to * t_inner + ti + 1) * half, 0, 0)),
                pl.BlockSpec(memory_space=pl.ANY),   # w1 (staged in-kernel)
                pl.BlockSpec(memory_space=pl.ANY),   # w2 (staged in-kernel)
                pl.BlockSpec((1, C1p), lambda n, to, ti: (0, 0)),
                pl.BlockSpec((1, C2p), lambda n, to, ti: (0, 0)),
            ],
            out_specs=pl.BlockSpec((1, tile_h, W, C2p),
                                   lambda n, to, ti: (n, to * t_inner + ti, 0, 0)),
            scratch_shapes=[
                pltpu.VMEM((tile_h + 2, W + 2, C1p), jnp.bfloat16),  # y1 window
                pltpu.VMEM((Cp, C1p), jnp.bfloat16),                 # w1 (1x buffer)
                pltpu.VMEM((9, C1p, C2p), jnp.bfloat16),             # w2 (1x buffer)
                pltpu.SemaphoreType.DMA((2,)),
            ]),
        compiler_params=pltpu.CompilerParams(
            dimension_semantics=("parallel", "parallel", "arbitrary"),
            vmem_limit_bytes=vmem_limit),
    )(xp, xp, w1f, w2f, b1p, b2p)

    # Drop channel padding, NHWC -> NCHW.
    # TODO(synk): in a full backbone keep activations NHWC, bf16, lane-padded
    # between blocks (and emit bf16 here) to avoid these HBM-round-trip layout
    # conversions around every block.
    return jnp.transpose(out_nhwc[..., :C2], (0, 3, 1, 2))


def basic_block_reference(x_nchw, w1, s1, b1, w2, s2, b2, *, shortcut):
    """Pure-f32 JAX reference (same folded-BN semantics)."""
    x = jnp.transpose(x_nchw, (0, 2, 3, 1))                    # NHWC
    dn = ('NHWC', 'HWIO', 'NHWC')
    y1 = lax.conv_general_dilated(x, w1.reshape(1, 1, *w1.shape),
                                  (1, 1), 'VALID', dimension_numbers=dn)
    y1 = _leaky_relu(y1 * s1 + b1)
    y2 = lax.conv_general_dilated(y1, w2, (1, 1), ((1, 1), (1, 1)),
                                  dimension_numbers=dn)
    y2 = _leaky_relu(y2 * s2 + b2)
    if shortcut:
        y2 = y2 + x
    return jnp.transpose(y2, (0, 3, 1, 2))


def fold_bn(gamma, beta, mean, var, eps=1e-5):
    scale = gamma / jnp.sqrt(var + eps)
    bias = beta - mean * scale
    return scale, bias


def _run_case(key, *, N, Cin, num_channels, H, W, shortcut, tile_h):
    C1 = num_channels
    C2 = num_channels * 2          # BasicBlock.expansion = 2
    ks = jax.random.split(key, 11)
    x = jax.random.normal(ks[0], (N, Cin, H, W), jnp.float32)
    w1 = jax.random.normal(ks[1], (Cin, C1), jnp.float32) * 0.1
    w2 = jax.random.normal(ks[2], (3, 3, C1, C2), jnp.float32) * 0.05
    g1 = 1.0 + 0.1 * jax.random.normal(ks[3], (C1,), jnp.float32)
    be1 = 0.1 * jax.random.normal(ks[4], (C1,), jnp.float32)
    m1 = 0.1 * jax.random.normal(ks[5], (C1,), jnp.float32)
    v1 = jax.random.uniform(ks[6], (C1,), jnp.float32, 0.5, 1.5)
    g2 = 1.0 + 0.1 * jax.random.normal(ks[7], (C2,), jnp.float32)
    be2 = 0.1 * jax.random.normal(ks[8], (C2,), jnp.float32)
    m2 = 0.1 * jax.random.normal(ks[9], (C2,), jnp.float32)
    v2 = jax.random.uniform(ks[10], (C2,), jnp.float32, 0.5, 1.5)
    s1, b1 = fold_bn(g1, be1, m1, v1)
    s2, b2 = fold_bn(g2, be2, m2, v2)

    out = basic_block_pallas(x, w1, s1, b1, w2, s2, b2,
                             shortcut=shortcut, tile_h=tile_h)
    out = jax.block_until_ready(out)
    ref = basic_block_reference(x, w1, s1, b1, w2, s2, b2, shortcut=shortcut)
    # Tolerance accounts for bf16 MXU inputs / bf16 residual (f32 accumulation).
    np.testing.assert_allclose(np.asarray(out), np.asarray(ref),
                               rtol=4e-2, atol=4e-2)


if __name__ == "__main__":
    key = jax.random.PRNGKey(0)
    k1, k2 = jax.random.split(key)

    # Shortcut case (in=32, num=16 -> out=32), explicit row tiling T=2 so that
    # an interior tile boundary (cross-tile halo) is exercised.
    _run_case(k1, N=2, Cin=32, num_channels=16, H=16, W=16,
              shortcut=True, tile_h=8)
    # Single-image, no-shortcut case with T=4 -> exercises the outer 'parallel'
    # row-tile split used to feed both v7x TensorCores when N == 1.
    _run_case(k2, N=1, Cin=16, num_channels=8, H=16, W=16,
              shortcut=False, tile_h=4)
    # Auto tile_h (VMEM-budget sizing path).
    _run_case(k1, N=2, Cin=32, num_channels=16, H=16, W=16,
              shortcut=True, tile_h=None)

    print("KERNEL_OK")
</pallas_src>

<mosaic_0001>
module attributes {stable_mosaic.version = 11 : i64} {
  func.func @basic_block_kernel(%arg0: i32, %arg1: i32, %arg2: i32, %arg3: memref<1x8x18x128xbf16, #tpu.memory_space<vmem>>, %arg4: memref<1x2x18x128xbf16, #tpu.memory_space<vmem>>, %arg5: memref<128x128xbf16, #tpu.memory_space<any>>, %arg6: memref<9x128x128xbf16, #tpu.memory_space<any>>, %arg7: memref<1x128xf32, #tpu.memory_space<vmem>>, %arg8: memref<1x128xf32, #tpu.memory_space<vmem>>, %arg9: memref<1x8x16x128xf32, #tpu.memory_space<vmem>>, %arg10: memref<10x18x128xbf16, #tpu.memory_space<vmem>>, %arg11: memref<128x128xbf16, #tpu.memory_space<vmem>>, %arg12: memref<9x128x128xbf16, #tpu.memory_space<vmem>>, %arg13: memref<2x!tpu.dma_semaphore, #tpu.memory_space<semaphore_mem>>) attributes {dimension_semantics = [#tpu.dimension_semantics<parallel>, #tpu.dimension_semantics<parallel>, #tpu.dimension_semantics<arbitrary>], iteration_bounds = array<i64: 2, 1, 2>, scalar_prefetch = 0 : i64, scratch_operands = 4 : i64, tpu.core_type = #tpu.core_type<tc>, window_params = [{transform_indices = @transform_0, window_bounds = array<i64: 1, 8, 18, 128>}, {transform_indices = @transform_1, window_bounds = array<i64: 1, 2, 18, 128>}, {}, {}, {pipeline_mode = #tpu.pipeline_mode<synchronous>, transform_indices = @transform_4, window_bounds = array<i64: 1, 128>}, {pipeline_mode = #tpu.pipeline_mode<synchronous>, transform_indices = @transform_5, window_bounds = array<i64: 1, 128>}, {transform_indices = @transform_6, window_bounds = array<i64: 1, 8, 16, 128>}]} {
    %c2_i32 = arith.constant 2 : i32
    %0 = arith.muli %arg1, %c2_i32 : i32
    %1 = arith.addi %0, %arg2 : i32
    %c0_i32 = arith.constant 0 : i32
    %2 = arith.cmpi eq, %arg2, %c0_i32 : i32
    %3 = arith.extui %2 : i1 to i32
    %c0_i32_0 = arith.constant 0 : i32
    %4 = arith.cmpi ne, %3, %c0_i32_0 : i32
    scf.if %4 {
      %c0_i32_101 = arith.constant 0 : i32
      %119 = tpu.memref_slice %arg13[%c0_i32_101] : memref<2x!tpu.dma_semaphore, #tpu.memory_space<semaphore_mem>> -> memref<1x!tpu.dma_semaphore, #tpu.memory_space<semaphore_mem>>
      %120 = tpu.memref_squeeze %119 : memref<1x!tpu.dma_semaphore, #tpu.memory_space<semaphore_mem>> -> memref<!tpu.dma_semaphore, #tpu.memory_space<semaphore_mem>>
      tpu.enqueue_dma source(%arg5 : memref<128x128xbf16, #tpu.memory_space<any>>) target(%arg11 : memref<128x128xbf16, #tpu.memory_space<vmem>>) target_semaphore(%120 : memref<!tpu.dma_semaphore, #tpu.memory_space<semaphore_mem>>)
      %c1_i32_102 = arith.constant 1 : i32
      %121 = tpu.memref_slice %arg13[%c1_i32_102] : memref<2x!tpu.dma_semaphore, #tpu.memory_space<semaphore_mem>> -> memref<1x!tpu.dma_semaphore, #tpu.memory_space<semaphore_mem>>
      %122 = tpu.memref_squeeze %121 : memref<1x!tpu.dma_semaphore, #tpu.memory_space<semaphore_mem>> -> memref<!tpu.dma_semaphore, #tpu.memory_space<semaphore_mem>>
      tpu.enqueue_dma source(%arg6 : memref<9x128x128xbf16, #tpu.memory_space<any>>) target(%arg12 : memref<9x128x128xbf16, #tpu.memory_space<vmem>>) target_semaphore(%122 : memref<!tpu.dma_semaphore, #tpu.memory_space<semaphore_mem>>)
      %c0_i32_103 = arith.constant 0 : i32
      %123 = tpu.memref_slice %arg13[%c0_i32_103] : memref<2x!tpu.dma_semaphore, #tpu.memory_space<semaphore_mem>> -> memref<1x!tpu.dma_semaphore, #tpu.memory_space<semaphore_mem>>
      %124 = tpu.memref_squeeze %123 : memref<1x!tpu.dma_semaphore, #tpu.memory_space<semaphore_mem>> -> memref<!tpu.dma_semaphore, #tpu.memory_space<semaphore_mem>>
      tpu.wait_dma2 semaphore(%124 : memref<!tpu.dma_semaphore, #tpu.memory_space<semaphore_mem>>) src(%arg5 : memref<128x128xbf16, #tpu.memory_space<any>>) dst(%arg11 : memref<128x128xbf16, #tpu.memory_space<vmem>>)
      %c1_i32_104 = arith.constant 1 : i32
      %125 = tpu.memref_slice %arg13[%c1_i32_104] : memref<2x!tpu.dma_semaphore, #tpu.memory_space<semaphore_mem>> -> memref<1x!tpu.dma_semaphore, #tpu.memory_space<semaphore_mem>>
      %126 = tpu.memref_squeeze %125 : memref<1x!tpu.dma_semaphore, #tpu.memory_space<semaphore_mem>> -> memref<!tpu.dma_semaphore, #tpu.memory_space<semaphore_mem>>
      tpu.wait_dma2 semaphore(%126 : memref<!tpu.dma_semaphore, #tpu.memory_space<semaphore_mem>>) src(%arg6 : memref<9x128x128xbf16, #tpu.memory_space<any>>) dst(%arg12 : memref<9x128x128xbf16, #tpu.memory_space<vmem>>)
    } else {
    }
    %c0 = arith.constant 0 : index
    %c0_1 = arith.constant 0 : index
    %c0_2 = arith.constant 0 : index
    %c0_3 = arith.constant 0 : index
    %5 = vector.load %arg3[%c0, %c0_1, %c0_2, %c0_3] : memref<1x8x18x128xbf16, #tpu.memory_space<vmem>>, vector<1x8x18x128xbf16>
    %6 = vector.shape_cast %5 : vector<1x8x18x128xbf16> to vector<8x18x128xbf16>
    %c0_4 = arith.constant 0 : index
    %c0_5 = arith.constant 0 : index
    %c0_6 = arith.constant 0 : index
    %c0_7 = arith.constant 0 : index
    %7 = vector.load %arg4[%c0_4, %c0_5, %c0_6, %c0_7] : memref<1x2x18x128xbf16, #tpu.memory_space<vmem>>, vector<1x2x18x128xbf16>
    %8 = vector.shape_cast %7 : vector<1x2x18x128xbf16> to vector<2x18x128xbf16>
    %9 = vector.shape_cast %6 : vector<8x18x128xbf16> to vector<144x128xbf16>
    %c0_8 = arith.constant 0 : index
    %c0_9 = arith.constant 0 : index
    %10 = vector.load %arg11[%c0_8, %c0_9] : memref<128x128xbf16, #tpu.memory_space<vmem>>, vector<128x128xbf16>
    %cst = arith.constant dense<0.000000e+00> : vector<144x128xf32>
    %11 = tpu.matmul %9, %10, %cst {dimension_numbers = #tpu.dot_dimension_numbers<[1], [0], [0], [1], [0, 0, 1, 1], [], []>} : vector<144x128xbf16>, vector<128x128xbf16>, vector<144x128xf32> -> vector<144x128xf32>
    %c0_10 = arith.constant 0 : index
    %c0_11 = arith.constant 0 : index
    %12 = vector.load %arg7[%c0_10, %c0_11] : memref<1x128xf32, #tpu.memory_space<vmem>>, vector<1x128xf32>
    %13 = vector.broadcast %12 : vector<1x128xf32> to vector<144x128xf32>
    %14 = arith.addf %11, %13 : vector<144x128xf32>
    %cst_12 = arith.constant 0.000000e+00 : f32
    %15 = vector.broadcast %cst_12 : f32 to vector<144x128xf32>
    %16 = arith.cmpf ogt, %14, %15 : vector<144x128xf32>
    %cst_13 = arith.constant 1.000000e-01 : f32
    %17 = vector.broadcast %cst_13 : f32 to vector<144x128xf32>
    %18 = arith.mulf %17, %14 : vector<144x128xf32>
    %19 = arith.select %16, %14, %18 : vector<144x128xi1>, vector<144x128xf32>
    %20 = vector.shape_cast %19 : vector<144x128xf32> to vector<8x18x128xf32>
    %21 = arith.truncf %20 : vector<8x18x128xf32> to vector<8x18x128xbf16>
    %c0_14 = arith.constant 0 : index
    %c0_15 = arith.constant 0 : index
    %c0_16 = arith.constant 0 : index
    %22 = vector.load %arg10[%c0_14, %c0_15, %c0_16] : memref<10x18x128xbf16, #tpu.memory_space<vmem>>, vector<8x18x128xbf16>
    tpu.vector_store %arg10[%c0_14, %c0_15, %c0_16], %21 {strides = array<i32>} : memref<10x18x128xbf16, #tpu.memory_space<vmem>>, vector<8x18x128xbf16>,
    %23 = vector.shape_cast %8 : vector<2x18x128xbf16> to vector<36x128xbf16>
    %c0_17 = arith.constant 0 : index
    %c0_18 = arith.constant 0 : index
    %24 = vector.load %arg11[%c0_17, %c0_18] : memref<128x128xbf16, #tpu.memory_space<vmem>>, vector<128x128xbf16>
    %cst_19 = arith.constant dense<0.000000e+00> : vector<36x128xf32>
    %25 = tpu.matmul %23, %24, %cst_19 {dimension_numbers = #tpu.dot_dimension_numbers<[1], [0], [0], [1], [0, 0, 1, 1], [], []>} : vector<36x128xbf16>, vector<128x128xbf16>, vector<36x128xf32> -> vector<36x128xf32>
    %c0_20 = arith.constant 0 : index
    %c0_21 = arith.constant 0 : index
    %26 = vector.load %arg7[%c0_20, %c0_21] : memref<1x128xf32, #tpu.memory_space<vmem>>, vector<1x128xf32>
    %27 = vector.broadcast %26 : vector<1x128xf32> to vector<36x128xf32>
    %28 = arith.addf %25, %27 : vector<36x128xf32>
    %cst_22 = arith.constant 0.000000e+00 : f32
    %29 = vector.broadcast %cst_22 : f32 to vector<36x128xf32>
    %30 = arith.cmpf ogt, %28, %29 : vector<36x128xf32>
    %cst_23 = arith.constant 1.000000e-01 : f32
    %31 = vector.broadcast %cst_23 : f32 to vector<36x128xf32>
    %32 = arith.mulf %31, %28 : vector<36x128xf32>
    %33 = arith.select %30, %28, %32 : vector<36x128xi1>, vector<36x128xf32>
    %34 = vector.shape_cast %33 : vector<36x128xf32> to vector<2x18x128xf32>
    %35 = arith.truncf %34 : vector<2x18x128xf32> to vector<2x18x128xbf16>
    %c8 = arith.constant 8 : index
    %c0_24 = arith.constant 0 : index
    %c0_25 = arith.constant 0 : index
    %36 = vector.load %arg10[%c8, %c0_24, %c0_25] : memref<10x18x128xbf16, #tpu.memory_space<vmem>>, vector<2x18x128xbf16>
    tpu.vector_store %arg10[%c8, %c0_24, %c0_25], %35 {strides = array<i32>} : memref<10x18x128xbf16, #tpu.memory_space<vmem>>, vector<2x18x128xbf16>,
    %cst_26 = arith.constant 0.000000e+00 : bf16
    %37 = vector.broadcast %cst_26 : bf16 to vector<10x1x128xbf16>
    %c0_27 = arith.constant 0 : index
    %c0_28 = arith.constant 0 : index
    %c0_29 = arith.constant 0 : index
    %38 = vector.load %arg10[%c0_27, %c0_28, %c0_29] : memref<10x18x128xbf16, #tpu.memory_space<vmem>>, vector<10x1x128xbf16>
    tpu.vector_store %arg10[%c0_27, %c0_28, %c0_29], %37 {strides = array<i32>} : memref<10x18x128xbf16, #tpu.memory_space<vmem>>, vector<10x1x128xbf16>,
    %c0_30 = arith.constant 0 : index
    %c17 = arith.constant 17 : index
    %c0_31 = arith.constant 0 : index
    %39 = vector.load %arg10[%c0_30, %c17, %c0_31] : memref<10x18x128xbf16, #tpu.memory_space<vmem>>, vector<10x1x128xbf16>
    tpu.vector_store %arg10[%c0_30, %c17, %c0_31], %37 {strides = array<i32>} : memref<10x18x128xbf16, #tpu.memory_space<vmem>>, vector<10x1x128xbf16>,
    %cst_32 = arith.constant 0.000000e+00 : bf16
    %40 = vector.broadcast %cst_32 : bf16 to vector<1x18x128xbf16>
    %c0_i32_33 = arith.constant 0 : i32
    %41 = arith.cmpi eq, %1, %c0_i32_33 : i32
    %42 = arith.extui %41 : i1 to i32
    %c0_i32_34 = arith.constant 0 : i32
    %43 = arith.cmpi ne, %42, %c0_i32_34 : i32
    scf.if %43 {
      %c0_101 = arith.constant 0 : index
      %c0_102 = arith.constant 0 : index
      %c0_103 = arith.constant 0 : index
      %119 = vector.load %arg10[%c0_101, %c0_102, %c0_103] : memref<10x18x128xbf16, #tpu.memory_space<vmem>>, vector<1x18x128xbf16>
      tpu.vector_store %arg10[%c0_101, %c0_102, %c0_103], %40 {strides = array<i32>} : memref<10x18x128xbf16, #tpu.memory_space<vmem>>, vector<1x18x128xbf16>,
    } else {
    }
    %c1_i32 = arith.constant 1 : i32
    %44 = arith.cmpi eq, %1, %c1_i32 : i32
    %45 = arith.extui %44 : i1 to i32
    %c0_i32_35 = arith.constant 0 : i32
    %46 = arith.cmpi ne, %45, %c0_i32_35 : i32
    scf.if %46 {
      %c9 = arith.constant 9 : index
      %c0_101 = arith.constant 0 : index
      %c0_102 = arith.constant 0 : index
      %119 = vector.load %arg10[%c9, %c0_101, %c0_102] : memref<10x18x128xbf16, #tpu.memory_space<vmem>>, vector<1x18x128xbf16>
      tpu.vector_store %arg10[%c9, %c0_101, %c0_102], %40 {strides = array<i32>} : memref<10x18x128xbf16, #tpu.memory_space<vmem>>, vector<1x18x128xbf16>,
    } else {
    }
    %cst_36 = arith.constant 0.000000e+00 : f32
    %47 = vector.broadcast %cst_36 : f32 to vector<128x128xf32>
    %c0_37 = arith.constant 0 : index
    %c0_38 = arith.constant 0 : index
    %c0_39 = arith.constant 0 : index
    %48 = vector.load %arg10[%c0_37, %c0_38, %c0_39] : memref<10x18x128xbf16, #tpu.memory_space<vmem>>, vector<8x16x128xbf16>
    %49 = vector.shape_cast %48 : vector<8x16x128xbf16> to vector<128x128xbf16>
    %c0_40 = arith.constant 0 : index
    %c0_41 = arith.constant 0 : index
    %c0_42 = arith.constant 0 : index
    %50 = vector.load %arg12[%c0_40, %c0_41, %c0_42] : memref<9x128x128xbf16, #tpu.memory_space<vmem>>, vector<1x128x128xbf16>
    %51 = vector.shape_cast %50 : vector<1x128x128xbf16> to vector<128x128xbf16>
    %cst_43 = arith.constant dense<0.000000e+00> : vector<128x128xf32>
    %52 = tpu.matmul %49, %51, %cst_43 {dimension_numbers = #tpu.dot_dimension_numbers<[1], [0], [0], [1], [0, 0, 1, 1], [], []>} : vector<128x128xbf16>, vector<128x128xbf16>, vector<128x128xf32> -> vector<128x128xf32>
    %53 = arith.addf %47, %52 : vector<128x128xf32>
    %c0_44 = arith.constant 0 : index
    %c1 = arith.constant 1 : index
    %c0_45 = arith.constant 0 : index
    %54 = vector.load %arg10[%c0_44, %c1, %c0_45] : memref<10x18x128xbf16, #tpu.memory_space<vmem>>, vector<8x16x128xbf16>
    %55 = vector.shape_cast %54 : vector<8x16x128xbf16> to vector<128x128xbf16>
    %c1_46 = arith.constant 1 : index
    %c0_47 = arith.constant 0 : index
    %c0_48 = arith.constant 0 : index
    %56 = vector.load %arg12[%c1_46, %c0_47, %c0_48] : memref<9x128x128xbf16, #tpu.memory_space<vmem>>, vector<1x128x128xbf16>
    %57 = vector.shape_cast %56 : vector<1x128x128xbf16> to vector<128x128xbf16>
    %cst_49 = arith.constant dense<0.000000e+00> : vector<128x128xf32>
    %58 = tpu.matmul %55, %57, %cst_49 {dimension_numbers = #tpu.dot_dimension_numbers<[1], [0], [0], [1], [0, 0, 1, 1], [], []>} : vector<128x128xbf16>, vector<128x128xbf16>, vector<128x128xf32> -> vector<128x128xf32>
    %59 = arith.addf %53, %58 : vector<128x128xf32>
    %c0_50 = arith.constant 0 : index
    %c2 = arith.constant 2 : index
    %c0_51 = arith.constant 0 : index
    %60 = vector.load %arg10[%c0_50, %c2, %c0_51] : memref<10x18x128xbf16, #tpu.memory_space<vmem>>, vector<8x16x128xbf16>
    %61 = vector.shape_cast %60 : vector<8x16x128xbf16> to vector<128x128xbf16>
    %c2_52 = arith.constant 2 : index
    %c0_53 = arith.constant 0 : index
    %c0_54 = arith.constant 0 : index
    %62 = vector.load %arg12[%c2_52, %c0_53, %c0_54] : memref<9x128x128xbf16, #tpu.memory_space<vmem>>, vector<1x128x128xbf16>
    %63 = vector.shape_cast %62 : vector<1x128x128xbf16> to vector<128x128xbf16>
    %cst_55 = arith.constant dense<0.000000e+00> : vector<128x128xf32>
    %64 = tpu.matmul %61, %63, %cst_55 {dimension_numbers = #tpu.dot_dimension_numbers<[1], [0], [0], [1], [0, 0, 1, 1], [], []>} : vector<128x128xbf16>, vector<128x128xbf16>, vector<128x128xf32> -> vector<128x128xf32>
    %65 = arith.addf %59, %64 : vector<128x128xf32>
    %c1_56 = arith.constant 1 : index
    %c0_57 = arith.constant 0 : index
    %c0_58 = arith.constant 0 : index
    %66 = vector.load %arg10[%c1_56, %c0_57, %c0_58] : memref<10x18x128xbf16, #tpu.memory_space<vmem>>, vector<8x16x128xbf16>
    %67 = vector.shape_cast %66 : vector<8x16x128xbf16> to vector<128x128xbf16>
    %c3 = arith.constant 3 : index
    %c0_59 = arith.constant 0 : index
    %c0_60 = arith.constant 0 : index
    %68 = vector.load %arg12[%c3, %c0_59, %c0_60] : memref<9x128x128xbf16, #tpu.memory_space<vmem>>, vector<1x128x128xbf16>
    %69 = vector.shape_cast %68 : vector<1x128x128xbf16> to vector<128x128xbf16>
    %cst_61 = arith.constant dense<0.000000e+00> : vector<128x128xf32>
    %70 = tpu.matmul %67, %69, %cst_61 {dimension_numbers = #tpu.dot_dimension_numbers<[1], [0], [0], [1], [0, 0, 1, 1], [], []>} : vector<128x128xbf16>, vector<128x128xbf16>, vector<128x128xf32> -> vector<128x128xf32>
    %71 = arith.addf %65, %70 : vector<128x128xf32>
    %c1_62 = arith.constant 1 : index
    %c1_63 = arith.constant 1 : index
    %c0_64 = arith.constant 0 : index
    %72 = vector.load %arg10[%c1_62, %c1_63, %c0_64] : memref<10x18x128xbf16, #tpu.memory_space<vmem>>, vector<8x16x128xbf16>
    %73 = vector.shape_cast %72 : vector<8x16x128xbf16> to vector<128x128xbf16>
    %c4 = arith.constant 4 : index
    %c0_65 = arith.constant 0 : index
    %c0_66 = arith.constant 0 : index
    %74 = vector.load %arg12[%c4, %c0_65, %c0_66] : memref<9x128x128xbf16, #tpu.memory_space<vmem>>, vector<1x128x128xbf16>
    %75 = vector.shape_cast %74 : vector<1x128x128xbf16> to vector<128x128xbf16>
    %cst_67 = arith.constant dense<0.000000e+00> : vector<128x128xf32>
    %76 = tpu.matmul %73, %75, %cst_67 {dimension_numbers = #tpu.dot_dimension_numbers<[1], [0], [0], [1], [0, 0, 1, 1], [], []>} : vector<128x128xbf16>, vector<128x128xbf16>, vector<128x128xf32> -> vector<128x128xf32>
    %77 = arith.addf %71, %76 : vector<128x128xf32>
    %c1_68 = arith.constant 1 : index
    %c2_69 = arith.constant 2 : index
    %c0_70 = arith.constant 0 : index
    %78 = vector.load %arg10[%c1_68, %c2_69, %c0_70] : memref<10x18x128xbf16, #tpu.memory_space<vmem>>, vector<8x16x128xbf16>
    %79 = vector.shape_cast %78 : vector<8x16x128xbf16> to vector<128x128xbf16>
    %c5 = arith.constant 5 : index
    %c0_71 = arith.constant 0 : index
    %c0_72 = arith.constant 0 : index
    %80 = vector.load %arg12[%c5, %c0_71, %c0_72] : memref<9x128x128xbf16, #tpu.memory_space<vmem>>, vector<1x128x128xbf16>
    %81 = vector.shape_cast %80 : vector<1x128x128xbf16> to vector<128x128xbf16>
    %cst_73 = arith.constant dense<0.000000e+00> : vector<128x128xf32>
    %82 = tpu.matmul %79, %81, %cst_73 {dimension_numbers = #tpu.dot_dimension_numbers<[1], [0], [0], [1], [0, 0, 1, 1], [], []>} : vector<128x128xbf16>, vector<128x128xbf16>, vector<128x128xf32> -> vector<128x128xf32>
    %83 = arith.addf %77, %82 : vector<128x128xf32>
    %c2_74 = arith.constant 2 : index
    %c0_75 = arith.constant 0 : index
    %c0_76 = arith.constant 0 : index
    %84 = vector.load %arg10[%c2_74, %c0_75, %c0_76] : memref<10x18x128xbf16, #tpu.memory_space<vmem>>, vector<8x16x128xbf16>
    %85 = vector.shape_cast %84 : vector<8x16x128xbf16> to vector<128x128xbf16>
    %c6 = arith.constant 6 : index
    %c0_77 = arith.constant 0 : index
    %c0_78 = arith.constant 0 : index
    %86 = vector.load %arg12[%c6, %c0_77, %c0_78] : memref<9x128x128xbf16, #tpu.memory_space<vmem>>, vector<1x128x128xbf16>
    %87 = vector.shape_cast %86 : vector<1x128x128xbf16> to vector<128x128xbf16>
    %cst_79 = arith.constant dense<0.000000e+00> : vector<128x128xf32>
    %88 = tpu.matmul %85, %87, %cst_79 {dimension_numbers = #tpu.dot_dimension_numbers<[1], [0], [0], [1], [0, 0, 1, 1], [], []>} : vector<128x128xbf16>, vector<128x128xbf16>, vector<128x128xf32> -> vector<128x128xf32>
    %89 = arith.addf %83, %88 : vector<128x128xf32>
    %c2_80 = arith.constant 2 : index
    %c1_81 = arith.constant 1 : index
    %c0_82 = arith.constant 0 : index
    %90 = vector.load %arg10[%c2_80, %c1_81, %c0_82] : memref<10x18x128xbf16, #tpu.memory_space<vmem>>, vector<8x16x128xbf16>
    %91 = vector.shape_cast %90 : vector<8x16x128xbf16> to vector<128x128xbf16>
    %c7 = arith.constant 7 : index
    %c0_83 = arith.constant 0 : index
    %c0_84 = arith.constant 0 : index
    %92 = vector.load %arg12[%c7, %c0_83, %c0_84] : memref<9x128x128xbf16, #tpu.memory_space<vmem>>, vector<1x128x128xbf16>
    %93 = vector.shape_cast %92 : vector<1x128x128xbf16> to vector<128x128xbf16>
    %cst_85 = arith.constant dense<0.000000e+00> : vector<128x128xf32>
    %94 = tpu.matmul %91, %93, %cst_85 {dimension_numbers = #tpu.dot_dimension_numbers<[1], [0], [0], [1], [0, 0, 1, 1], [], []>} : vector<128x128xbf16>, vector<128x128xbf16>, vector<128x128xf32> -> vector<128x128xf32>
    %95 = arith.addf %89, %94 : vector<128x128xf32>
    %c2_86 = arith.constant 2 : index
    %c2_87 = arith.constant 2 : index
    %c0_88 = arith.constant 0 : index
    %96 = vector.load %arg10[%c2_86, %c2_87, %c0_88] : memref<10x18x128xbf16, #tpu.memory_space<vmem>>, vector<8x16x128xbf16>
    %97 = vector.shape_cast %96 : vector<8x16x128xbf16> to vector<128x128xbf16>
    %c8_89 = arith.constant 8 : index
    %c0_90 = arith.constant 0 : index
    %c0_91 = arith.constant 0 : index
    %98 = vector.load %arg12[%c8_89, %c0_90, %c0_91] : memref<9x128x128xbf16, #tpu.memory_space<vmem>>, vector<1x128x128xbf16>
    %99 = vector.shape_cast %98 : vector<1x128x128xbf16> to vector<128x128xbf16>
    %cst_92 = arith.constant dense<0.000000e+00> : vector<128x128xf32>
    %100 = tpu.matmul %97, %99, %cst_92 {dimension_numbers = #tpu.dot_dimension_numbers<[1], [0], [0], [1], [0, 0, 1, 1], [], []>} : vector<128x128xbf16>, vector<128x128xbf16>, vector<128x128xf32> -> vector<128x128xf32>
    %101 = arith.addf %95, %100 : vector<128x128xf32>
    %c0_93 = arith.constant 0 : index
    %c0_94 = arith.constant 0 : index
    %102 = vector.load %arg8[%c0_93, %c0_94] : memref<1x128xf32, #tpu.memory_space<vmem>>, vector<1x128xf32>
    %103 = vector.broadcast %102 : vector<1x128xf32> to vector<128x128xf32>
    %104 = arith.addf %101, %103 : vector<128x128xf32>
    %cst_95 = arith.constant 0.000000e+00 : f32
    %105 = vector.broadcast %cst_95 : f32 to vector<128x128xf32>
    %106 = arith.cmpf ogt, %104, %105 : vector<128x128xf32>
    %cst_96 = arith.constant 1.000000e-01 : f32
    %107 = vector.broadcast %cst_96 : f32 to vector<128x128xf32>
    %108 = arith.mulf %107, %104 : vector<128x128xf32>
    %109 = arith.select %106, %104, %108 : vector<128x128xi1>, vector<128x128xf32>
    %110 = vector.shape_cast %109 : vector<128x128xf32> to vector<8x16x128xf32>
    %111 = vector.extract_strided_slice %6 {offsets = [1, 1, 0], sizes = [7, 16, 128], strides = [1, 1, 1]} : vector<8x18x128xbf16> to vector<7x16x128xbf16>
    %112 = vector.extract_strided_slice %8 {offsets = [0, 1, 0], sizes = [1, 16, 128], strides = [1, 1, 1]} : vector<2x18x128xbf16> to vector<1x16x128xbf16>
    %113 = tpu.concatenate %111, %112 in 0 : vector<7x16x128xbf16>, vector<1x16x128xbf16> -> vector<8x16x128xbf16>
    %114 = arith.extf %113 : vector<8x16x128xbf16> to vector<8x16x128xf32>
    %115 = arith.addf %110, %114 : vector<8x16x128xf32>
    %c0_97 = arith.constant 0 : index
    %c0_98 = arith.constant 0 : index
    %c0_99 = arith.constant 0 : index
    %c0_100 = arith.constant 0 : index
    %116 = vector.load %arg9[%c0_97, %c0_98, %c0_99, %c0_100] : memref<1x8x16x128xf32, #tpu.memory_space<vmem>>, vector<1x8x16x128xf32>
    %117 = vector.shape_cast %116 : vector<1x8x16x128xf32> to vector<8x16x128xf32>
    %118 = vector.shape_cast %115 : vector<8x16x128xf32> to vector<1x8x16x128xf32>
    tpu.vector_store %arg9[%c0_97, %c0_98, %c0_99, %c0_100], %118 {strides = array<i32>} : memref<1x8x16x128xf32, #tpu.memory_space<vmem>>, vector<1x8x16x128xf32>,
    return
  }
  func.func @transform_0(%arg0: i32, %arg1: i32, %arg2: i32) -> (i32, i32, i32, i32) {
    %c2_i32 = arith.constant 2 : i32
    %0 = arith.muli %arg1, %c2_i32 : i32
    %1 = arith.addi %0, %arg2 : i32
    %c0_i32 = arith.constant 0 : i32
    %c0_i32_0 = arith.constant 0 : i32
    %c0_i32_1 = arith.constant 0 : i32
    return %arg0, %1, %c0_i32, %c0_i32_0 : i32, i32, i32, i32
  }
  func.func @transform_1(%arg0: i32, %arg1: i32, %arg2: i32) -> (i32, i32, i32, i32) {
    %c2_i32 = arith.constant 2 : i32
    %0 = arith.muli %arg1, %c2_i32 : i32
    %1 = arith.addi %0, %arg2 : i32
    %c1_i32 = arith.constant 1 : i32
    %2 = arith.addi %1, %c1_i32 : i32
    %c4_i32 = arith.constant 4 : i32
    %3 = arith.muli %2, %c4_i32 : i32
    %c0_i32 = arith.constant 0 : i32
    %c0_i32_0 = arith.constant 0 : i32
    %c0_i32_1 = arith.constant 0 : i32
    return %arg0, %3, %c0_i32, %c0_i32_0 : i32, i32, i32, i32
  }
  func.func @transform_4(%arg0: i32, %arg1: i32, %arg2: i32) -> (i32, i32) {
    %c0_i32 = arith.constant 0 : i32
    %c0_i32_0 = arith.constant 0 : i32
    %c0_i32_1 = arith.constant 0 : i32
    return %c0_i32, %c0_i32_0 : i32, i32
  }
  func.func @transform_5(%arg0: i32, %arg1: i32, %arg2: i32) -> (i32, i32) {
    %c0_i32 = arith.constant 0 : i32
    %c0_i32_0 = arith.constant 0 : i32
    %c0_i32_1 = arith.constant 0 : i32
    return %c0_i32, %c0_i32_0 : i32, i32
  }
  func.func @transform_6(%arg0: i32, %arg1: i32, %arg2: i32) -> (i32, i32, i32, i32) {
    %c2_i32 = arith.constant 2 : i32
    %0 = arith.muli %arg1, %c2_i32 : i32
    %1 = arith.addi %0, %arg2 : i32
    %c0_i32 = arith.constant 0 : i32
    %c0_i32_0 = arith.constant 0 : i32
    %c0_i32_1 = arith.constant 0 : i32
    return %arg0, %1, %c0_i32, %c0_i32_0 : i32, i32, i32, i32
  }
}

</mosaic_0001>

<llo_original>
// kernel: tpu_custom_call.1
$region0: #{tpu_custom_call.1}
  #allocation0 [shape = 'u32[]', space=smem, size = 0x4, offset = 0x4, fixed_abs, tag = 'smem constant byte address 0x4 - core index']
  #allocation1 [shape = 'u32[144,128]{1,0:T(1,128)}', space=vmem, size = 0x12000, scoped, tag = 'internal scratch']
  #allocation2 [shape = 'bf16[10,18,128]{2,1,0:T(8,128)(2,1)}', space=vmem, size = 0xf000, scoped, tag = 'scratch operand']
  #allocation3 [shape = 'bf16[128,128]{1,0:T(16,128)(2,1)}', space=vmem, size = 0x8000, scoped, tag = 'scratch operand']
  #allocation4 [shape = 'bf16[9,128,128]{2,1,0:T(16,128)(2,1)}', space=vmem, size = 0x48000, scoped, tag = 'scratch operand']
  #allocation5 [shape = 's32[2]{0}', space=sflag, size = 0x8, scoped, tag = 'scratch operand']
  #allocation8 [shape = 's32[]', space=sflag, size = 0x4, offset = 0, fixed_abs, tag = 'sflag constant byte address 0x0 - dummy sync flag']
  #allocation9 [shape = 's32[]', space=sflag, size = 0x4, offset = 0, fixed_abs, tag = 'sflag constant byte address 0x0 - dummy sync flag']
  %s0 = inlined_call_operand.vmem [shape: bf16[2,18,18,128], index: 0, kind: input, shape index: {}]
  %s1 = inlined_call_operand.vmem [shape: bf16[2,18,18,128], index: 1, kind: input, shape index: {}]
  %s2 = inlined_call_operand.vmem [shape: bf16[128,128], index: 2, kind: input, shape index: {}]
  %s3 = inlined_call_operand.vmem [shape: bf16[9,128,128], index: 3, kind: input, shape index: {}]
  %s4 = inlined_call_operand.vmem [shape: f32[1,128], index: 4, kind: input, shape index: {}]
  %s5 = inlined_call_operand.vmem [shape: f32[1,128], index: 5, kind: input, shape index: {}]
  %s6 = inlined_call_operand.hbm [shape: f32[2,16,16,128], index: 6, kind: output, shape index: {}]
  %s7 = sld [smem:[#allocation0]]
  $region129: #{tpu_custom_call.1} parent=0
    _
  %s9 = ssub.s32 1, %s7
  %s10 = scalar_select 0, %s9, %s7
  $region1: #{tpu_custom_call.1} parent=0
    #allocation6 [shape = 'u8[131072]{0}', space=vmem, size = 0x20000, scoped, tag = 'output window, operand 0']
    #allocation7 [shape = 's32[2]{0}', space=sflag, size = 0x8, scoped, tag = 'scoped memory for tpu_custom_call.1']
    %11 = vsyncpa [#allocation7], 0
    %s12 = scalar_lea.sflag [#allocation7], 1
    %13 = vsyncpa %s12, 0
    loop: start=0, step=1, limit=6
    $region2: #{tpu_custom_call.1} parent=1 // loop_pre_header
      _
    $region3: #{tpu_custom_call.1} parent=1 // loop_header
      %s15 = sphi 0, %s19
      %p16 = scmp.ge.s32.totalorder %s15, 6
      %s22 = sphi 0, %s41
      %s23 = sphi 0, %s37
      %s24 = sphi 0, %s33
      %s25 = sphi 0, %s22
      %s26 = sphi 0, %s23
      %s27 = sphi 0, %s24
      %s28 = sphi 0, %s25
      %s29 = sphi 0, %s26
      %s30 = sphi 0, %s27
      %s50 = sphi 0, %s52
      %s53 = sphi 0, %s50
      %s54 = sphi 0, %s53
      %s70 = sphi 0, %s54
      %s86 = sphi 0, %s88
      %s89 = sphi 0, %s86
      %s90 = sphi 0, %s89
      %s106 = sphi 0, %s90
      %s110 = sphi 0, %s110
      %s112 = sphi 0, %s110
      %s113 = sphi 0, %s112
      %s127 = sphi 0, %s113
      %s131 = sphi 0, %s131
      %s133 = sphi 0, %s131
      %s134 = sphi 0, %s133
      %s148 = sphi 0, %s134
      %s160 = sphi 0, %s162
      %s163 = sphi 0, %s160
      %s164 = sphi 0, %s163
      %s180 = sphi 0, %s164
    $region4: #{tpu_custom_call.1} parent=1 // loop_header_branch
      %18 = sbr.rel (%p16) target = $region8
    $region5: #{tpu_custom_call.1} parent=1 // loop_body
      %s20 = ssub.s32 %s15, 1
      %s21 = ssub.s32 %s15, 2
      %s31 = sadd.s32 1, %s24
      %p32 = scmp.ge.s32.totalorder %s31, 2
      %s33 = scalar_select %p32, 0, %s31
      %s34 = sadd.s32 1, %s23
      %s35 = scalar_select %p32, %s34, %s23
      %p36 = scmp.ge.s32.totalorder %s35, 1
      %s37 = scalar_select %p36, 0, %s35
      %s38 = sadd.s32 1, %s22
      %s39 = scalar_select %p36, %s38, %s22
      %p40 = scmp.ge.s32.totalorder %s39, 2
      %s41 = scalar_select %p40, 0, %s39
      %s42 = smul.u32 %s23, 2
      %s43 = sadd.s32 %s42, %s24
      %s44 = smul.u32 %s37, 2
      %s45 = sadd.s32 %s44, %s33
      %s46 = ssub.s32 %s22, %s41
      %s47 = ssub.s32 %s43, %s45
      %s48 = sor.u32 %s46, %s47
      %p49 = scmp.eq.s32.totalorder %s48, 0
      %s51 = sadd.s32 %s50, 1
      %s52 = scalar_select %p49, %s50, %s51
      %p55 = pneg %p49
      %p56 = scmp.eq.s32.totalorder %s15, 3
      %p57 = por %p55, %p56
      %p58 = scmp.ne.s32.totalorder %s50, %s53
      %p59 = scmp.eq.s32.totalorder %s15, 0
      %p60 = por %p58, %p59
      %p61 = scmp.ne.s32.totalorder %s50, %s53
      %p62 = scmp.eq.s32.totalorder %s20, 3
      %p63 = por %p61, %p62
      %p64 = scmp.ne.s32.totalorder %s53, %s54
      %p65 = scmp.eq.s32.totalorder %s20, 0
      %p66 = por %p64, %p65
      %p67 = scmp.ne.s32.totalorder %s53, %s54
      %p68 = scmp.eq.s32.totalorder %s21, 3
      %p69 = por %p67, %p68
      %p71 = scmp.ne.s32.totalorder %s54, %s70
      %p72 = scmp.eq.s32.totalorder %s21, 0
      %p73 = por %p71, %p72
      %s74 = smul.u32 %s23, 2
      %s75 = sadd.s32 %s74, %s24
      %s76 = sadd.s32 %s75, 1
      %s77 = smul.u32 %s76, 4
      %s78 = smul.u32 %s37, 2
      %s79 = sadd.s32 %s78, %s33
      %s80 = sadd.s32 %s79, 1
      %s81 = smul.u32 %s80, 4
      %s82 = ssub.s32 %s22, %s41
      %s83 = ssub.s32 %s77, %s81
      %s84 = sor.u32 %s82, %s83
      %p85 = scmp.eq.s32.totalorder %s84, 0
      %s87 = sadd.s32 %s86, 1
      %s88 = scalar_select %p85, %s86, %s87
      %p91 = pneg %p85
      %p92 = scmp.eq.s32.totalorder %s15, 3
      %p93 = por %p91, %p92
      %p94 = scmp.ne.s32.totalorder %s86, %s89
      %p95 = scmp.eq.s32.totalorder %s15, 0
      %p96 = por %p94, %p95
      %p97 = scmp.ne.s32.totalorder %s86, %s89
      %p98 = scmp.eq.s32.totalorder %s20, 3
      %p99 = por %p97, %p98
      %p100 = scmp.ne.s32.totalorder %s89, %s90
      %p101 = scmp.eq.s32.totalorder %s20, 0
      %p102 = por %p100, %p101
      %p103 = scmp.ne.s32.totalorder %s89, %s90
      %p104 = scmp.eq.s32.totalorder %s21, 3
      %p105 = por %p103, %p104
      %p107 = scmp.ne.s32.totalorder %s90, %s106
      %p108 = scmp.eq.s32.totalorder %s21, 0
      %p109 = por %p107, %p108
      %s111 = sadd.s32 %s110, 1
      %p114 = scmp.eq.s32.totalorder %s15, 3
      %p115 = scmp.ne.s32.totalorder %s110, %s112
      %p116 = scmp.eq.s32.totalorder %s15, 0
      %p117 = por %p115, %p116
      %p118 = scmp.ne.s32.totalorder %s110, %s112
      %p119 = scmp.eq.s32.totalorder %s20, 3
      %p120 = por %p118, %p119
      %p121 = scmp.ne.s32.totalorder %s112, %s113
      %p122 = scmp.eq.s32.totalorder %s20, 0
      %p123 = por %p121, %p122
      %p124 = scmp.ne.s32.totalorder %s112, %s113
      %p125 = scmp.eq.s32.totalorder %s21, 3
      %p126 = por %p124, %p125
      %p128 = scmp.ne.s32.totalorder %s113, %s127
      %p129 = scmp.eq.s32.totalorder %s21, 0
      %p130 = por %p128, %p129
      %s132 = sadd.s32 %s131, 1
      %p135 = scmp.eq.s32.totalorder %s15, 3
      %p136 = scmp.ne.s32.totalorder %s131, %s133
      %p137 = scmp.eq.s32.totalorder %s15, 0
      %p138 = por %p136, %p137
      %p139 = scmp.ne.s32.totalorder %s131, %s133
      %p140 = scmp.eq.s32.totalorder %s20, 3
      %p141 = por %p139, %p140
      %p142 = scmp.ne.s32.totalorder %s133, %s134
      %p143 = scmp.eq.s32.totalorder %s20, 0
      %p144 = por %p142, %p143
      %p145 = scmp.ne.s32.totalorder %s133, %s134
      %p146 = scmp.eq.s32.totalorder %s21, 3
      %p147 = por %p145, %p146
      %p149 = scmp.ne.s32.totalorder %s134, %s148
      %p150 = scmp.eq.s32.totalorder %s21, 0
      %p151 = por %p149, %p150
      %s152 = smul.u32 %s23, 2
      %s153 = sadd.s32 %s152, %s24
      %s154 = smul.u32 %s37, 2
      %s155 = sadd.s32 %s154, %s33
      %s156 = ssub.s32 %s22, %s41
      %s157 = ssub.s32 %s153, %s155
      %s158 = sor.u32 %s156, %s157
      %p159 = scmp.eq.s32.totalorder %s158, 0
      %s161 = sadd.s32 %s160, 1
      %s162 = scalar_select %p159, %s160, %s161
      %p165 = pneg %p159
      %p166 = scmp.eq.s32.totalorder %s15, 3
      %p167 = por %p165, %p166
      %p168 = scmp.ne.s32.totalorder %s160, %s163
      %p169 = scmp.eq.s32.totalorder %s15, 0
      %p170 = por %p168, %p169
      %p171 = scmp.ne.s32.totalorder %s160, %s163
      %p172 = scmp.eq.s32.totalorder %s20, 3
      %p173 = por %p171, %p172
      %p174 = scmp.ne.s32.totalorder %s163, %s164
      %p175 = scmp.eq.s32.totalorder %s20, 0
      %p176 = por %p174, %p175
      %p177 = scmp.ne.s32.totalorder %s163, %s164
      %p178 = scmp.eq.s32.totalorder %s21, 3
      %p179 = por %p177, %p178
      %p181 = scmp.ne.s32.totalorder %s164, %s180
      %p182 = scmp.eq.s32.totalorder %s21, 0
      %p183 = por %p181, %p182
      %p184 = scmp.le.s32.totalorder 1, %s15
      %p185 = scmp.lt.s32.totalorder %s15, 5
      %p186 = pnand %p184, %p185
      %p187 = pneg %p186
      // Predicated region
      $region9: #{tpu_custom_call.1} parent=5 // pred_check
        _
      $region10: #{tpu_custom_call.1} parent=5 // pred_check_branch
        %189 = sbr.rel (%p186) target = $region12
      $region11: #{tpu_custom_call.1} parent=5 // pred_region
        %s190 = ssub.s32 %s15, 1
        // Predicated region
        $region13: #{tpu_custom_call.1} parent=11 // pred_check
          %p191 = pneg %p123
        $region14: #{tpu_custom_call.1} parent=11 // pred_check_branch
          %193 = sbr.rel (%p191) target = $region16
        $region15: #{tpu_custom_call.1} parent=11 // pred_region
          _
        $region16: #{tpu_custom_call.1} parent=11 // pred_fallthru
          _
        // Predicated region
        $region17: #{tpu_custom_call.1} parent=11 // pred_check
          %p194 = pneg %p144
        $region18: #{tpu_custom_call.1} parent=11 // pred_check_branch
          %196 = sbr.rel (%p194) target = $region20
        $region19: #{tpu_custom_call.1} parent=11 // pred_region
          _
        $region20: #{tpu_custom_call.1} parent=11 // pred_fallthru
          _
      $region12: #{tpu_custom_call.1} parent=5 // pred_fallthru
        _
      %p197 = scmp.lt.s32.totalorder %s15, 4
      // Predicated region
      $region21: #{tpu_custom_call.1} parent=5 // pred_check
        %p198 = pneg %p197
      $region22: #{tpu_custom_call.1} parent=5 // pred_check_branch
        %200 = sbr.rel (%p198) target = $region24
      $region23: #{tpu_custom_call.1} parent=5 // pred_region
        // Predicated region
        $region25: #{tpu_custom_call.1} parent=23 // pred_check
          %p201 = pneg %p60
        $region26: #{tpu_custom_call.1} parent=23 // pred_check_branch
          %203 = sbr.rel (%p201) target = $region28
        $region27: #{tpu_custom_call.1} parent=23 // pred_region
          %s204 = smul.u32 %s23, 2
          %s205 = sadd.s32 %s204, %s24
          %s206 = smul.u32 8, %s205
          %s207 = ssub.s32 18, %s206
          %p208 = scmp.lt.s32.totalorder %s207, 8
          %s209 = scalar_select %p208, %s207, 8
          %s210 = smul.u32 64, %s209
          %s211 = smul.u32 %s210, 3
          %p212 = scmp.lt.s32.totalorder %s22, 1
          %s213 = scalar_select %p212, %s22, 1
          %p214 = scmp.lt.s32.totalorder %s206, 17
          %s215 = scalar_select %p214, %s206, 17
          %s216 = smul.addr %s215, 3
          %s217 = smul.addr %s213, 54
          %s218 = sadd.s32 %s216, %s217
          %s219 = smul.addr %s218, 4
          %s220 = scalar_lea.vmem %s0, %s219
          %s221 = smul.u32 %s23, 2
          %s222 = sadd.s32 %s221, %s24
          %s223 = smul.u32 8, %s222
          %s224 = ssub.s32 18, %s223
          %p225 = scmp.lt.s32.totalorder %s224, 8
          %s226 = scalar_select %p225, %s224, 8
          %s227 = smul.u32 64, %s226
          %s228 = smul.u32 %s227, 3
        $region28: #{tpu_custom_call.1} parent=23 // pred_fallthru
          _
        // Predicated region
        $region29: #{tpu_custom_call.1} parent=23 // pred_check
          %p229 = pneg %p96
        $region30: #{tpu_custom_call.1} parent=23 // pred_check_branch
          %231 = sbr.rel (%p229) target = $region32
        $region31: #{tpu_custom_call.1} parent=23 // pred_region
          %s232 = smul.u32 %s23, 2
          %s233 = sadd.s32 %s232, %s24
          %s234 = sadd.s32 %s233, 1
          %s235 = smul.u32 %s234, 4
          %s236 = smul.u32 2, %s235
          %p237 = scmp.lt.s32.totalorder %s22, 1
          %s238 = scalar_select %p237, %s22, 1
          %p239 = scmp.lt.s32.totalorder %s236, 17
          %s240 = scalar_select %p239, %s236, 17
          %s241 = smul.addr %s240, 3
          %s242 = smul.addr %s238, 54
          %s243 = sadd.s32 %s241, %s242
          %s244 = smul.addr %s243, 4
          %s245 = scalar_lea.vmem %s1, %s244
          %s246 = smul.u32 %s23, 2
          %s247 = sadd.s32 %s246, %s24
          %s248 = sadd.s32 %s247, 1
          %s249 = smul.u32 %s248, 4
          %s250 = smul.u32 2, %s249
        $region32: #{tpu_custom_call.1} parent=23 // pred_fallthru
          _
      $region24: #{tpu_custom_call.1} parent=5 // pred_fallthru
        _
      %p251 = scmp.le.s32.totalorder 1, %s15
      %p252 = scmp.lt.s32.totalorder %s15, 5
      %p253 = pnand %p251, %p252
      %p254 = pneg %p253
      // Predicated region
      $region33: #{tpu_custom_call.1} parent=5 // pred_check
        _
      $region34: #{tpu_custom_call.1} parent=5 // pred_check_branch
        %256 = sbr.rel (%p253) target = $region36
      $region35: #{tpu_custom_call.1} parent=5 // pred_region
        %s257 = ssub.s32 %s15, 1
        %s258 = smul.u32 %s26, 2
        %s259 = sadd.s32 %s258, %s27
        %s260 = smul.u32 8, %s259
        %s261 = ssub.s32 18, %s260
        %p262 = scmp.lt.s32.totalorder %s261, 8
        %s263 = scalar_select %p262, %s261, 8
        %s264 = smul.u32 64, %s263
        %s265 = smul.u32 %s264, 3
        %p266 = scmp.lt.s32.totalorder %s25, 1
        %s267 = scalar_select %p266, %s25, 1
        %p268 = scmp.lt.s32.totalorder %s260, 17
        %s269 = scalar_select %p268, %s260, 17
        %s270 = smul.addr %s269, 3
        %s271 = smul.addr %s267, 54
        %s272 = sadd.s32 %s270, %s271
        %s273 = smul.addr %s272, 4
        %s274 = scalar_lea.vmem %s0, %s273
        %p275 = pneg %p66
        %p276 = pneg %p63
        %s277 = smul.u32 %s26, 2
        %s278 = sadd.s32 %s277, %s27
        %s279 = sadd.s32 %s278, 1
        %s280 = smul.u32 %s279, 4
        %s281 = smul.u32 2, %s280
        %p282 = scmp.lt.s32.totalorder %s25, 1
        %s283 = scalar_select %p282, %s25, 1
        %p284 = scmp.lt.s32.totalorder %s281, 17
        %s285 = scalar_select %p284, %s281, 17
        %s286 = smul.addr %s285, 3
        %s287 = smul.addr %s283, 54
        %s288 = sadd.s32 %s286, %s287
        %s289 = smul.addr %s288, 4
        %s290 = scalar_lea.vmem %s1, %s289
        %p291 = pneg %p102
        %p292 = pneg %p99
        %p293 = pneg %p123
        %p294 = pneg %p120
        %p295 = pneg %p144
        %p296 = pneg %p141
        %p297 = pneg %p176
        %p298 = pneg %p173
        %s299 = sand.u32 %s163, 1
        %s300 = scalar_lea.sflag [#allocation7], %s299
        %s301 = sand.u32 %s163, 1
        %s302 = smul.addr %s301, 128
        %s303 = scalar_lea.vmem [#allocation6], %s302
        %s304 = smul.u32 %s26, 2
        %s305 = sadd.s32 %s304, %s27
        %s306 = smul.u32 8, %s305
        %s307 = ssub.s32 18, %s306
        %p308 = scmp.lt.s32.totalorder %s307, 8
        %s309 = scalar_select %p308, %s307, 8
        %s310 = smul.u32 64, %s309
        %s311 = smul.u32 %s310, 3
        %p312 = scmp.lt.s32.totalorder %s25, 1
        %s313 = scalar_select %p312, %s25, 1
        %p314 = scmp.lt.s32.totalorder %s306, 17
        %s315 = scalar_select %p314, %s306, 17
        %s316 = smul.addr %s315, 3
        %s317 = smul.addr %s313, 54
        %s318 = sadd.s32 %s316, %s317
        %s319 = smul.addr %s318, 4
        %s320 = scalar_lea.vmem %s0, %s319
        %s321 = smul.u32 %s26, 2
        %s322 = sadd.s32 %s321, %s27
        %s323 = smul.u32 8, %s322
        %s324 = ssub.s32 18, %s323
        %p325 = scmp.lt.s32.totalorder %s324, 8
        %s326 = scalar_select %p325, %s324, 8
        %s327 = smul.u32 64, %s326
        %s328 = smul.u32 %s327, 3
        %s329 = smul.u32 %s26, 2
        %s330 = sadd.s32 %s329, %s27
        %s331 = sadd.s32 %s330, 1
        %s332 = smul.u32 %s331, 4
        %s333 = smul.u32 2, %s332
        %p334 = scmp.lt.s32.totalorder %s25, 1
        %s335 = scalar_select %p334, %s25, 1
        %p336 = scmp.lt.s32.totalorder %s333, 17
        %s337 = scalar_select %p336, %s333, 17
        %s338 = smul.addr %s337, 3
        %s339 = smul.addr %s335, 54
        %s340 = sadd.s32 %s338, %s339
        %s341 = smul.addr %s340, 4
        %s342 = scalar_lea.vmem %s1, %s341
        %s343 = smul.u32 %s26, 2
        %s344 = sadd.s32 %s343, %s27
        %s345 = sadd.s32 %s344, 1
        %s346 = smul.u32 %s345, 4
        %s347 = smul.u32 2, %s346
        %s348 = smul.u32 %s26, 2
        %s349 = sadd.s32 %s348, %s27
        %s350 = smul.u32 8, %s349
        %s352 = smul.u32 %s26, 2
        %s353 = sadd.s32 %s352, %s27
        %p354 = scmp.eq.s32.totalorder %s27, 0
        // Predicated region
        $region37: #{tpu_custom_call.1} parent=35 // pred_check
          %p355 = pneg %p354
        $region38: #{tpu_custom_call.1} parent=35 // pred_check_branch
          %357 = sbr.rel (%p355) target = $region40
        $region39: #{tpu_custom_call.1} parent=35 // pred_region
          %p359 = scmp.lt.u32.totalorder 64, 8
          %p360 = pneg %p359
          // Predicated region
          $region41: #{tpu_custom_call.1} parent=39 // pred_check
            _
          $region42: #{tpu_custom_call.1} parent=39 // pred_check_branch
            %362 = sbr.rel (%p359) target = $region44
          $region43: #{tpu_custom_call.1} parent=39 // pred_region
            %s377 = sand.u32 64, 7
            %p378 = scmp.eq.s32.totalorder %s377, 0
            // Predicated region
            $region56: #{tpu_custom_call.1} parent=43 // pred_check
              %p379 = pneg %p378
            $region57: #{tpu_custom_call.1} parent=43 // pred_check_branch
              %381 = sbr.rel (%p379) target = $region59
            $region58: #{tpu_custom_call.1} parent=43 // pred_region
              loop: start=0, step=1, limit=1
              $region60: #{tpu_custom_call.1} parent=58 // loop_pre_header
                _
              $region61: #{tpu_custom_call.1} parent=58 // loop_header
                %s383 = sphi 0, %s387
                %p384 = scmp.ge.s32.totalorder %s383, 1
                %s388 = sphi %s2, %s2
                %s389 = sphi [#allocation3], [#allocation3]
              $region62: #{tpu_custom_call.1} parent=58 // loop_header_branch
                %386 = sbr.rel (%p384) target = $region66
              $region63: #{tpu_custom_call.1} parent=58 // loop_body
                %v390 = vld [vmem:[%s388] sm:$0xff]
                %391 = vst [vmem:[%s389] sm:$0xff] %v390
                %v392 = vld [vmem:[%s388 + $0x8] sm:$0xff]
                %393 = vst [vmem:[%s389 + $0x8] sm:$0xff] %v392
                %v394 = vld [vmem:[%s388 + $0x10] sm:$0xff]
                %395 = vst [vmem:[%s389 + $0x10] sm:$0xff] %v394
                %v396 = vld [vmem:[%s388 + $0x18] sm:$0xff]
                %397 = vst [vmem:[%s389 + $0x18] sm:$0xff] %v396
                %v398 = vld [vmem:[%s388 + $0x20] sm:$0xff]
                %399 = vst [vmem:[%s389 + $0x20] sm:$0xff] %v398
                %v400 = vld [vmem:[%s388 + $0x28] sm:$0xff]
                %401 = vst [vmem:[%s389 + $0x28] sm:$0xff] %v400
                %v402 = vld [vmem:[%s388 + $0x30] sm:$0xff]
                %403 = vst [vmem:[%s389 + $0x30] sm:$0xff] %v402
                %v404 = vld [vmem:[%s388 + $0x38] sm:$0xff]
                %405 = vst [vmem:[%s389 + $0x38] sm:$0xff] %v404
              $region64: #{tpu_custom_call.1} parent=58 // loop_footer
                %s387 = sadd.s32 1, %s383
              $region65: #{tpu_custom_call.1} parent=58 // loop_footer_branch
                %382 = sbr.rel target = $region61
              $region66: #{tpu_custom_call.1} parent=58 // loop_exit
                _
            $region59: #{tpu_custom_call.1} parent=43 // pred_fallthru
              _
            %p406 = pneg %p378
            // Predicated region
            $region67: #{tpu_custom_call.1} parent=43 // pred_check
              _
            $region68: #{tpu_custom_call.1} parent=43 // pred_check_branch
              %408 = sbr.rel (%p378) target = $region70
            $region69: #{tpu_custom_call.1} parent=43 // pred_region
              %s409 = sand.u32 64, 7
            $region70: #{tpu_custom_call.1} parent=43 // pred_fallthru
              _
          $region44: #{tpu_custom_call.1} parent=39 // pred_fallthru
            _
          // Predicated region
          $region45: #{tpu_custom_call.1} parent=39 // pred_check
            %p363 = pneg %p359
          $region46: #{tpu_custom_call.1} parent=39 // pred_check_branch
            %365 = sbr.rel (%p363) target = $region48
          $region47: #{tpu_custom_call.1} parent=39 // pred_region
            %s366 = sshllo.u32 0, 64
            loop: start=0, step=1, limit=1
            $region49: #{tpu_custom_call.1} parent=47 // loop_pre_header
              _
            $region50: #{tpu_custom_call.1} parent=47 // loop_header
              %s368 = sphi 0, %s372
              %p369 = scmp.ge.s32.totalorder %s368, 1
              %s373 = sphi %s2, %s2
              %s374 = sphi [#allocation3], [#allocation3]
            $region51: #{tpu_custom_call.1} parent=47 // loop_header_branch
              %371 = sbr.rel (%p369) target = $region55
            $region52: #{tpu_custom_call.1} parent=47 // loop_body
              %v375 = vld [vmem:[%s373] sm:%s366]
              %376 = vst [vmem:[%s374] sm:%s366] %v375
            $region53: #{tpu_custom_call.1} parent=47 // loop_footer
              %s372 = sadd.s32 1, %s368
            $region54: #{tpu_custom_call.1} parent=47 // loop_footer_branch
              %367 = sbr.rel target = $region50
            $region55: #{tpu_custom_call.1} parent=47 // loop_exit
              _
          $region48: #{tpu_custom_call.1} parent=39 // pred_fallthru
            _
          // Predicated region
          $region71: #{tpu_custom_call.1} parent=39 // pred_check
            _
          $region72: #{tpu_custom_call.1} parent=39 // pred_check_branch
            %412 = sbr.rel (0) target = $region74
          $region73: #{tpu_custom_call.1} parent=39 // pred_region
            %413 = vsyncadd [#allocation5], 1024
          $region74: #{tpu_custom_call.1} parent=39 // pred_fallthru
            _
          %s414 = scalar_lea.sflag [#allocation5], 1
          %p416 = scmp.lt.u32.totalorder 576, 8
          %p417 = pneg %p416
          // Predicated region
          $region75: #{tpu_custom_call.1} parent=39 // pred_check
            _
          $region76: #{tpu_custom_call.1} parent=39 // pred_check_branch
            %419 = sbr.rel (%p416) target = $region78
          $region77: #{tpu_custom_call.1} parent=39 // pred_region
            %s434 = sand.u32 576, 7
            %p435 = scmp.eq.s32.totalorder %s434, 0
            // Predicated region
            $region90: #{tpu_custom_call.1} parent=77 // pred_check
              %p436 = pneg %p435
            $region91: #{tpu_custom_call.1} parent=77 // pred_check_branch
              %438 = sbr.rel (%p436) target = $region93
            $region92: #{tpu_custom_call.1} parent=77 // pred_region
              loop: start=0, step=1, limit=1
              $region94: #{tpu_custom_call.1} parent=92 // loop_pre_header
                _
              $region95: #{tpu_custom_call.1} parent=92 // loop_header
                %s440 = sphi 0, %s444
                %p441 = scmp.ge.s32.totalorder %s440, 1
                %s445 = sphi %s3, %s3
                %s446 = sphi [#allocation4], [#allocation4]
              $region96: #{tpu_custom_call.1} parent=92 // loop_header_branch
                %443 = sbr.rel (%p441) target = $region100
              $region97: #{tpu_custom_call.1} parent=92 // loop_body
                %v447 = vld [vmem:[%s445] sm:$0xff]
                %448 = vst [vmem:[%s446] sm:$0xff] %v447
                %v449 = vld [vmem:[%s445 + $0x8] sm:$0xff]
                %450 = vst [vmem:[%s446 + $0x8] sm:$0xff] %v449
                %v451 = vld [vmem:[%s445 + $0x10] sm:$0xff]
                %452 = vst [vmem:[%s446 + $0x10] sm:$0xff] %v451
                %v453 = vld [vmem:[%s445 + $0x18] sm:$0xff]
                %454 = vst [vmem:[%s446 + $0x18] sm:$0xff] %v453
                %v455 = vld [vmem:[%s445 + $0x20] sm:$0xff]
                %456 = vst [vmem:[%s446 + $0x20] sm:$0xff] %v455
                %v457 = vld [vmem:[%s445 + $0x28] sm:$0xff]
                %458 = vst [vmem:[%s446 + $0x28] sm:$0xff] %v457
                %v459 = vld [vmem:[%s445 + $0x30] sm:$0xff]
                %460 = vst [vmem:[%s446 + $0x30] sm:$0xff] %v459
                %v461 = vld [vmem:[%s445 + $0x38] sm:$0xff]
                %462 = vst [vmem:[%s446 + $0x38] sm:$0xff] %v461
                %v463 = vld [vmem:[%s445 + $0x40] sm:$0xff]
                %464 = vst [vmem:[%s446 + $0x40] sm:$0xff] %v463
                %v465 = vld [vmem:[%s445 + $0x48] sm:$0xff]
                %466 = vst [vmem:[%s446 + $0x48] sm:$0xff] %v465
                %v467 = vld [vmem:[%s445 + $0x50] sm:$0xff]
                %468 = vst [vmem:[%s446 + $0x50] sm:$0xff] %v467
                %v469 = vld [vmem:[%s445 + $0x58] sm:$0xff]
                %470 = vst [vmem:[%s446 + $0x58] sm:$0xff] %v469
                %v471 = vld [vmem:[%s445 + $0x60] sm:$0xff]
                %472 = vst [vmem:[%s446 + $0x60] sm:$0xff] %v471
                %v473 = vld [vmem:[%s445 + $0x68] sm:$0xff]
                %474 = vst [vmem:[%s446 + $0x68] sm:$0xff] %v473
                %v475 = vld [vmem:[%s445 + $0x70] sm:$0xff]
                %476 = vst [vmem:[%s446 + $0x70] sm:$0xff] %v475
                %v477 = vld [vmem:[%s445 + $0x78] sm:$0xff]
                %478 = vst [vmem:[%s446 + $0x78] sm:$0xff] %v477
                %v479 = vld [vmem:[%s445 + $0x80] sm:$0xff]
                %480 = vst [vmem:[%s446 + $0x80] sm:$0xff] %v479
                %v481 = vld [vmem:[%s445 + $0x88] sm:$0xff]
                %482 = vst [vmem:[%s446 + $0x88] sm:$0xff] %v481
                %v483 = vld [vmem:[%s445 + $0x90] sm:$0xff]
                %484 = vst [vmem:[%s446 + $0x90] sm:$0xff] %v483
                %v485 = vld [vmem:[%s445 + $0x98] sm:$0xff]
                %486 = vst [vmem:[%s446 + $0x98] sm:$0xff] %v485
                %v487 = vld [vmem:[%s445 + $0xa0] sm:$0xff]
                %488 = vst [vmem:[%s446 + $0xa0] sm:$0xff] %v487
                %v489 = vld [vmem:[%s445 + $0xa8] sm:$0xff]
                %490 = vst [vmem:[%s446 + $0xa8] sm:$0xff] %v489
                %v491 = vld [vmem:[%s445 + $0xb0] sm:$0xff]
                %492 = vst [vmem:[%s446 + $0xb0] sm:$0xff] %v491
                %v493 = vld [vmem:[%s445 + $0xb8] sm:$0xff]
                %494 = vst [vmem:[%s446 + $0xb8] sm:$0xff] %v493
                %v495 = vld [vmem:[%s445 + $0xc0] sm:$0xff]
                %496 = vst [vmem:[%s446 + $0xc0] sm:$0xff] %v495
                %v497 = vld [vmem:[%s445 + $0xc8] sm:$0xff]
                %498 = vst [vmem:[%s446 + $0xc8] sm:$0xff] %v497
                %v499 = vld [vmem:[%s445 + $0xd0] sm:$0xff]
                %500 = vst [vmem:[%s446 + $0xd0] sm:$0xff] %v499
                %v501 = vld [vmem:[%s445 + $0xd8] sm:$0xff]
                %502 = vst [vmem:[%s446 + $0xd8] sm:$0xff] %v501
                %v503 = vld [vmem:[%s445 + $0xe0] sm:$0xff]
                %504 = vst [vmem:[%s446 + $0xe0] sm:$0xff] %v503
                %v505 = vld [vmem:[%s445 + $0xe8] sm:$0xff]
                %506 = vst [vmem:[%s446 + $0xe8] sm:$0xff] %v505
                %v507 = vld [vmem:[%s445 + $0xf0] sm:$0xff]
                %508 = vst [vmem:[%s446 + $0xf0] sm:$0xff] %v507
                %v509 = vld [vmem:[%s445 + $0xf8] sm:$0xff]
                %510 = vst [vmem:[%s446 + $0xf8] sm:$0xff] %v509
                %v511 = vld [vmem:[%s445 + $0x100] sm:$0xff]
                %512 = vst [vmem:[%s446 + $0x100] sm:$0xff] %v511
                %v513 = vld [vmem:[%s445 + $0x108] sm:$0xff]
                %514 = vst [vmem:[%s446 + $0x108] sm:$0xff] %v513
                %v515 = vld [vmem:[%s445 + $0x110] sm:$0xff]
                %516 = vst [vmem:[%s446 + $0x110] sm:$0xff] %v515
                %v517 = vld [vmem:[%s445 + $0x118] sm:$0xff]
                %518 = vst [vmem:[%s446 + $0x118] sm:$0xff] %v517
                %v519 = vld [vmem:[%s445 + $0x120] sm:$0xff]
                %520 = vst [vmem:[%s446 + $0x120] sm:$0xff] %v519
                %v521 = vld [vmem:[%s445 + $0x128] sm:$0xff]
                %522 = vst [vmem:[%s446 + $0x128] sm:$0xff] %v521
                %v523 = vld [vmem:[%s445 + $0x130] sm:$0xff]
                %524 = vst [vmem:[%s446 + $0x130] sm:$0xff] %v523
                %v525 = vld [vmem:[%s445 + $0x138] sm:$0xff]
                %526 = vst [vmem:[%s446 + $0x138] sm:$0xff] %v525
                %v527 = vld [vmem:[%s445 + $0x140] sm:$0xff]
                %528 = vst [vmem:[%s446 + $0x140] sm:$0xff] %v527
                %v529 = vld [vmem:[%s445 + $0x148] sm:$0xff]
                %530 = vst [vmem:[%s446 + $0x148] sm:$0xff] %v529
                %v531 = vld [vmem:[%s445 + $0x150] sm:$0xff]
                %532 = vst [vmem:[%s446 + $0x150] sm:$0xff] %v531
                %v533 = vld [vmem:[%s445 + $0x158] sm:$0xff]
                %534 = vst [vmem:[%s446 + $0x158] sm:$0xff] %v533
                %v535 = vld [vmem:[%s445 + $0x160] sm:$0xff]
                %536 = vst [vmem:[%s446 + $0x160] sm:$0xff] %v535
                %v537 = vld [vmem:[%s445 + $0x168] sm:$0xff]
                %538 = vst [vmem:[%s446 + $0x168] sm:$0xff] %v537
                %v539 = vld [vmem:[%s445 + $0x170] sm:$0xff]
                %540 = vst [vmem:[%s446 + $0x170] sm:$0xff] %v539
                %v541 = vld [vmem:[%s445 + $0x178] sm:$0xff]
                %542 = vst [vmem:[%s446 + $0x178] sm:$0xff] %v541
                %v543 = vld [vmem:[%s445 + $0x180] sm:$0xff]
                %544 = vst [vmem:[%s446 + $0x180] sm:$0xff] %v543
                %v545 = vld [vmem:[%s445 + $0x188] sm:$0xff]
                %546 = vst [vmem:[%s446 + $0x188] sm:$0xff] %v545
                %v547 = vld [vmem:[%s445 + $0x190] sm:$0xff]
                %548 = vst [vmem:[%s446 + $0x190] sm:$0xff] %v547
                %v549 = vld [vmem:[%s445 + $0x198] sm:$0xff]
                %550 = vst [vmem:[%s446 + $0x198] sm:$0xff] %v549
                %v551 = vld [vmem:[%s445 + $0x1a0] sm:$0xff]
                %552 = vst [vmem:[%s446 + $0x1a0] sm:$0xff] %v551
                %v553 = vld [vmem:[%s445 + $0x1a8] sm:$0xff]
                %554 = vst [vmem:[%s446 + $0x1a8] sm:$0xff] %v553
                %v555 = vld [vmem:[%s445 + $0x1b0] sm:$0xff]
                %556 = vst [vmem:[%s446 + $0x1b0] sm:$0xff] %v555
                %v557 = vld [vmem:[%s445 + $0x1b8] sm:$0xff]
                %558 = vst [vmem:[%s446 + $0x1b8] sm:$0xff] %v557
                %v559 = vld [vmem:[%s445 + $0x1c0] sm:$0xff]
                %560 = vst [vmem:[%s446 + $0x1c0] sm:$0xff] %v559
                %v561 = vld [vmem:[%s445 + $0x1c8] sm:$0xff]
                %562 = vst [vmem:[%s446 + $0x1c8] sm:$0xff] %v561
                %v563 = vld [vmem:[%s445 + $0x1d0] sm:$0xff]
                %564 = vst [vmem:[%s446 + $0x1d0] sm:$0xff] %v563
                %v565 = vld [vmem:[%s445 + $0x1d8] sm:$0xff]
                %566 = vst [vmem:[%s446 + $0x1d8] sm:$0xff] %v565
                %v567 = vld [vmem:[%s445 + $0x1e0] sm:$0xff]
                %568 = vst [vmem:[%s446 + $0x1e0] sm:$0xff] %v567
                %v569 = vld [vmem:[%s445 + $0x1e8] sm:$0xff]
                %570 = vst [vmem:[%s446 + $0x1e8] sm:$0xff] %v569
                %v571 = vld [vmem:[%s445 + $0x1f0] sm:$0xff]
                %572 = vst [vmem:[%s446 + $0x1f0] sm:$0xff] %v571
                %v573 = vld [vmem:[%s445 + $0x1f8] sm:$0xff]
                %574 = vst [vmem:[%s446 + $0x1f8] sm:$0xff] %v573
                %v575 = vld [vmem:[%s445 + $0x200] sm:$0xff]
                %576 = vst [vmem:[%s446 + $0x200] sm:$0xff] %v575
                %v577 = vld [vmem:[%s445 + $0x208] sm:$0xff]
                %578 = vst [vmem:[%s446 + $0x208] sm:$0xff] %v577
                %v579 = vld [vmem:[%s445 + $0x210] sm:$0xff]
                %580 = vst [vmem:[%s446 + $0x210] sm:$0xff] %v579
                %v581 = vld [vmem:[%s445 + $0x218] sm:$0xff]
                %582 = vst [vmem:[%s446 + $0x218] sm:$0xff] %v581
                %v583 = vld [vmem:[%s445 + $0x220] sm:$0xff]
                %584 = vst [vmem:[%s446 + $0x220] sm:$0xff] %v583
                %v585 = vld [vmem:[%s445 + $0x228] sm:$0xff]
                %586 = vst [vmem:[%s446 + $0x228] sm:$0xff] %v585
                %v587 = vld [vmem:[%s445 + $0x230] sm:$0xff]
                %588 = vst [vmem:[%s446 + $0x230] sm:$0xff] %v587
                %v589 = vld [vmem:[%s445 + $0x238] sm:$0xff]
                %590 = vst [vmem:[%s446 + $0x238] sm:$0xff] %v589
              $region98: #{tpu_custom_call.1} parent=92 // loop_footer
                %s444 = sadd.s32 1, %s440
              $region99: #{tpu_custom_call.1} parent=92 // loop_footer_branch
                %439 = sbr.rel target = $region95
              $region100: #{tpu_custom_call.1} parent=92 // loop_exit
                _
            $region93: #{tpu_custom_call.1} parent=77 // pred_fallthru
              _
            %p591 = pneg %p435
            // Predicated region
            $region101: #{tpu_custom_call.1} parent=77 // pred_check
              _
            $region102: #{tpu_custom_call.1} parent=77 // pred_check_branch
              %593 = sbr.rel (%p435) target = $region104
            $region103: #{tpu_custom_call.1} parent=77 // pred_region
              %s594 = sand.u32 576, 7
            $region104: #{tpu_custom_call.1} parent=77 // pred_fallthru
              _
          $region78: #{tpu_custom_call.1} parent=39 // pred_fallthru
            _
          // Predicated region
          $region79: #{tpu_custom_call.1} parent=39 // pred_check
            %p420 = pneg %p416
          $region80: #{tpu_custom_call.1} parent=39 // pred_check_branch
            %422 = sbr.rel (%p420) target = $region82
          $region81: #{tpu_custom_call.1} parent=39 // pred_region
            %s423 = sshllo.u32 0, 576
            loop: start=0, step=1, limit=1
            $region83: #{tpu_custom_call.1} parent=81 // loop_pre_header
              _
            $region84: #{tpu_custom_call.1} parent=81 // loop_header
              %s425 = sphi 0, %s429
              %p426 = scmp.ge.s32.totalorder %s425, 1
              %s430 = sphi %s3, %s3
              %s431 = sphi [#allocation4], [#allocation4]
            $region85: #{tpu_custom_call.1} parent=81 // loop_header_branch
              %428 = sbr.rel (%p426) target = $region89
            $region86: #{tpu_custom_call.1} parent=81 // loop_body
              %v432 = vld [vmem:[%s430] sm:%s423]
              %433 = vst [vmem:[%s431] sm:%s423] %v432
            $region87: #{tpu_custom_call.1} parent=81 // loop_footer
              %s429 = sadd.s32 1, %s425
            $region88: #{tpu_custom_call.1} parent=81 // loop_footer_branch
              %424 = sbr.rel target = $region84
            $region89: #{tpu_custom_call.1} parent=81 // loop_exit
              _
          $region82: #{tpu_custom_call.1} parent=39 // pred_fallthru
            _
          // Predicated region
          $region105: #{tpu_custom_call.1} parent=39 // pred_check
            _
          $region106: #{tpu_custom_call.1} parent=39 // pred_check_branch
            %597 = sbr.rel (0) target = $region108
          $region107: #{tpu_custom_call.1} parent=39 // pred_region
            %598 = vsyncadd %s414, 9216
          $region108: #{tpu_custom_call.1} parent=39 // pred_fallthru
            _
          %s599 = smul.u32 4, 16
          %s600 = smul.u32 %s599, 1
          %s601 = sshll.u32 %s600, 4
          %602 = dma.done [#allocation5], %s601
          %s603 = smul.u32 4, 9
          %s604 = smul.u32 %s603, 16
          %s605 = smul.u32 %s604, 1
          %s606 = sshll.u32 %s605, 4
          %607 = dma.done %s414, %s606
        $region40: #{tpu_custom_call.1} parent=35 // pred_fallthru
          _
        %v608 = vld [vmem:[%s320] sm:$0xf]
        %v609 = vld [vmem:[%s320 + $0x4] sm:$0xf]
        %v610 = vld [vmem:[%s320 + $0x8] sm:$0x1]
        %v611 = vld [vmem:[%s320 + $0xc] sm:$0xf]
        %v612 = vld [vmem:[%s320 + $0x10] sm:$0xf]
        %v613 = vld [vmem:[%s320 + $0x14] sm:$0x1]
        %v614 = vld [vmem:[%s320 + $0x18] sm:$0xf]
        %v615 = vld [vmem:[%s320 + $0x1c] sm:$0xf]
        %v616 = vld [vmem:[%s320 + $0x20] sm:$0x1]
        %v617 = vld [vmem:[%s320 + $0x24] sm:$0xf]
        %v618 = vld [vmem:[%s320 + $0x28] sm:$0xf]
        %v619 = vld [vmem:[%s320 + $0x2c] sm:$0x1]
        %v620 = vld [vmem:[%s320 + $0x30] sm:$0xf]
        %v621 = vld [vmem:[%s320 + $0x34] sm:$0xf]
        %v622 = vld [vmem:[%s320 + $0x38] sm:$0x1]
        %v623 = vld [vmem:[%s320 + $0x3c] sm:$0xf]
        %v624 = vld [vmem:[%s320 + $0x40] sm:$0xf]
        %v625 = vld [vmem:[%s320 + $0x44] sm:$0x1]
        %v626 = vld [vmem:[%s320 + $0x48] sm:$0xf]
        %v627 = vld [vmem:[%s320 + $0x4c] sm:$0xf]
        %v628 = vld [vmem:[%s320 + $0x50] sm:$0x1]
        %v629 = vld [vmem:[%s320 + $0x54] sm:$0xf]
        %v630 = vld [vmem:[%s320 + $0x58] sm:$0xf]
        %v631 = vld [vmem:[%s320 + $0x5c] sm:$0x1]
        %v632 = vld [vmem:[%s342] sm:$0xf]
        %v633 = vld [vmem:[%s342 + $0x4] sm:$0xf]
        %v634 = vld [vmem:[%s342 + $0x8] sm:$0x1]
        %v635 = vld [vmem:[%s342 + $0xc] sm:$0xf]
        %v636 = vld [vmem:[%s342 + $0x10] sm:$0xf]
        %v637 = vld [vmem:[%s342 + $0x14] sm:$0x1]
        %v663 = vunpack.c.l.s4 1966171168
        %v664 = vunpack.c.0.s8 %v663
        %v665 = vlaneseq
        %v666 = vshrl.u32 %v665, 7
        %v667 = vsub.s32 %v664, %v666
        %v668 = vrot.slane %v608, %v667
        %v669 = vcombine.high %v668, %v668
        %v671 = vunpack.c.l.s4 1966171168
        %v672 = vunpack.c.0.s8 %v671
        %v673 = vlaneseq
        %v674 = vshrl.u32 %v673, 7
        %v675 = vsub.s32 %v672, %v674
        %v676 = vrot.slane %v668, %v675
        %v678 = vunpack.c.l.s4 1966171168
        %v679 = vunpack.c.0.s8 %v678
        %v680 = vlaneseq
        %v681 = vshrl.u32 %v680, 7
        %v682 = vsub.s32 %v679, %v681
        %v683 = vrot.slane %v669, %v682
        %v684 = vcombine.high %v676, %v676
        %v685 = vcombine.high %v683, %v683
        %v687 = vunpack.c.l.s4 1966171168
        %v688 = vunpack.c.0.s8 %v687
        %v689 = vlaneseq
        %v690 = vshrl.u32 %v689, 7
        %v691 = vsub.s32 %v688, %v690
        %v692 = vrot.slane %v609, %v691
        %v693 = vcombine.high %v692, %v692
        %v695 = vunpack.c.l.s4 1966171168
        %v696 = vunpack.c.0.s8 %v695
        %v697 = vlaneseq
        %v698 = vshrl.u32 %v697, 7
        %v699 = vsub.s32 %v696, %v698
        %v700 = vrot.slane %v692, %v699
        %v702 = vunpack.c.l.s4 1966171168
        %v703 = vunpack.c.0.s8 %v702
        %v704 = vlaneseq
        %v705 = vshrl.u32 %v704, 7
        %v706 = vsub.s32 %v703, %v705
        %v707 = vrot.slane %v693, %v706
        %v708 = vcombine.high %v700, %v700
        %v709 = vcombine.high %v707, %v707
        %v711 = vunpack.c.l.s4 1966171168
        %v712 = vunpack.c.0.s8 %v711
        %v713 = vlaneseq
        %v714 = vshrl.u32 %v713, 7
        %v715 = vsub.s32 %v712, %v714
        %v716 = vrot.slane %v610, %v715
        %v718 = vunpack.c.l.s4 1966171168
        %v719 = vunpack.c.0.s8 %v718
        %v720 = vlaneseq
        %v721 = vshrl.u32 %v720, 7
        %v722 = vsub.s32 %v719, %v721
        %v723 = vrot.slane %v716, %v722
        %v725 = vunpack.c.l.s4 1966171168
        %v726 = vunpack.c.0.s8 %v725
        %v727 = vlaneseq
        %v728 = vshrl.u32 %v727, 7
        %v729 = vsub.s32 %v726, %v728
        %v730 = vrot.slane %v611, %v729
        %v731 = vcombine.high %v730, %v730
        %v733 = vunpack.c.l.s4 1966171168
        %v734 = vunpack.c.0.s8 %v733
        %v735 = vlaneseq
        %v736 = vshrl.u32 %v735, 7
        %v737 = vsub.s32 %v734, %v736
        %v738 = vrot.slane %v730, %v737
        %v740 = vunpack.c.l.s4 1966171168
        %v741 = vunpack.c.0.s8 %v740
        %v742 = vlaneseq
        %v743 = vshrl.u32 %v742, 7
        %v744 = vsub.s32 %v741, %v743
        %v745 = vrot.slane %v731, %v744
        %v746 = vcombine.high %v738, %v738
        %v747 = vcombine.high %v745, %v745
        %v749 = vunpack.c.l.s4 1966171168
        %v750 = vunpack.c.0.s8 %v749
        %v751 = vlaneseq
        %v752 = vshrl.u32 %v751, 7
        %v753 = vsub.s32 %v750, %v752
        %v754 = vrot.slane %v612, %v753
        %v755 = vcombine.high %v754, %v754
        %v757 = vunpack.c.l.s4 1966171168
        %v758 = vunpack.c.0.s8 %v757
        %v759 = vlaneseq
        %v760 = vshrl.u32 %v759, 7
        %v761 = vsub.s32 %v758, %v760
        %v762 = vrot.slane %v754, %v761
        %v764 = vunpack.c.l.s4 1966171168
        %v765 = vunpack.c.0.s8 %v764
        %v766 = vlaneseq
        %v767 = vshrl.u32 %v766, 7
        %v768 = vsub.s32 %v765, %v767
        %v769 = vrot.slane %v755, %v768
        %v770 = vcombine.high %v762, %v762
        %v771 = vcombine.high %v769, %v769
        %v773 = vunpack.c.l.s4 1966171168
        %v774 = vunpack.c.0.s8 %v773
        %v775 = vlaneseq
        %v776 = vshrl.u32 %v775, 7
        %v777 = vsub.s32 %v774, %v776
        %v778 = vrot.slane %v613, %v777
        %v780 = vunpack.c.l.s4 1966171168
        %v781 = vunpack.c.0.s8 %v780
        %v782 = vlaneseq
        %v783 = vshrl.u32 %v782, 7
        %v784 = vsub.s32 %v781, %v783
        %v785 = vrot.slane %v778, %v784
        %v787 = vunpack.c.l.s4 1966171168
        %v788 = vunpack.c.0.s8 %v787
        %v789 = vlaneseq
        %v790 = vshrl.u32 %v789, 7
        %v791 = vsub.s32 %v788, %v790
        %v792 = vrot.slane %v614, %v791
        %v793 = vcombine.high %v792, %v792
        %v795 = vunpack.c.l.s4 1966171168
        %v796 = vunpack.c.0.s8 %v795
        %v797 = vlaneseq
        %v798 = vshrl.u32 %v797, 7
        %v799 = vsub.s32 %v796, %v798
        %v800 = vrot.slane %v792, %v799
        %v802 = vunpack.c.l.s4 1966171168
        %v803 = vunpack.c.0.s8 %v802
        %v804 = vlaneseq
        %v805 = vshrl.u32 %v804, 7
        %v806 = vsub.s32 %v803, %v805
        %v807 = vrot.slane %v793, %v806
        %v808 = vcombine.high %v800, %v800
        %v809 = vcombine.high %v807, %v807
        %v811 = vunpack.c.l.s4 1966171168
        %v812 = vunpack.c.0.s8 %v811
        %v813 = vlaneseq
        %v814 = vshrl.u32 %v813, 7
        %v815 = vsub.s32 %v812, %v814
        %v816 = vrot.slane %v615, %v815
        %v817 = vcombine.high %v816, %v816
        %v819 = vunpack.c.l.s4 1966171168
        %v820 = vunpack.c.0.s8 %v819
        %v821 = vlaneseq
        %v822 = vshrl.u32 %v821, 7
        %v823 = vsub.s32 %v820, %v822
        %v824 = vrot.slane %v816, %v823
        %v826 = vunpack.c.l.s4 1966171168
        %v827 = vunpack.c.0.s8 %v826
        %v828 = vlaneseq
        %v829 = vshrl.u32 %v828, 7
        %v830 = vsub.s32 %v827, %v829
        %v831 = vrot.slane %v817, %v830
        %v832 = vcombine.high %v824, %v824
        %v833 = vcombine.high %v831, %v831
        %v835 = vunpack.c.l.s4 1966171168
        %v836 = vunpack.c.0.s8 %v835
        %v837 = vlaneseq
        %v838 = vshrl.u32 %v837, 7
        %v839 = vsub.s32 %v836, %v838
        %v840 = vrot.slane %v616, %v839
        %v842 = vunpack.c.l.s4 1966171168
        %v843 = vunpack.c.0.s8 %v842
        %v844 = vlaneseq
        %v845 = vshrl.u32 %v844, 7
        %v846 = vsub.s32 %v843, %v845
        %v847 = vrot.slane %v840, %v846
        %v849 = vunpack.c.l.s4 1966171168
        %v850 = vunpack.c.0.s8 %v849
        %v851 = vlaneseq
        %v852 = vshrl.u32 %v851, 7
        %v853 = vsub.s32 %v850, %v852
        %v854 = vrot.slane %v617, %v853
        %v855 = vcombine.high %v854, %v854
        %v857 = vunpack.c.l.s4 1966171168
        %v858 = vunpack.c.0.s8 %v857
        %v859 = vlaneseq
        %v860 = vshrl.u32 %v859, 7
        %v861 = vsub.s32 %v858, %v860
        %v862 = vrot.slane %v854, %v861
        %v864 = vunpack.c.l.s4 1966171168
        %v865 = vunpack.c.0.s8 %v864
        %v866 = vlaneseq
        %v867 = vshrl.u32 %v866, 7
        %v868 = vsub.s32 %v865, %v867
        %v869 = vrot.slane %v855, %v868
        %v870 = vcombine.high %v862, %v862
        %v871 = vcombine.high %v869, %v869
        %v873 = vunpack.c.l.s4 1966171168
        %v874 = vunpack.c.0.s8 %v873
        %v875 = vlaneseq
        %v876 = vshrl.u32 %v875, 7
        %v877 = vsub.s32 %v874, %v876
        %v878 = vrot.slane %v618, %v877
        %v879 = vcombine.high %v878, %v878
        %v881 = vunpack.c.l.s4 1966171168
        %v882 = vunpack.c.0.s8 %v881
        %v883 = vlaneseq
        %v884 = vshrl.u32 %v883, 7
        %v885 = vsub.s32 %v882, %v884
        %v886 = vrot.slane %v878, %v885
        %v888 = vunpack.c.l.s4 1966171168
        %v889 = vunpack.c.0.s8 %v888
        %v890 = vlaneseq
        %v891 = vshrl.u32 %v890, 7
        %v892 = vsub.s32 %v889, %v891
        %v893 = vrot.slane %v879, %v892
        %v894 = vcombine.high %v886, %v886
        %v895 = vcombine.high %v893, %v893
        %v897 = vunpack.c.l.s4 1966171168
        %v898 = vunpack.c.0.s8 %v897
        %v899 = vlaneseq
        %v900 = vshrl.u32 %v899, 7
        %v901 = vsub.s32 %v898, %v900
        %v902 = vrot.slane %v619, %v901
        %v904 = vunpack.c.l.s4 1966171168
        %v905 = vunpack.c.0.s8 %v904
        %v906 = vlaneseq
        %v907 = vshrl.u32 %v906, 7
        %v908 = vsub.s32 %v905, %v907
        %v909 = vrot.slane %v902, %v908
        %v911 = vunpack.c.l.s4 1966171168
        %v912 = vunpack.c.0.s8 %v911
        %v913 = vlaneseq
        %v914 = vshrl.u32 %v913, 7
        %v915 = vsub.s32 %v912, %v914
        %v916 = vrot.slane %v620, %v915
        %v917 = vcombine.high %v916, %v916
        %v919 = vunpack.c.l.s4 1966171168
        %v920 = vunpack.c.0.s8 %v919
        %v921 = vlaneseq
        %v922 = vshrl.u32 %v921, 7
        %v923 = vsub.s32 %v920, %v922
        %v924 = vrot.slane %v916, %v923
        %v926 = vunpack.c.l.s4 1966171168
        %v927 = vunpack.c.0.s8 %v926
        %v928 = vlaneseq
        %v929 = vshrl.u32 %v928, 7
        %v930 = vsub.s32 %v927, %v929
        %v931 = vrot.slane %v917, %v930
        %v932 = vcombine.high %v924, %v924
        %v933 = vcombine.high %v931, %v931
        %v935 = vunpack.c.l.s4 1966171168
        %v936 = vunpack.c.0.s8 %v935
        %v937 = vlaneseq
        %v938 = vshrl.u32 %v937, 7
        %v939 = vsub.s32 %v936, %v938
        %v940 = vrot.slane %v621, %v939
        %v941 = vcombine.high %v940, %v940
        %v943 = vunpack.c.l.s4 1966171168
        %v944 = vunpack.c.0.s8 %v943
        %v945 = vlaneseq
        %v946 = vshrl.u32 %v945, 7
        %v947 = vsub.s32 %v944, %v946
        %v948 = vrot.slane %v940, %v947
        %v950 = vunpack.c.l.s4 1966171168
        %v951 = vunpack.c.0.s8 %v950
        %v952 = vlaneseq
        %v953 = vshrl.u32 %v952, 7
        %v954 = vsub.s32 %v951, %v953
        %v955 = vrot.slane %v941, %v954
        %v956 = vcombine.high %v948, %v948
        %v957 = vcombine.high %v955, %v955
        %v959 = vunpack.c.l.s4 1966171168
        %v960 = vunpack.c.0.s8 %v959
        %v961 = vlaneseq
        %v962 = vshrl.u32 %v961, 7
        %v963 = vsub.s32 %v960, %v962
        %v964 = vrot.slane %v622, %v963
        %v966 = vunpack.c.l.s4 1966171168
        %v967 = vunpack.c.0.s8 %v966
        %v968 = vlaneseq
        %v969 = vshrl.u32 %v968, 7
        %v970 = vsub.s32 %v967, %v969
        %v971 = vrot.slane %v964, %v970
        %v973 = vunpack.c.l.s4 1966171168
        %v974 = vunpack.c.0.s8 %v973
        %v975 = vlaneseq
        %v976 = vshrl.u32 %v975, 7
        %v977 = vsub.s32 %v974, %v976
        %v978 = vrot.slane %v623, %v977
        %v979 = vcombine.high %v978, %v978
        %v981 = vunpack.c.l.s4 1966171168
        %v982 = vunpack.c.0.s8 %v981
        %v983 = vlaneseq
        %v984 = vshrl.u32 %v983, 7
        %v985 = vsub.s32 %v982, %v984
        %v986 = vrot.slane %v978, %v985
        %v988 = vunpack.c.l.s4 1966171168
        %v989 = vunpack.c.0.s8 %v988
        %v990 = vlaneseq
        %v991 = vshrl.u32 %v990, 7
        %v992 = vsub.s32 %v989, %v991
        %v993 = vrot.slane %v979, %v992
        %v994 = vcombine.high %v986, %v986
        %v995 = vcombine.high %v993, %v993
        %v997 = vunpack.c.l.s4 1966171168
        %v998 = vunpack.c.0.s8 %v997
        %v999 = vlaneseq
        %v1000 = vshrl.u32 %v999, 7
        %v1001 = vsub.s32 %v998, %v1000
        %v1002 = vrot.slane %v624, %v1001
        %v1003 = vcombine.high %v1002, %v1002
        %v1005 = vunpack.c.l.s4 1966171168
        %v1006 = vunpack.c.0.s8 %v1005
        %v1007 = vlaneseq
        %v1008 = vshrl.u32 %v1007, 7
        %v1009 = vsub.s32 %v1006, %v1008
        %v1010 = vrot.slane %v1002, %v1009
        %v1012 = vunpack.c.l.s4 1966171168
        %v1013 = vunpack.c.0.s8 %v1012
        %v1014 = vlaneseq
        %v1015 = vshrl.u32 %v1014, 7
        %v1016 = vsub.s32 %v1013, %v1015
        %v1017 = vrot.slane %v1003, %v1016
        %v1018 = vcombine.high %v1010, %v1010
        %v1019 = vcombine.high %v1017, %v1017
        %v1021 = vunpack.c.l.s4 1966171168
        %v1022 = vunpack.c.0.s8 %v1021
        %v1023 = vlaneseq
        %v1024 = vshrl.u32 %v1023, 7
        %v1025 = vsub.s32 %v1022, %v1024
        %v1026 = vrot.slane %v625, %v1025
        %v1028 = vunpack.c.l.s4 1966171168
        %v1029 = vunpack.c.0.s8 %v1028
        %v1030 = vlaneseq
        %v1031 = vshrl.u32 %v1030, 7
        %v1032 = vsub.s32 %v1029, %v1031
        %v1033 = vrot.slane %v1026, %v1032
        %v1035 = vunpack.c.l.s4 1966171168
        %v1036 = vunpack.c.0.s8 %v1035
        %v1037 = vlaneseq
        %v1038 = vshrl.u32 %v1037, 7
        %v1039 = vsub.s32 %v1036, %v1038
        %v1040 = vrot.slane %v626, %v1039
        %v1041 = vcombine.high %v1040, %v1040
        %v1043 = vunpack.c.l.s4 1966171168
        %v1044 = vunpack.c.0.s8 %v1043
        %v1045 = vlaneseq
        %v1046 = vshrl.u32 %v1045, 7
        %v1047 = vsub.s32 %v1044, %v1046
        %v1048 = vrot.slane %v1040, %v1047
        %v1050 = vunpack.c.l.s4 1966171168
        %v1051 = vunpack.c.0.s8 %v1050
        %v1052 = vlaneseq
        %v1053 = vshrl.u32 %v1052, 7
        %v1054 = vsub.s32 %v1051, %v1053
        %v1055 = vrot.slane %v1041, %v1054
        %v1056 = vcombine.high %v1048, %v1048
        %v1057 = vcombine.high %v1055, %v1055
        %v1059 = vunpack.c.l.s4 1966171168
        %v1060 = vunpack.c.0.s8 %v1059
        %v1061 = vlaneseq
        %v1062 = vshrl.u32 %v1061, 7
        %v1063 = vsub.s32 %v1060, %v1062
        %v1064 = vrot.slane %v627, %v1063
        %v1065 = vcombine.high %v1064, %v1064
        %v1067 = vunpack.c.l.s4 1966171168
        %v1068 = vunpack.c.0.s8 %v1067
        %v1069 = vlaneseq
        %v1070 = vshrl.u32 %v1069, 7
        %v1071 = vsub.s32 %v1068, %v1070
        %v1072 = vrot.slane %v1064, %v1071
        %v1074 = vunpack.c.l.s4 1966171168
        %v1075 = vunpack.c.0.s8 %v1074
        %v1076 = vlaneseq
        %v1077 = vshrl.u32 %v1076, 7
        %v1078 = vsub.s32 %v1075, %v1077
        %v1079 = vrot.slane %v1065, %v1078
        %v1080 = vcombine.high %v1072, %v1072
        %v1081 = vcombine.high %v1079, %v1079
        %v1083 = vunpack.c.l.s4 1966171168
        %v1084 = vunpack.c.0.s8 %v1083
        %v1085 = vlaneseq
        %v1086 = vshrl.u32 %v1085, 7
        %v1087 = vsub.s32 %v1084, %v1086
        %v1088 = vrot.slane %v628, %v1087
        %v1090 = vunpack.c.l.s4 1966171168
        %v1091 = vunpack.c.0.s8 %v1090
        %v1092 = vlaneseq
        %v1093 = vshrl.u32 %v1092, 7
        %v1094 = vsub.s32 %v1091, %v1093
        %v1095 = vrot.slane %v1088, %v1094
        %v1097 = vunpack.c.l.s4 1966171168
        %v1098 = vunpack.c.0.s8 %v1097
        %v1099 = vlaneseq
        %v1100 = vshrl.u32 %v1099, 7
        %v1101 = vsub.s32 %v1098, %v1100
        %v1102 = vrot.slane %v629, %v1101
        %v1103 = vcombine.high %v1102, %v1102
        %v1105 = vunpack.c.l.s4 1966171168
        %v1106 = vunpack.c.0.s8 %v1105
        %v1107 = vlaneseq
        %v1108 = vshrl.u32 %v1107, 7
        %v1109 = vsub.s32 %v1106, %v1108
        %v1110 = vrot.slane %v1102, %v1109
        %v1112 = vunpack.c.l.s4 1966171168
        %v1113 = vunpack.c.0.s8 %v1112
        %v1114 = vlaneseq
        %v1115 = vshrl.u32 %v1114, 7
        %v1116 = vsub.s32 %v1113, %v1115
        %v1117 = vrot.slane %v1103, %v1116
        %v1118 = vcombine.high %v1110, %v1110
        %v1119 = vcombine.high %v1117, %v1117
        %v1121 = vunpack.c.l.s4 1966171168
        %v1122 = vunpack.c.0.s8 %v1121
        %v1123 = vlaneseq
        %v1124 = vshrl.u32 %v1123, 7
        %v1125 = vsub.s32 %v1122, %v1124
        %v1126 = vrot.slane %v630, %v1125
        %v1127 = vcombine.high %v1126, %v1126
        %v1129 = vunpack.c.l.s4 1966171168
        %v1130 = vunpack.c.0.s8 %v1129
        %v1131 = vlaneseq
        %v1132 = vshrl.u32 %v1131, 7
        %v1133 = vsub.s32 %v1130, %v1132
        %v1134 = vrot.slane %v1126, %v1133
        %v1136 = vunpack.c.l.s4 1966171168
        %v1137 = vunpack.c.0.s8 %v1136
        %v1138 = vlaneseq
        %v1139 = vshrl.u32 %v1138, 7
        %v1140 = vsub.s32 %v1137, %v1139
        %v1141 = vrot.slane %v1127, %v1140
        %v1142 = vcombine.high %v1134, %v1134
        %v1143 = vcombine.high %v1141, %v1141
        %v1145 = vunpack.c.l.s4 1966171168
        %v1146 = vunpack.c.0.s8 %v1145
        %v1147 = vlaneseq
        %v1148 = vshrl.u32 %v1147, 7
        %v1149 = vsub.s32 %v1146, %v1148
        %v1150 = vrot.slane %v631, %v1149
        %v1152 = vunpack.c.l.s4 1966171168
        %v1153 = vunpack.c.0.s8 %v1152
        %v1154 = vlaneseq
        %v1155 = vshrl.u32 %v1154, 7
        %v1156 = vsub.s32 %v1153, %v1155
        %v1157 = vrot.slane %v1150, %v1156
        %v1158 = vld [vmem:[#allocation3] sm:$0xff]
        %v1159 = vld [vmem:[#allocation3 + $0x8] sm:$0xff]
        %v1160 = vld [vmem:[#allocation3 + $0x10] sm:$0xff]
        %v1161 = vld [vmem:[#allocation3 + $0x18] sm:$0xff]
        %v1162 = vld [vmem:[#allocation3 + $0x20] sm:$0xff]
        %v1163 = vld [vmem:[#allocation3 + $0x28] sm:$0xff]
        %v1164 = vld [vmem:[#allocation3 + $0x30] sm:$0xff]
        %v1165 = vld [vmem:[#allocation3 + $0x38] sm:$0xff]
        %v1166 = vld [vmem:[%s4] sm:$0x1]
        %v1168 = vlaneseq
        %v1169 = vshrl.u32 %v1168, 7
        %v1170 = vsub.s32 0, %v1169
        %v1171 = vrot.slane %v1166, %v1170
        %v1173 = vcombine.low %v676, %v683
        %v1174 = vcombine.low %v684, %v685
        %v1175 = vcombine.low %v700, %v707
        %v1176 = vcombine.low %v708, %v709
        %v1178 = vunpack.c.l.s4 1966171168
        %v1179 = vunpack.c.0.s8 %v1178
        %v1180 = vlaneseq
        %v1181 = vshrl.u32 %v1180, 7
        %v1182 = vsub.s32 %v1179, %v1181
        %v1183 = vrot.slane %v1173, %v1182
        %v1185 = vunpack.c.l.s4 1966171168
        %v1186 = vunpack.c.0.s8 %v1185
        %v1187 = vlaneseq
        %v1188 = vshrl.u32 %v1187, 7
        %v1189 = vsub.s32 %v1186, %v1188
        %v1190 = vrot.slane %v1174, %v1189
        %v1192 = vunpack.c.l.s4 1966171168
        %v1193 = vunpack.c.0.s8 %v1192
        %v1194 = vlaneseq
        %v1195 = vshrl.u32 %v1194, 7
        %v1196 = vsub.s32 %v1193, %v1195
        %v1197 = vrot.slane %v1175, %v1196
        %v1199 = vunpack.c.l.s4 1966171168
        %v1200 = vunpack.c.0.s8 %v1199
        %v1201 = vlaneseq
        %v1202 = vshrl.u32 %v1201, 7
        %v1203 = vsub.s32 %v1200, %v1202
        %v1204 = vrot.slane %v1176, %v1203
        %v1205 = vcombine.low %v1183, %v1190
        %v1206 = vcombine.low %v1197, %v1204
        %v1208 = vunpack.c.l.s4 1966171168
        %v1209 = vunpack.c.0.s8 %v1208
        %v1210 = vlaneseq
        %v1211 = vshrl.u32 %v1210, 7
        %v1212 = vsub.s32 %v1209, %v1211
        %v1213 = vrot.slane %v1205, %v1212
        %v1215 = vunpack.c.l.s4 1966171168
        %v1216 = vunpack.c.0.s8 %v1215
        %v1217 = vlaneseq
        %v1218 = vshrl.u32 %v1217, 7
        %v1219 = vsub.s32 %v1216, %v1218
        %v1220 = vrot.slane %v1206, %v1219
        %v1221 = vcombine.low %v1213, %v1220
        %v1222 = vcombine.low %v723, %v738
        %v1223 = vcombine.low %v745, %v746
        %v1224 = vcombine.low %v747, %v762
        %v1225 = vcombine.low %v769, %v770
        %v1227 = vunpack.c.l.s4 1966171168
        %v1228 = vunpack.c.0.s8 %v1227
        %v1229 = vlaneseq
        %v1230 = vshrl.u32 %v1229, 7
        %v1231 = vsub.s32 %v1228, %v1230
        %v1232 = vrot.slane %v1222, %v1231
        %v1234 = vunpack.c.l.s4 1966171168
        %v1235 = vunpack.c.0.s8 %v1234
        %v1236 = vlaneseq
        %v1237 = vshrl.u32 %v1236, 7
        %v1238 = vsub.s32 %v1235, %v1237
        %v1239 = vrot.slane %v1223, %v1238
        %v1241 = vunpack.c.l.s4 1966171168
        %v1242 = vunpack.c.0.s8 %v1241
        %v1243 = vlaneseq
        %v1244 = vshrl.u32 %v1243, 7
        %v1245 = vsub.s32 %v1242, %v1244
        %v1246 = vrot.slane %v1224, %v1245
        %v1248 = vunpack.c.l.s4 1966171168
        %v1249 = vunpack.c.0.s8 %v1248
        %v1250 = vlaneseq
        %v1251 = vshrl.u32 %v1250, 7
        %v1252 = vsub.s32 %v1249, %v1251
        %v1253 = vrot.slane %v1225, %v1252
        %v1254 = vcombine.low %v1232, %v1239
        %v1255 = vcombine.low %v1246, %v1253
        %v1257 = vunpack.c.l.s4 1966171168
        %v1258 = vunpack.c.0.s8 %v1257
        %v1259 = vlaneseq
        %v1260 = vshrl.u32 %v1259, 7
        %v1261 = vsub.s32 %v1258, %v1260
        %v1262 = vrot.slane %v1254, %v1261
        %v1264 = vunpack.c.l.s4 1966171168
        %v1265 = vunpack.c.0.s8 %v1264
        %v1266 = vlaneseq
        %v1267 = vshrl.u32 %v1266, 7
        %v1268 = vsub.s32 %v1265, %v1267
        %v1269 = vrot.slane %v1255, %v1268
        %v1270 = vcombine.low %v1262, %v1269
        %v1271 = vcombine.low %v771, %v785
        %v1272 = vcombine.low %v800, %v807
        %v1273 = vcombine.low %v808, %v809
        %v1274 = vcombine.low %v824, %v831
        %v1276 = vunpack.c.l.s4 1966171168
        %v1277 = vunpack.c.0.s8 %v1276
        %v1278 = vlaneseq
        %v1279 = vshrl.u32 %v1278, 7
        %v1280 = vsub.s32 %v1277, %v1279
        %v1281 = vrot.slane %v1271, %v1280
        %v1283 = vunpack.c.l.s4 1966171168
        %v1284 = vunpack.c.0.s8 %v1283
        %v1285 = vlaneseq
        %v1286 = vshrl.u32 %v1285, 7
        %v1287 = vsub.s32 %v1284, %v1286
        %v1288 = vrot.slane %v1272, %v1287
        %v1290 = vunpack.c.l.s4 1966171168
        %v1291 = vunpack.c.0.s8 %v1290
        %v1292 = vlaneseq
        %v1293 = vshrl.u32 %v1292, 7
        %v1294 = vsub.s32 %v1291, %v1293
        %v1295 = vrot.slane %v1273, %v1294
        %v1297 = vunpack.c.l.s4 1966171168
        %v1298 = vunpack.c.0.s8 %v1297
        %v1299 = vlaneseq
        %v1300 = vshrl.u32 %v1299, 7
        %v1301 = vsub.s32 %v1298, %v1300
        %v1302 = vrot.slane %v1274, %v1301
        %v1303 = vcombine.low %v1281, %v1288
        %v1304 = vcombine.low %v1295, %v1302
        %v1306 = vunpack.c.l.s4 1966171168
        %v1307 = vunpack.c.0.s8 %v1306
        %v1308 = vlaneseq
        %v1309 = vshrl.u32 %v1308, 7
        %v1310 = vsub.s32 %v1307, %v1309
        %v1311 = vrot.slane %v1303, %v1310
        %v1313 = vunpack.c.l.s4 1966171168
        %v1314 = vunpack.c.0.s8 %v1313
        %v1315 = vlaneseq
        %v1316 = vshrl.u32 %v1315, 7
        %v1317 = vsub.s32 %v1314, %v1316
        %v1318 = vrot.slane %v1304, %v1317
        %v1319 = vcombine.low %v1311, %v1318
        %v1320 = vcombine.low %v832, %v833
        %v1321 = vcombine.low %v847, %v862
        %v1322 = vcombine.low %v869, %v870
        %v1323 = vcombine.low %v871, %v886
        %v1325 = vunpack.c.l.s4 1966171168
        %v1326 = vunpack.c.0.s8 %v1325
        %v1327 = vlaneseq
        %v1328 = vshrl.u32 %v1327, 7
        %v1329 = vsub.s32 %v1326, %v1328
        %v1330 = vrot.slane %v1320, %v1329
        %v1332 = vunpack.c.l.s4 1966171168
        %v1333 = vunpack.c.0.s8 %v1332
        %v1334 = vlaneseq
        %v1335 = vshrl.u32 %v1334, 7
        %v1336 = vsub.s32 %v1333, %v1335
        %v1337 = vrot.slane %v1321, %v1336
        %v1339 = vunpack.c.l.s4 1966171168
        %v1340 = vunpack.c.0.s8 %v1339
        %v1341 = vlaneseq
        %v1342 = vshrl.u32 %v1341, 7
        %v1343 = vsub.s32 %v1340, %v1342
        %v1344 = vrot.slane %v1322, %v1343
        %v1346 = vunpack.c.l.s4 1966171168
        %v1347 = vunpack.c.0.s8 %v1346
        %v1348 = vlaneseq
        %v1349 = vshrl.u32 %v1348, 7
        %v1350 = vsub.s32 %v1347, %v1349
        %v1351 = vrot.slane %v1323, %v1350
        %v1352 = vcombine.low %v1330, %v1337
        %v1353 = vcombine.low %v1344, %v1351
        %v1355 = vunpack.c.l.s4 1966171168
        %v1356 = vunpack.c.0.s8 %v1355
        %v1357 = vlaneseq
        %v1358 = vshrl.u32 %v1357, 7
        %v1359 = vsub.s32 %v1356, %v1358
        %v1360 = vrot.slane %v1352, %v1359
        %v1362 = vunpack.c.l.s4 1966171168
        %v1363 = vunpack.c.0.s8 %v1362
        %v1364 = vlaneseq
        %v1365 = vshrl.u32 %v1364, 7
        %v1366 = vsub.s32 %v1363, %v1365
        %v1367 = vrot.slane %v1353, %v1366
        %v1368 = vcombine.low %v1360, %v1367
        %v1369 = vcombine.low %v893, %v894
        %v1370 = vcombine.low %v895, %v909
        %v1371 = vcombine.low %v924, %v931
        %v1372 = vcombine.low %v932, %v933
        %v1374 = vunpack.c.l.s4 1966171168
        %v1375 = vunpack.c.0.s8 %v1374
        %v1376 = vlaneseq
        %v1377 = vshrl.u32 %v1376, 7
        %v1378 = vsub.s32 %v1375, %v1377
        %v1379 = vrot.slane %v1369, %v1378
        %v1381 = vunpack.c.l.s4 1966171168
        %v1382 = vunpack.c.0.s8 %v1381
        %v1383 = vlaneseq
        %v1384 = vshrl.u32 %v1383, 7
        %v1385 = vsub.s32 %v1382, %v1384
        %v1386 = vrot.slane %v1370, %v1385
        %v1388 = vunpack.c.l.s4 1966171168
        %v1389 = vunpack.c.0.s8 %v1388
        %v1390 = vlaneseq
        %v1391 = vshrl.u32 %v1390, 7
        %v1392 = vsub.s32 %v1389, %v1391
        %v1393 = vrot.slane %v1371, %v1392
        %v1395 = vunpack.c.l.s4 1966171168
        %v1396 = vunpack.c.0.s8 %v1395
        %v1397 = vlaneseq
        %v1398 = vshrl.u32 %v1397, 7
        %v1399 = vsub.s32 %v1396, %v1398
        %v1400 = vrot.slane %v1372, %v1399
        %v1401 = vcombine.low %v1379, %v1386
        %v1402 = vcombine.low %v1393, %v1400
        %v1404 = vunpack.c.l.s4 1966171168
        %v1405 = vunpack.c.0.s8 %v1404
        %v1406 = vlaneseq
        %v1407 = vshrl.u32 %v1406, 7
        %v1408 = vsub.s32 %v1405, %v1407
        %v1409 = vrot.slane %v1401, %v1408
        %v1411 = vunpack.c.l.s4 1966171168
        %v1412 = vunpack.c.0.s8 %v1411
        %v1413 = vlaneseq
        %v1414 = vshrl.u32 %v1413, 7
        %v1415 = vsub.s32 %v1412, %v1414
        %v1416 = vrot.slane %v1402, %v1415
        %v1417 = vcombine.low %v1409, %v1416
        %v1418 = vcombine.low %v948, %v955
        %v1419 = vcombine.low %v956, %v957
        %v1420 = vcombine.low %v971, %v986
        %v1421 = vcombine.low %v993, %v994
        %v1423 = vunpack.c.l.s4 1966171168
        %v1424 = vunpack.c.0.s8 %v1423
        %v1425 = vlaneseq
        %v1426 = vshrl.u32 %v1425, 7
        %v1427 = vsub.s32 %v1424, %v1426
        %v1428 = vrot.slane %v1418, %v1427
        %v1430 = vunpack.c.l.s4 1966171168
        %v1431 = vunpack.c.0.s8 %v1430
        %v1432 = vlaneseq
        %v1433 = vshrl.u32 %v1432, 7
        %v1434 = vsub.s32 %v1431, %v1433
        %v1435 = vrot.slane %v1419, %v1434
        %v1437 = vunpack.c.l.s4 1966171168
        %v1438 = vunpack.c.0.s8 %v1437
        %v1439 = vlaneseq
        %v1440 = vshrl.u32 %v1439, 7
        %v1441 = vsub.s32 %v1438, %v1440
        %v1442 = vrot.slane %v1420, %v1441
        %v1444 = vunpack.c.l.s4 1966171168
        %v1445 = vunpack.c.0.s8 %v1444
        %v1446 = vlaneseq
        %v1447 = vshrl.u32 %v1446, 7
        %v1448 = vsub.s32 %v1445, %v1447
        %v1449 = vrot.slane %v1421, %v1448
        %v1450 = vcombine.low %v1428, %v1435
        %v1451 = vcombine.low %v1442, %v1449
        %v1453 = vunpack.c.l.s4 1966171168
        %v1454 = vunpack.c.0.s8 %v1453
        %v1455 = vlaneseq
        %v1456 = vshrl.u32 %v1455, 7
        %v1457 = vsub.s32 %v1454, %v1456
        %v1458 = vrot.slane %v1450, %v1457
        %v1460 = vunpack.c.l.s4 1966171168
        %v1461 = vunpack.c.0.s8 %v1460
        %v1462 = vlaneseq
        %v1463 = vshrl.u32 %v1462, 7
        %v1464 = vsub.s32 %v1461, %v1463
        %v1465 = vrot.slane %v1451, %v1464
        %v1466 = vcombine.low %v1458, %v1465
        %v1467 = vcombine.low %v995, %v1010
        %v1468 = vcombine.low %v1017, %v1018
        %v1469 = vcombine.low %v1019, %v1033
        %v1470 = vcombine.low %v1048, %v1055
        %v1472 = vunpack.c.l.s4 1966171168
        %v1473 = vunpack.c.0.s8 %v1472
        %v1474 = vlaneseq
        %v1475 = vshrl.u32 %v1474, 7
        %v1476 = vsub.s32 %v1473, %v1475
        %v1477 = vrot.slane %v1467, %v1476
        %v1479 = vunpack.c.l.s4 1966171168
        %v1480 = vunpack.c.0.s8 %v1479
        %v1481 = vlaneseq
        %v1482 = vshrl.u32 %v1481, 7
        %v1483 = vsub.s32 %v1480, %v1482
        %v1484 = vrot.slane %v1468, %v1483
        %v1486 = vunpack.c.l.s4 1966171168
        %v1487 = vunpack.c.0.s8 %v1486
        %v1488 = vlaneseq
        %v1489 = vshrl.u32 %v1488, 7
        %v1490 = vsub.s32 %v1487, %v1489
        %v1491 = vrot.slane %v1469, %v1490
        %v1493 = vunpack.c.l.s4 1966171168
        %v1494 = vunpack.c.0.s8 %v1493
        %v1495 = vlaneseq
        %v1496 = vshrl.u32 %v1495, 7
        %v1497 = vsub.s32 %v1494, %v1496
        %v1498 = vrot.slane %v1470, %v1497
        %v1499 = vcombine.low %v1477, %v1484
        %v1500 = vcombine.low %v1491, %v1498
        %v1502 = vunpack.c.l.s4 1966171168
        %v1503 = vunpack.c.0.s8 %v1502
        %v1504 = vlaneseq
        %v1505 = vshrl.u32 %v1504, 7
        %v1506 = vsub.s32 %v1503, %v1505
        %v1507 = vrot.slane %v1499, %v1506
        %v1509 = vunpack.c.l.s4 1966171168
        %v1510 = vunpack.c.0.s8 %v1509
        %v1511 = vlaneseq
        %v1512 = vshrl.u32 %v1511, 7
        %v1513 = vsub.s32 %v1510, %v1512
        %v1514 = vrot.slane %v1500, %v1513
        %v1515 = vcombine.low %v1507, %v1514
        %v1516 = vcombine.low %v1056, %v1057
        %v1517 = vcombine.low %v1072, %v1079
        %v1518 = vcombine.low %v1080, %v1081
        %v1519 = vcombine.low %v1095, %v1110
        %v1521 = vunpack.c.l.s4 1966171168
        %v1522 = vunpack.c.0.s8 %v1521
        %v1523 = vlaneseq
        %v1524 = vshrl.u32 %v1523, 7
        %v1525 = vsub.s32 %v1522, %v1524
        %v1526 = vrot.slane %v1516, %v1525
        %v1528 = vunpack.c.l.s4 1966171168
        %v1529 = vunpack.c.0.s8 %v1528
        %v1530 = vlaneseq
        %v1531 = vshrl.u32 %v1530, 7
        %v1532 = vsub.s32 %v1529, %v1531
        %v1533 = vrot.slane %v1517, %v1532
        %v1535 = vunpack.c.l.s4 1966171168
        %v1536 = vunpack.c.0.s8 %v1535
        %v1537 = vlaneseq
        %v1538 = vshrl.u32 %v1537, 7
        %v1539 = vsub.s32 %v1536, %v1538
        %v1540 = vrot.slane %v1518, %v1539
        %v1542 = vunpack.c.l.s4 1966171168
        %v1543 = vunpack.c.0.s8 %v1542
        %v1544 = vlaneseq
        %v1545 = vshrl.u32 %v1544, 7
        %v1546 = vsub.s32 %v1543, %v1545
        %v1547 = vrot.slane %v1519, %v1546
        %v1548 = vcombine.low %v1526, %v1533
        %v1549 = vcombine.low %v1540, %v1547
        %v1551 = vunpack.c.l.s4 1966171168
        %v1552 = vunpack.c.0.s8 %v1551
        %v1553 = vlaneseq
        %v1554 = vshrl.u32 %v1553, 7
        %v1555 = vsub.s32 %v1552, %v1554
        %v1556 = vrot.slane %v1548, %v1555
        %v1558 = vunpack.c.l.s4 1966171168
        %v1559 = vunpack.c.0.s8 %v1558
        %v1560 = vlaneseq
        %v1561 = vshrl.u32 %v1560, 7
        %v1562 = vsub.s32 %v1559, %v1561
        %v1563 = vrot.slane %v1549, %v1562
        %v1564 = vcombine.low %v1556, %v1563
        %v1565 = vcombine.low %v1117, %v1118
        %v1566 = vcombine.low %v1119, %v1134
        %v1567 = vcombine.low %v1141, %v1142
        %v1568 = vcombine.low %v1143, %v1157
        %v1570 = vunpack.c.l.s4 1966171168
        %v1571 = vunpack.c.0.s8 %v1570
        %v1572 = vlaneseq
        %v1573 = vshrl.u32 %v1572, 7
        %v1574 = vsub.s32 %v1571, %v1573
        %v1575 = vrot.slane %v1565, %v1574
        %v1577 = vunpack.c.l.s4 1966171168
        %v1578 = vunpack.c.0.s8 %v1577
        %v1579 = vlaneseq
        %v1580 = vshrl.u32 %v1579, 7
        %v1581 = vsub.s32 %v1578, %v1580
        %v1582 = vrot.slane %v1566, %v1581
        %v1584 = vunpack.c.l.s4 1966171168
        %v1585 = vunpack.c.0.s8 %v1584
        %v1586 = vlaneseq
        %v1587 = vshrl.u32 %v1586, 7
        %v1588 = vsub.s32 %v1585, %v1587
        %v1589 = vrot.slane %v1567, %v1588
        %v1591 = vunpack.c.l.s4 1966171168
        %v1592 = vunpack.c.0.s8 %v1591
        %v1593 = vlaneseq
        %v1594 = vshrl.u32 %v1593, 7
        %v1595 = vsub.s32 %v1592, %v1594
        %v1596 = vrot.slane %v1568, %v1595
        %v1597 = vcombine.low %v1575, %v1582
        %v1598 = vcombine.low %v1589, %v1596
        %v1600 = vunpack.c.l.s4 1966171168
        %v1601 = vunpack.c.0.s8 %v1600
        %v1602 = vlaneseq
        %v1603 = vshrl.u32 %v1602, 7
        %v1604 = vsub.s32 %v1601, %v1603
        %v1605 = vrot.slane %v1597, %v1604
        %v1607 = vunpack.c.l.s4 1966171168
        %v1608 = vunpack.c.0.s8 %v1607
        %v1609 = vlaneseq
        %v1610 = vshrl.u32 %v1609, 7
        %v1611 = vsub.s32 %v1608, %v1610
        %v1612 = vrot.slane %v1598, %v1611
        %v1613 = vcombine.low %v1605, %v1612
        %1623 = vmatprep.subr.bf16.mxu0 0
        %1624 = vmatpush1.bf16.msra.mxu0 %v1158
        %1625 = vmatprep.subr.bf16.mxu0 0
        %1626 = vmatpush1.bf16.msra.mxu0 %v1159
        %1627 = vmatprep.subr.bf16.mxu0 0
        %1628 = vmatpush1.bf16.msra.mxu0 %v1160
        %1629 = vmatprep.subr.bf16.mxu0 0
        %1630 = vmatpush1.bf16.msra.mxu0 %v1161
        %1631 = vmatprep.subr.bf16.mxu0 0
        %1632 = vmatpush1.bf16.msra.mxu0 %v1162
        %1633 = vmatprep.subr.bf16.mxu0 0
        %1634 = vmatpush1.bf16.msra.mxu0 %v1163
        %1635 = vmatprep.subr.bf16.mxu0 0
        %1636 = vmatpush1.bf16.msra.mxu0 %v1164
        %1637 = vmatprep.subr.bf16.mxu0 0
        %1638 = vmatpush1.bf16.msra.mxu0 %v1165
        %1639 = vmatprep.subr.bf16.mxu0 0
        %1640 = vmatpush1.bf16.msra.mxu0 0
        %1641 = vmatprep.subr.bf16.mxu0 0
        %1642 = vmatpush1.bf16.msra.mxu0 0
        %1643 = vmatprep.subr.bf16.mxu0 0
        %1644 = vmatpush1.bf16.msra.mxu0 0
        %1645 = vmatprep.subr.bf16.mxu0 0
        %1646 = vmatpush1.bf16.msra.mxu0 0
        %1647 = vmatprep.subr.bf16.mxu0 0
        %1648 = vmatpush1.bf16.msra.mxu0 0
        %1649 = vmatprep.subr.bf16.mxu0 0
        %1650 = vmatpush1.bf16.msra.mxu0 0
        %1651 = vmatprep.subr.bf16.mxu0 0
        %1652 = vmatpush1.bf16.msra.mxu0 0
        %1653 = vmatprep.subr.bf16.mxu0 0
        %1654 = vmatpush1.bf16.msra.mxu0 0
        %1655 = vmatprep.mubr.bf16.mxu0 0
        %1656 = vmatmul.mubr.bf16.gmra.mrb[0].mxu0 %v1221
        %v1657 = vpop.f32.mrb[0].mxu0
        %v1658 = vadd.f32 %v1171, %v1657
        %v1659 = vpop.f32.mrb[0].mxu0
        %v1660 = vpop.f32.mrb[0].mxu0
        %v1661 = vadd.f32 %v1171, %v1660
        %v1662 = vpop.f32.mrb[0].mxu0
        %1663 = vmatprep.mubr.bf16.mxu0 0
        %1664 = vmatmul.mubr.bf16.gmra.mrb[0].mxu0 %v1270
        %v1665 = vpop.f32.mrb[0].mxu0
        %v1666 = vadd.f32 %v1171, %v1665
        %v1667 = vpop.f32.mrb[0].mxu0
        %v1668 = vpop.f32.mrb[0].mxu0
        %v1669 = vadd.f32 %v1171, %v1668
        %v1670 = vpop.f32.mrb[0].mxu0
        %1671 = vmatprep.mubr.bf16.mxu0 0
        %1672 = vmatmul.mubr.bf16.gmra.mrb[0].mxu0 %v1319
        %v1673 = vpop.f32.mrb[0].mxu0
        %v1674 = vadd.f32 %v1171, %v1673
        %v1675 = vpop.f32.mrb[0].mxu0
        %v1676 = vpop.f32.mrb[0].mxu0
        %v1677 = vadd.f32 %v1171, %v1676
        %v1678 = vpop.f32.mrb[0].mxu0
        %1679 = vmatprep.mubr.bf16.mxu0 0
        %1680 = vmatmul.mubr.bf16.gmra.mrb[0].mxu0 %v1368
        %v1681 = vpop.f32.mrb[0].mxu0
        %v1682 = vadd.f32 %v1171, %v1681
        %v1683 = vpop.f32.mrb[0].mxu0
        %v1684 = vpop.f32.mrb[0].mxu0
        %v1685 = vadd.f32 %v1171, %v1684
        %v1686 = vpop.f32.mrb[0].mxu0
        %1687 = vmatprep.mubr.bf16.mxu0 0
        %1688 = vmatmul.mubr.bf16.gmra.mrb[0].mxu0 %v1417
        %v1689 = vpop.f32.mrb[0].mxu0
        %v1690 = vadd.f32 %v1171, %v1689
        %v1691 = vpop.f32.mrb[0].mxu0
        %v1692 = vpop.f32.mrb[0].mxu0
        %v1693 = vadd.f32 %v1171, %v1692
        %v1694 = vpop.f32.mrb[0].mxu0
        %1695 = vmatprep.mubr.bf16.mxu0 0
        %1696 = vmatmul.mubr.bf16.gmra.mrb[0].mxu0 %v1466
        %v1697 = vpop.f32.mrb[0].mxu0
        %v1698 = vadd.f32 %v1171, %v1697
        %v1699 = vpop.f32.mrb[0].mxu0
        %v1700 = vpop.f32.mrb[0].mxu0
        %v1701 = vadd.f32 %v1171, %v1700
        %v1702 = vpop.f32.mrb[0].mxu0
        %1703 = vmatprep.mubr.bf16.mxu0 0
        %1704 = vmatmul.mubr.bf16.gmra.mrb[0].mxu0 %v1515
        %v1705 = vpop.f32.mrb[0].mxu0
        %v1706 = vadd.f32 %v1171, %v1705
        %v1707 = vpop.f32.mrb[0].mxu0
        %v1708 = vpop.f32.mrb[0].mxu0
        %v1709 = vadd.f32 %v1171, %v1708
        %v1710 = vpop.f32.mrb[0].mxu0
        %1711 = vmatprep.mubr.bf16.mxu0 0
        %1712 = vmatmul.mubr.bf16.gmra.mrb[0].mxu0 %v1564
        %v1713 = vpop.f32.mrb[0].mxu0
        %v1714 = vadd.f32 %v1171, %v1713
        %v1715 = vpop.f32.mrb[0].mxu0
        %v1716 = vpop.f32.mrb[0].mxu0
        %v1717 = vadd.f32 %v1171, %v1716
        %v1718 = vpop.f32.mrb[0].mxu0
        %1719 = vmatprep.mubr.bf16.mxu0 0
        %1720 = vmatmul.mubr.bf16.gmra.mrb[0].mxu0 %v1613
        %v1721 = vpop.f32.mrb[0].mxu0
        %v1722 = vadd.f32 %v1171, %v1721
        %v1723 = vpop.f32.mrb[0].mxu0
        %v1724 = vpop.f32.mrb[0].mxu0
        %v1725 = vadd.f32 %v1171, %v1724
        %v1726 = vpop.f32.mrb[0].mxu0
        %1727 = vdwg.mxu0
        %vm1728 = vcmp.gt.f32.partialorder %v1658, 0.0
        %vm1729 = vcmp.gt.f32.partialorder %v1661, 0.0
        %vm1730 = vcmp.gt.f32.partialorder %v1666, 0.0
        %vm1731 = vcmp.gt.f32.partialorder %v1669, 0.0
        %vm1732 = vcmp.gt.f32.partialorder %v1674, 0.0
        %vm1733 = vcmp.gt.f32.partialorder %v1677, 0.0
        %vm1734 = vcmp.gt.f32.partialorder %v1682, 0.0
        %vm1735 = vcmp.gt.f32.partialorder %v1685, 0.0
        %vm1736 = vcmp.gt.f32.partialorder %v1690, 0.0
        %vm1737 = vcmp.gt.f32.partialorder %v1693, 0.0
        %vm1738 = vcmp.gt.f32.partialorder %v1698, 0.0
        %vm1739 = vcmp.gt.f32.partialorder %v1701, 0.0
        %vm1740 = vcmp.gt.f32.partialorder %v1706, 0.0
        %vm1741 = vcmp.gt.f32.partialorder %v1709, 0.0
        %vm1742 = vcmp.gt.f32.partialorder %v1714, 0.0
        %vm1743 = vcmp.gt.f32.partialorder %v1717, 0.0
        %vm1744 = vcmp.gt.f32.partialorder %v1722, 0.0
        %vm1745 = vcmp.gt.f32.partialorder %v1725, 0.0
        %v1746 = vmul.f32 %v1658, 0.1
        %v1747 = vmul.f32 %v1661, 0.1
        %v1748 = vmul.f32 %v1666, 0.1
        %v1749 = vmul.f32 %v1669, 0.1
        %v1750 = vmul.f32 %v1674, 0.1
        %v1751 = vmul.f32 %v1677, 0.1
        %v1752 = vmul.f32 %v1682, 0.1
        %v1753 = vmul.f32 %v1685, 0.1
        %v1754 = vmul.f32 %v1690, 0.1
        %v1755 = vmul.f32 %v1693, 0.1
        %v1756 = vmul.f32 %v1698, 0.1
        %v1757 = vmul.f32 %v1701, 0.1
        %v1758 = vmul.f32 %v1706, 0.1
        %v1759 = vmul.f32 %v1709, 0.1
        %v1760 = vmul.f32 %v1714, 0.1
        %v1761 = vmul.f32 %v1717, 0.1
        %v1762 = vmul.f32 %v1722, 0.1
        %v1763 = vmul.f32 %v1725, 0.1
        %v1764 = vsel %vm1728, %v1658, %v1746
        %v1765 = vsel %vm1729, %v1661, %v1747
        %v1766 = vsel %vm1730, %v1666, %v1748
        %v1767 = vsel %vm1731, %v1669, %v1749
        %v1768 = vsel %vm1732, %v1674, %v1750
        %v1769 = vsel %vm1733, %v1677, %v1751
        %v1770 = vsel %vm1734, %v1682, %v1752
        %v1771 = vsel %vm1735, %v1685, %v1753
        %v1772 = vsel %vm1736, %v1690, %v1754
        %v1773 = vsel %vm1737, %v1693, %v1755
        %v1774 = vsel %vm1738, %v1698, %v1756
        %v1775 = vsel %vm1739, %v1701, %v1757
        %v1776 = vsel %vm1740, %v1706, %v1758
        %v1777 = vsel %vm1741, %v1709, %v1759
        %v1778 = vsel %vm1742, %v1714, %v1760
        %v1779 = vsel %vm1743, %v1717, %v1761
        %v1780 = vsel %vm1744, %v1722, %v1762
        %v1781 = vsel %vm1745, %v1725, %v1763
        %v1800 = vcombine.high %v1764, %v1764
        %v1802 = vunpack.c.l.s4 1983009808
        %v1803 = vunpack.c.0.s8 %v1802
        %v1804 = vlaneseq
        %v1805 = vshrl.u32 %v1804, 7
        %v1806 = vsub.s32 %v1803, %v1805
        %v1807 = vrot.slane %v1764, %v1806
        %v1809 = vunpack.c.l.s4 1983009808
        %v1810 = vunpack.c.0.s8 %v1809
        %v1811 = vlaneseq
        %v1812 = vshrl.u32 %v1811, 7
        %v1813 = vsub.s32 %v1810, %v1812
        %v1814 = vrot.slane %v1800, %v1813
        %v1815 = vcombine.high %v1807, %v1807
        %v1816 = vcombine.high %v1814, %v1814
        %v1817 = vcombine.high %v1765, %v1765
        %v1819 = vunpack.c.l.s4 1983009808
        %v1820 = vunpack.c.0.s8 %v1819
        %v1821 = vlaneseq
        %v1822 = vshrl.u32 %v1821, 7
        %v1823 = vsub.s32 %v1820, %v1822
        %v1824 = vrot.slane %v1765, %v1823
        %v1826 = vunpack.c.l.s4 1983009808
        %v1827 = vunpack.c.0.s8 %v1826
        %v1828 = vlaneseq
        %v1829 = vshrl.u32 %v1828, 7
        %v1830 = vsub.s32 %v1827, %v1829
        %v1831 = vrot.slane %v1817, %v1830
        %v1832 = vcombine.high %v1824, %v1824
        %v1833 = vcombine.high %v1831, %v1831
        %v1834 = vcombine.high %v1766, %v1766
        %v1836 = vunpack.c.l.s4 1983009808
        %v1837 = vunpack.c.0.s8 %v1836
        %v1838 = vlaneseq
        %v1839 = vshrl.u32 %v1838, 7
        %v1840 = vsub.s32 %v1837, %v1839
        %v1841 = vrot.slane %v1766, %v1840
        %v1843 = vunpack.c.l.s4 1983009808
        %v1844 = vunpack.c.0.s8 %v1843
        %v1845 = vlaneseq
        %v1846 = vshrl.u32 %v1845, 7
        %v1847 = vsub.s32 %v1844, %v1846
        %v1848 = vrot.slane %v1834, %v1847
        %v1849 = vcombine.high %v1841, %v1841
        %v1850 = vcombine.high %v1848, %v1848
        %v1851 = vcombine.high %v1767, %v1767
        %v1853 = vunpack.c.l.s4 1983009808
        %v1854 = vunpack.c.0.s8 %v1853
        %v1855 = vlaneseq
        %v1856 = vshrl.u32 %v1855, 7
        %v1857 = vsub.s32 %v1854, %v1856
        %v1858 = vrot.slane %v1767, %v1857
        %v1860 = vunpack.c.l.s4 1983009808
        %v1861 = vunpack.c.0.s8 %v1860
        %v1862 = vlaneseq
        %v1863 = vshrl.u32 %v1862, 7
        %v1864 = vsub.s32 %v1861, %v1863
        %v1865 = vrot.slane %v1851, %v1864
        %v1866 = vcombine.high %v1858, %v1858
        %v1867 = vcombine.high %v1865, %v1865
        %v1868 = vcombine.high %v1768, %v1768
        %v1870 = vunpack.c.l.s4 1983009808
        %v1871 = vunpack.c.0.s8 %v1870
        %v1872 = vlaneseq
        %v1873 = vshrl.u32 %v1872, 7
        %v1874 = vsub.s32 %v1871, %v1873
        %v1875 = vrot.slane %v1768, %v1874
        %v1877 = vunpack.c.l.s4 1983009808
        %v1878 = vunpack.c.0.s8 %v1877
        %v1879 = vlaneseq
        %v1880 = vshrl.u32 %v1879, 7
        %v1881 = vsub.s32 %v1878, %v1880
        %v1882 = vrot.slane %v1868, %v1881
        %v1883 = vcombine.high %v1875, %v1875
        %v1884 = vcombine.high %v1882, %v1882
        %v1885 = vcombine.high %v1769, %v1769
        %v1887 = vunpack.c.l.s4 1983009808
        %v1888 = vunpack.c.0.s8 %v1887
        %v1889 = vlaneseq
        %v1890 = vshrl.u32 %v1889, 7
        %v1891 = vsub.s32 %v1888, %v1890
        %v1892 = vrot.slane %v1769, %v1891
        %v1894 = vunpack.c.l.s4 1983009808
        %v1895 = vunpack.c.0.s8 %v1894
        %v1896 = vlaneseq
        %v1897 = vshrl.u32 %v1896, 7
        %v1898 = vsub.s32 %v1895, %v1897
        %v1899 = vrot.slane %v1885, %v1898
        %v1900 = vcombine.high %v1892, %v1892
        %v1901 = vcombine.high %v1899, %v1899
        %v1902 = vcombine.high %v1770, %v1770
        %v1904 = vunpack.c.l.s4 1983009808
        %v1905 = vunpack.c.0.s8 %v1904
        %v1906 = vlaneseq
        %v1907 = vshrl.u32 %v1906, 7
        %v1908 = vsub.s32 %v1905, %v1907
        %v1909 = vrot.slane %v1770, %v1908
        %v1911 = vunpack.c.l.s4 1983009808
        %v1912 = vunpack.c.0.s8 %v1911
        %v1913 = vlaneseq
        %v1914 = vshrl.u32 %v1913, 7
        %v1915 = vsub.s32 %v1912, %v1914
        %v1916 = vrot.slane %v1902, %v1915
        %v1917 = vcombine.high %v1909, %v1909
        %v1918 = vcombine.high %v1916, %v1916
        %v1919 = vcombine.high %v1771, %v1771
        %v1921 = vunpack.c.l.s4 1983009808
        %v1922 = vunpack.c.0.s8 %v1921
        %v1923 = vlaneseq
        %v1924 = vshrl.u32 %v1923, 7
        %v1925 = vsub.s32 %v1922, %v1924
        %v1926 = vrot.slane %v1771, %v1925
        %v1928 = vunpack.c.l.s4 1983009808
        %v1929 = vunpack.c.0.s8 %v1928
        %v1930 = vlaneseq
        %v1931 = vshrl.u32 %v1930, 7
        %v1932 = vsub.s32 %v1929, %v1931
        %v1933 = vrot.slane %v1919, %v1932
        %v1934 = vcombine.high %v1926, %v1926
        %v1935 = vcombine.high %v1933, %v1933
        %v1936 = vcombine.high %v1772, %v1772
        %v1938 = vunpack.c.l.s4 1983009808
        %v1939 = vunpack.c.0.s8 %v1938
        %v1940 = vlaneseq
        %v1941 = vshrl.u32 %v1940, 7
        %v1942 = vsub.s32 %v1939, %v1941
        %v1943 = vrot.slane %v1772, %v1942
        %v1945 = vunpack.c.l.s4 1983009808
        %v1946 = vunpack.c.0.s8 %v1945
        %v1947 = vlaneseq
        %v1948 = vshrl.u32 %v1947, 7
        %v1949 = vsub.s32 %v1946, %v1948
        %v1950 = vrot.slane %v1936, %v1949
        %v1951 = vcombine.high %v1943, %v1943
        %v1952 = vcombine.high %v1950, %v1950
        %v1953 = vcombine.high %v1773, %v1773
        %v1955 = vunpack.c.l.s4 1983009808
        %v1956 = vunpack.c.0.s8 %v1955
        %v1957 = vlaneseq
        %v1958 = vshrl.u32 %v1957, 7
        %v1959 = vsub.s32 %v1956, %v1958
        %v1960 = vrot.slane %v1773, %v1959
        %v1962 = vunpack.c.l.s4 1983009808
        %v1963 = vunpack.c.0.s8 %v1962
        %v1964 = vlaneseq
        %v1965 = vshrl.u32 %v1964, 7
        %v1966 = vsub.s32 %v1963, %v1965
        %v1967 = vrot.slane %v1953, %v1966
        %v1968 = vcombine.high %v1960, %v1960
        %v1969 = vcombine.high %v1967, %v1967
        %v1970 = vcombine.high %v1774, %v1774
        %v1972 = vunpack.c.l.s4 1983009808
        %v1973 = vunpack.c.0.s8 %v1972
        %v1974 = vlaneseq
        %v1975 = vshrl.u32 %v1974, 7
        %v1976 = vsub.s32 %v1973, %v1975
        %v1977 = vrot.slane %v1774, %v1976
        %v1979 = vunpack.c.l.s4 1983009808
        %v1980 = vunpack.c.0.s8 %v1979
        %v1981 = vlaneseq
        %v1982 = vshrl.u32 %v1981, 7
        %v1983 = vsub.s32 %v1980, %v1982
        %v1984 = vrot.slane %v1970, %v1983
        %v1985 = vcombine.high %v1977, %v1977
        %v1986 = vcombine.high %v1984, %v1984
        %v1987 = vcombine.high %v1775, %v1775
        %v1989 = vunpack.c.l.s4 1983009808
        %v1990 = vunpack.c.0.s8 %v1989
        %v1991 = vlaneseq
        %v1992 = vshrl.u32 %v1991, 7
        %v1993 = vsub.s32 %v1990, %v1992
        %v1994 = vrot.slane %v1775, %v1993
        %v1996 = vunpack.c.l.s4 1983009808
        %v1997 = vunpack.c.0.s8 %v1996
        %v1998 = vlaneseq
        %v1999 = vshrl.u32 %v1998, 7
        %v2000 = vsub.s32 %v1997, %v1999
        %v2001 = vrot.slane %v1987, %v2000
        %v2002 = vcombine.high %v1994, %v1994
        %v2003 = vcombine.high %v2001, %v2001
        %v2004 = vcombine.high %v1776, %v1776
        %v2006 = vunpack.c.l.s4 1983009808
        %v2007 = vunpack.c.0.s8 %v2006
        %v2008 = vlaneseq
        %v2009 = vshrl.u32 %v2008, 7
        %v2010 = vsub.s32 %v2007, %v2009
        %v2011 = vrot.slane %v1776, %v2010
        %v2013 = vunpack.c.l.s4 1983009808
        %v2014 = vunpack.c.0.s8 %v2013
        %v2015 = vlaneseq
        %v2016 = vshrl.u32 %v2015, 7
        %v2017 = vsub.s32 %v2014, %v2016
        %v2018 = vrot.slane %v2004, %v2017
        %v2019 = vcombine.high %v2011, %v2011
        %v2020 = vcombine.high %v2018, %v2018
        %v2021 = vcombine.high %v1777, %v1777
        %v2023 = vunpack.c.l.s4 1983009808
        %v2024 = vunpack.c.0.s8 %v2023
        %v2025 = vlaneseq
        %v2026 = vshrl.u32 %v2025, 7
        %v2027 = vsub.s32 %v2024, %v2026
        %v2028 = vrot.slane %v1777, %v2027
        %v2030 = vunpack.c.l.s4 1983009808
        %v2031 = vunpack.c.0.s8 %v2030
        %v2032 = vlaneseq
        %v2033 = vshrl.u32 %v2032, 7
        %v2034 = vsub.s32 %v2031, %v2033
        %v2035 = vrot.slane %v2021, %v2034
        %v2036 = vcombine.high %v2028, %v2028
        %v2037 = vcombine.high %v2035, %v2035
        %v2038 = vcombine.high %v1778, %v1778
        %v2040 = vunpack.c.l.s4 1983009808
        %v2041 = vunpack.c.0.s8 %v2040
        %v2042 = vlaneseq
        %v2043 = vshrl.u32 %v2042, 7
        %v2044 = vsub.s32 %v2041, %v2043
        %v2045 = vrot.slane %v1778, %v2044
        %v2047 = vunpack.c.l.s4 1983009808
        %v2048 = vunpack.c.0.s8 %v2047
        %v2049 = vlaneseq
        %v2050 = vshrl.u32 %v2049, 7
        %v2051 = vsub.s32 %v2048, %v2050
        %v2052 = vrot.slane %v2038, %v2051
        %v2053 = vcombine.high %v2045, %v2045
        %v2054 = vcombine.high %v2052, %v2052
        %v2055 = vcombine.high %v1779, %v1779
        %v2057 = vunpack.c.l.s4 1983009808
        %v2058 = vunpack.c.0.s8 %v2057
        %v2059 = vlaneseq
        %v2060 = vshrl.u32 %v2059, 7
        %v2061 = vsub.s32 %v2058, %v2060
        %v2062 = vrot.slane %v1779, %v2061
        %v2064 = vunpack.c.l.s4 1983009808
        %v2065 = vunpack.c.0.s8 %v2064
        %v2066 = vlaneseq
        %v2067 = vshrl.u32 %v2066, 7
        %v2068 = vsub.s32 %v2065, %v2067
        %v2069 = vrot.slane %v2055, %v2068
        %v2070 = vcombine.high %v2062, %v2062
        %v2071 = vcombine.high %v2069, %v2069
        %v2072 = vcombine.high %v1780, %v1780
        %v2074 = vunpack.c.l.s4 1983009808
        %v2075 = vunpack.c.0.s8 %v2074
        %v2076 = vlaneseq
        %v2077 = vshrl.u32 %v2076, 7
        %v2078 = vsub.s32 %v2075, %v2077
        %v2079 = vrot.slane %v1780, %v2078
        %v2081 = vunpack.c.l.s4 1983009808
        %v2082 = vunpack.c.0.s8 %v2081
        %v2083 = vlaneseq
        %v2084 = vshrl.u32 %v2083, 7
        %v2085 = vsub.s32 %v2082, %v2084
        %v2086 = vrot.slane %v2072, %v2085
        %v2087 = vcombine.high %v2079, %v2079
        %v2088 = vcombine.high %v2086, %v2086
        %v2089 = vcombine.high %v1781, %v1781
        %v2091 = vunpack.c.l.s4 1983009808
        %v2092 = vunpack.c.0.s8 %v2091
        %v2093 = vlaneseq
        %v2094 = vshrl.u32 %v2093, 7
        %v2095 = vsub.s32 %v2092, %v2094
        %v2096 = vrot.slane %v1781, %v2095
        %v2098 = vunpack.c.l.s4 1983009808
        %v2099 = vunpack.c.0.s8 %v2098
        %v2100 = vlaneseq
        %v2101 = vshrl.u32 %v2100, 7
        %v2102 = vsub.s32 %v2099, %v2101
        %v2103 = vrot.slane %v2089, %v2102
        %v2104 = vcombine.high %v2096, %v2096
        %v2105 = vcombine.high %v2103, %v2103
        %v2106 = vcombine.low %v1807, %v1815
        %v2107 = vcombine.low %v1814, %v1816
        %v2109 = vunpack.c.l.s4 1983009808
        %v2110 = vunpack.c.0.s8 %v2109
        %v2111 = vlaneseq
        %v2112 = vshrl.u32 %v2111, 7
        %v2113 = vsub.s32 %v2110, %v2112
        %v2114 = vrot.slane %v2106, %v2113
        %v2116 = vunpack.c.l.s4 1983009808
        %v2117 = vunpack.c.0.s8 %v2116
        %v2118 = vlaneseq
        %v2119 = vshrl.u32 %v2118, 7
        %v2120 = vsub.s32 %v2117, %v2119
        %v2121 = vrot.slane %v2107, %v2120
        %v2122 = vcombine.low %v2114, %v2121
        %v2123 = vcombine.low %v1824, %v1832
        %v2124 = vcombine.low %v1831, %v1833
        %v2126 = vunpack.c.l.s4 1983009808
        %v2127 = vunpack.c.0.s8 %v2126
        %v2128 = vlaneseq
        %v2129 = vshrl.u32 %v2128, 7
        %v2130 = vsub.s32 %v2127, %v2129
        %v2131 = vrot.slane %v2123, %v2130
        %v2133 = vunpack.c.l.s4 1983009808
        %v2134 = vunpack.c.0.s8 %v2133
        %v2135 = vlaneseq
        %v2136 = vshrl.u32 %v2135, 7
        %v2137 = vsub.s32 %v2134, %v2136
        %v2138 = vrot.slane %v2124, %v2137
        %v2139 = vcombine.low %v2131, %v2138
        %v2141 = vunpack.c.l.s4 1983009808
        %v2142 = vunpack.c.0.s8 %v2141
        %v2143 = vlaneseq
        %v2144 = vshrl.u32 %v2143, 7
        %v2145 = vsub.s32 %v2142, %v2144
        %v2146 = vrot.slane %v1841, %v2145
        %v2147 = vcombine.low %v1849, %v1848
        %v2148 = vcombine.low %v1850, %v1858
        %v2150 = vunpack.c.l.s4 1983009808
        %v2151 = vunpack.c.0.s8 %v2150
        %v2152 = vlaneseq
        %v2153 = vshrl.u32 %v2152, 7
        %v2154 = vsub.s32 %v2151, %v2153
        %v2155 = vrot.slane %v2147, %v2154
        %v2157 = vunpack.c.l.s4 1983009808
        %v2158 = vunpack.c.0.s8 %v2157
        %v2159 = vlaneseq
        %v2160 = vshrl.u32 %v2159, 7
        %v2161 = vsub.s32 %v2158, %v2160
        %v2162 = vrot.slane %v2148, %v2161
        %v2163 = vcombine.low %v2155, %v2162
        %v2164 = vcombine.low %v1866, %v1865
        %v2165 = vcombine.low %v1867, %v1875
        %v2167 = vunpack.c.l.s4 1983009808
        %v2168 = vunpack.c.0.s8 %v2167
        %v2169 = vlaneseq
        %v2170 = vshrl.u32 %v2169, 7
        %v2171 = vsub.s32 %v2168, %v2170
        %v2172 = vrot.slane %v2164, %v2171
        %v2174 = vunpack.c.l.s4 1983009808
        %v2175 = vunpack.c.0.s8 %v2174
        %v2176 = vlaneseq
        %v2177 = vshrl.u32 %v2176, 7
        %v2178 = vsub.s32 %v2175, %v2177
        %v2179 = vrot.slane %v2165, %v2178
        %v2180 = vcombine.low %v2172, %v2179
        %v2182 = vunpack.c.l.s4 1983009808
        %v2183 = vunpack.c.0.s8 %v2182
        %v2184 = vlaneseq
        %v2185 = vshrl.u32 %v2184, 7
        %v2186 = vsub.s32 %v2183, %v2185
        %v2187 = vrot.slane %v1883, %v2186
        %v2188 = vcombine.low %v1882, %v1884
        %v2189 = vcombine.low %v1892, %v1900
        %v2191 = vunpack.c.l.s4 1983009808
        %v2192 = vunpack.c.0.s8 %v2191
        %v2193 = vlaneseq
        %v2194 = vshrl.u32 %v2193, 7
        %v2195 = vsub.s32 %v2192, %v2194
        %v2196 = vrot.slane %v2188, %v2195
        %v2198 = vunpack.c.l.s4 1983009808
        %v2199 = vunpack.c.0.s8 %v2198
        %v2200 = vlaneseq
        %v2201 = vshrl.u32 %v2200, 7
        %v2202 = vsub.s32 %v2199, %v2201
        %v2203 = vrot.slane %v2189, %v2202
        %v2204 = vcombine.low %v2196, %v2203
        %v2205 = vcombine.low %v1899, %v1901
        %v2206 = vcombine.low %v1909, %v1917
        %v2208 = vunpack.c.l.s4 1983009808
        %v2209 = vunpack.c.0.s8 %v2208
        %v2210 = vlaneseq
        %v2211 = vshrl.u32 %v2210, 7
        %v2212 = vsub.s32 %v2209, %v2211
        %v2213 = vrot.slane %v2205, %v2212
        %v2215 = vunpack.c.l.s4 1983009808
        %v2216 = vunpack.c.0.s8 %v2215
        %v2217 = vlaneseq
        %v2218 = vshrl.u32 %v2217, 7
        %v2219 = vsub.s32 %v2216, %v2218
        %v2220 = vrot.slane %v2206, %v2219
        %v2221 = vcombine.low %v2213, %v2220
        %v2223 = vunpack.c.l.s4 1983009808
        %v2224 = vunpack.c.0.s8 %v2223
        %v2225 = vlaneseq
        %v2226 = vshrl.u32 %v2225, 7
        %v2227 = vsub.s32 %v2224, %v2226
        %v2228 = vrot.slane %v1916, %v2227
        %v2229 = vcombine.low %v1918, %v1926
        %v2230 = vcombine.low %v1934, %v1933
        %v2232 = vunpack.c.l.s4 1983009808
        %v2233 = vunpack.c.0.s8 %v2232
        %v2234 = vlaneseq
        %v2235 = vshrl.u32 %v2234, 7
        %v2236 = vsub.s32 %v2233, %v2235
        %v2237 = vrot.slane %v2229, %v2236
        %v2239 = vunpack.c.l.s4 1983009808
        %v2240 = vunpack.c.0.s8 %v2239
        %v2241 = vlaneseq
        %v2242 = vshrl.u32 %v2241, 7
        %v2243 = vsub.s32 %v2240, %v2242
        %v2244 = vrot.slane %v2230, %v2243
        %v2245 = vcombine.low %v2237, %v2244
        %v2246 = vcombine.low %v1935, %v1943
        %v2247 = vcombine.low %v1951, %v1950
        %v2249 = vunpack.c.l.s4 1983009808
        %v2250 = vunpack.c.0.s8 %v2249
        %v2251 = vlaneseq
        %v2252 = vshrl.u32 %v2251, 7
        %v2253 = vsub.s32 %v2250, %v2252
        %v2254 = vrot.slane %v2246, %v2253
        %v2256 = vunpack.c.l.s4 1983009808
        %v2257 = vunpack.c.0.s8 %v2256
        %v2258 = vlaneseq
        %v2259 = vshrl.u32 %v2258, 7
        %v2260 = vsub.s32 %v2257, %v2259
        %v2261 = vrot.slane %v2247, %v2260
        %v2262 = vcombine.low %v2254, %v2261
        %v2264 = vunpack.c.l.s4 1983009808
        %v2265 = vunpack.c.0.s8 %v2264
        %v2266 = vlaneseq
        %v2267 = vshrl.u32 %v2266, 7
        %v2268 = vsub.s32 %v2265, %v2267
        %v2269 = vrot.slane %v1952, %v2268
        %v2270 = vcombine.low %v1960, %v1968
        %v2271 = vcombine.low %v1967, %v1969
        %v2273 = vunpack.c.l.s4 1983009808
        %v2274 = vunpack.c.0.s8 %v2273
        %v2275 = vlaneseq
        %v2276 = vshrl.u32 %v2275, 7
        %v2277 = vsub.s32 %v2274, %v2276
        %v2278 = vrot.slane %v2270, %v2277
        %v2280 = vunpack.c.l.s4 1983009808
        %v2281 = vunpack.c.0.s8 %v2280
        %v2282 = vlaneseq
        %v2283 = vshrl.u32 %v2282, 7
        %v2284 = vsub.s32 %v2281, %v2283
        %v2285 = vrot.slane %v2271, %v2284
        %v2286 = vcombine.low %v2278, %v2285
        %v2287 = vcombine.low %v1977, %v1985
        %v2288 = vcombine.low %v1984, %v1986
        %v2290 = vunpack.c.l.s4 1983009808
        %v2291 = vunpack.c.0.s8 %v2290
        %v2292 = vlaneseq
        %v2293 = vshrl.u32 %v2292, 7
        %v2294 = vsub.s32 %v2291, %v2293
        %v2295 = vrot.slane %v2287, %v2294
        %v2297 = vunpack.c.l.s4 1983009808
        %v2298 = vunpack.c.0.s8 %v2297
        %v2299 = vlaneseq
        %v2300 = vshrl.u32 %v2299, 7
        %v2301 = vsub.s32 %v2298, %v2300
        %v2302 = vrot.slane %v2288, %v2301
        %v2303 = vcombine.low %v2295, %v2302
        %v2305 = vunpack.c.l.s4 1983009808
        %v2306 = vunpack.c.0.s8 %v2305
        %v2307 = vlaneseq
        %v2308 = vshrl.u32 %v2307, 7
        %v2309 = vsub.s32 %v2306, %v2308
        %v2310 = vrot.slane %v1994, %v2309
        %v2311 = vcombine.low %v2002, %v2001
        %v2312 = vcombine.low %v2003, %v2011
        %v2314 = vunpack.c.l.s4 1983009808
        %v2315 = vunpack.c.0.s8 %v2314
        %v2316 = vlaneseq
        %v2317 = vshrl.u32 %v2316, 7
        %v2318 = vsub.s32 %v2315, %v2317
        %v2319 = vrot.slane %v2311, %v2318
        %v2321 = vunpack.c.l.s4 1983009808
        %v2322 = vunpack.c.0.s8 %v2321
        %v2323 = vlaneseq
        %v2324 = vshrl.u32 %v2323, 7
        %v2325 = vsub.s32 %v2322, %v2324
        %v2326 = vrot.slane %v2312, %v2325
        %v2327 = vcombine.low %v2319, %v2326
        %v2328 = vcombine.low %v2019, %v2018
        %v2329 = vcombine.low %v2020, %v2028
        %v2331 = vunpack.c.l.s4 1983009808
        %v2332 = vunpack.c.0.s8 %v2331
        %v2333 = vlaneseq
        %v2334 = vshrl.u32 %v2333, 7
        %v2335 = vsub.s32 %v2332, %v2334
        %v2336 = vrot.slane %v2328, %v2335
        %v2338 = vunpack.c.l.s4 1983009808
        %v2339 = vunpack.c.0.s8 %v2338
        %v2340 = vlaneseq
        %v2341 = vshrl.u32 %v2340, 7
        %v2342 = vsub.s32 %v2339, %v2341
        %v2343 = vrot.slane %v2329, %v2342
        %v2344 = vcombine.low %v2336, %v2343
        %v2346 = vunpack.c.l.s4 1983009808
        %v2347 = vunpack.c.0.s8 %v2346
        %v2348 = vlaneseq
        %v2349 = vshrl.u32 %v2348, 7
        %v2350 = vsub.s32 %v2347, %v2349
        %v2351 = vrot.slane %v2036, %v2350
        %v2352 = vcombine.low %v2035, %v2037
        %v2353 = vcombine.low %v2045, %v2053
        %v2355 = vunpack.c.l.s4 1983009808
        %v2356 = vunpack.c.0.s8 %v2355
        %v2357 = vlaneseq
        %v2358 = vshrl.u32 %v2357, 7
        %v2359 = vsub.s32 %v2356, %v2358
        %v2360 = vrot.slane %v2352, %v2359
        %v2362 = vunpack.c.l.s4 1983009808
        %v2363 = vunpack.c.0.s8 %v2362
        %v2364 = vlaneseq
        %v2365 = vshrl.u32 %v2364, 7
        %v2366 = vsub.s32 %v2363, %v2365
        %v2367 = vrot.slane %v2353, %v2366
        %v2368 = vcombine.low %v2360, %v2367
        %v2369 = vcombine.low %v2052, %v2054
        %v2370 = vcombine.low %v2062, %v2070
        %v2372 = vunpack.c.l.s4 1983009808
        %v2373 = vunpack.c.0.s8 %v2372
        %v2374 = vlaneseq
        %v2375 = vshrl.u32 %v2374, 7
        %v2376 = vsub.s32 %v2373, %v2375
        %v2377 = vrot.slane %v2369, %v2376
        %v2379 = vunpack.c.l.s4 1983009808
        %v2380 = vunpack.c.0.s8 %v2379
        %v2381 = vlaneseq
        %v2382 = vshrl.u32 %v2381, 7
        %v2383 = vsub.s32 %v2380, %v2382
        %v2384 = vrot.slane %v2370, %v2383
        %v2385 = vcombine.low %v2377, %v2384
        %v2387 = vunpack.c.l.s4 1983009808
        %v2388 = vunpack.c.0.s8 %v2387
        %v2389 = vlaneseq
        %v2390 = vshrl.u32 %v2389, 7
        %v2391 = vsub.s32 %v2388, %v2390
        %v2392 = vrot.slane %v2069, %v2391
        %v2393 = vcombine.low %v2071, %v2079
        %v2394 = vcombine.low %v2087, %v2086
        %v2396 = vunpack.c.l.s4 1983009808
        %v2397 = vunpack.c.0.s8 %v2396
        %v2398 = vlaneseq
        %v2399 = vshrl.u32 %v2398, 7
        %v2400 = vsub.s32 %v2397, %v2399
        %v2401 = vrot.slane %v2393, %v2400
        %v2403 = vunpack.c.l.s4 1983009808
        %v2404 = vunpack.c.0.s8 %v2403
        %v2405 = vlaneseq
        %v2406 = vshrl.u32 %v2405, 7
        %v2407 = vsub.s32 %v2404, %v2406
        %v2408 = vrot.slane %v2394, %v2407
        %v2409 = vcombine.low %v2401, %v2408
        %v2410 = vcombine.low %v2088, %v2096
        %v2411 = vcombine.low %v2104, %v2103
        %v2413 = vunpack.c.l.s4 1983009808
        %v2414 = vunpack.c.0.s8 %v2413
        %v2415 = vlaneseq
        %v2416 = vshrl.u32 %v2415, 7
        %v2417 = vsub.s32 %v2414, %v2416
        %v2418 = vrot.slane %v2410, %v2417
        %v2420 = vunpack.c.l.s4 1983009808
        %v2421 = vunpack.c.0.s8 %v2420
        %v2422 = vlaneseq
        %v2423 = vshrl.u32 %v2422, 7
        %v2424 = vsub.s32 %v2421, %v2423
        %v2425 = vrot.slane %v2411, %v2424
        %v2426 = vcombine.low %v2418, %v2425
        %v2428 = vunpack.c.l.s4 1983009808
        %v2429 = vunpack.c.0.s8 %v2428
        %v2430 = vlaneseq
        %v2431 = vshrl.u32 %v2430, 7
        %v2432 = vsub.s32 %v2429, %v2431
        %v2433 = vrot.slane %v2105, %v2432
        %v2458 = vpack.c.bf16 %v2139, %v2122
        %v2459 = vpack.c.bf16 %v2146, %v2146
        %v2460 = vpack.c.bf16 %v2180, %v2163
        %v2461 = vpack.c.bf16 %v2187, %v2187
        %v2462 = vpack.c.bf16 %v2221, %v2204
        %v2463 = vpack.c.bf16 %v2228, %v2228
        %v2464 = vpack.c.bf16 %v2262, %v2245
        %v2465 = vpack.c.bf16 %v2269, %v2269
        %v2466 = vpack.c.bf16 %v2303, %v2286
        %v2467 = vpack.c.bf16 %v2310, %v2310
        %v2468 = vpack.c.bf16 %v2344, %v2327
        %v2469 = vpack.c.bf16 %v2351, %v2351
        %v2470 = vpack.c.bf16 %v2385, %v2368
        %v2471 = vpack.c.bf16 %v2392, %v2392
        %v2472 = vpack.c.bf16 %v2426, %v2409
        %v2473 = vpack.c.bf16 %v2433, %v2433
        %v2490 = vunpack.c.l.b16 %v2458
        %v2491 = vunpack.c.h.b16 %v2458
        %v2492 = vunpack.c.l.b16 %v2459
        %v2493 = vunpack.c.l.b16 %v2460
        %v2494 = vunpack.c.h.b16 %v2460
        %v2495 = vunpack.c.l.b16 %v2461
        %v2496 = vunpack.c.l.b16 %v2462
        %v2497 = vunpack.c.h.b16 %v2462
        %v2498 = vunpack.c.l.b16 %v2463
        %v2499 = vunpack.c.l.b16 %v2464
        %v2500 = vunpack.c.h.b16 %v2464
        %v2501 = vunpack.c.l.b16 %v2465
        %v2502 = vunpack.c.l.b16 %v2466
        %v2503 = vunpack.c.h.b16 %v2466
        %v2504 = vunpack.c.l.b16 %v2467
        %v2505 = vunpack.c.l.b16 %v2468
        %v2506 = vunpack.c.h.b16 %v2468
        %v2507 = vunpack.c.l.b16 %v2469
        %v2508 = vunpack.c.l.b16 %v2470
        %v2509 = vunpack.c.h.b16 %v2470
        %v2510 = vunpack.c.l.b16 %v2471
        %v2511 = vunpack.c.l.b16 %v2472
        %v2512 = vunpack.c.h.b16 %v2472
        %v2513 = vunpack.c.l.b16 %v2473
        %v2514 = vpack.c.b16 %v2490, %v2490
        %v2515 = vpack.c.b16 %v2491, %v2491
        %v2516 = vpack.c.b16 %v2492, %v2492
        %v2517 = vpack.c.b16 %v2493, %v2493
        %v2518 = vpack.c.b16 %v2494, %v2494
        %v2519 = vpack.c.b16 %v2495, %v2495
        %v2520 = vpack.c.b16 %v2496, %v2496
        %v2521 = vpack.c.b16 %v2497, %v2497
        %v2522 = vpack.c.b16 %v2498, %v2498
        %v2523 = vpack.c.b16 %v2499, %v2499
        %v2524 = vpack.c.b16 %v2500, %v2500
        %v2525 = vpack.c.b16 %v2501, %v2501
        %v2526 = vpack.c.b16 %v2502, %v2502
        %v2527 = vpack.c.b16 %v2503, %v2503
        %v2528 = vpack.c.b16 %v2504, %v2504
        %v2529 = vpack.c.b16 %v2505, %v2505
        %v2530 = vpack.c.b16 %v2506, %v2506
        %v2531 = vpack.c.b16 %v2507, %v2507
        %v2532 = vpack.c.b16 %v2508, %v2508
        %v2533 = vpack.c.b16 %v2509, %v2509
        %v2534 = vpack.c.b16 %v2510, %v2510
        %v2535 = vpack.c.b16 %v2511, %v2511
        %v2536 = vpack.c.b16 %v2512, %v2512
        %v2537 = vpack.c.b16 %v2513, %v2513
        %2562 = vst [vmem:[#allocation2] sm:$0xf] %v2514
        %2563 = vst [vmem:[#allocation2 + $0x4] sm:$0xf] %v2515
        %2564 = vst [vmem:[#allocation2 + $0x8] sm:$0x1] %v2516
        %2565 = vst [vmem:[#allocation2 + $0xc] sm:$0xf] %v2517
        %2566 = vst [vmem:[#allocation2 + $0x10] sm:$0xf] %v2518
        %2567 = vst [vmem:[#allocation2 + $0x14] sm:$0x1] %v2519
        %2568 = vst [vmem:[#allocation2 + $0x18] sm:$0xf] %v2520
        %2569 = vst [vmem:[#allocation2 + $0x1c] sm:$0xf] %v2521
        %2570 = vst [vmem:[#allocation2 + $0x20] sm:$0x1] %v2522
        %2571 = vst [vmem:[#allocation2 + $0x24] sm:$0xf] %v2523
        %2572 = vst [vmem:[#allocation2 + $0x28] sm:$0xf] %v2524
        %2573 = vst [vmem:[#allocation2 + $0x2c] sm:$0x1] %v2525
        %2574 = vst [vmem:[#allocation2 + $0x30] sm:$0xf] %v2526
        %2575 = vst [vmem:[#allocation2 + $0x34] sm:$0xf] %v2527
        %2576 = vst [vmem:[#allocation2 + $0x38] sm:$0x1] %v2528
        %2577 = vst [vmem:[#allocation2 + $0x3c] sm:$0xf] %v2529
        %2578 = vst [vmem:[#allocation2 + $0x40] sm:$0xf] %v2530
        %2579 = vst [vmem:[#allocation2 + $0x44] sm:$0x1] %v2531
        %2580 = vst [vmem:[#allocation2 + $0x48] sm:$0xf] %v2532
        %2581 = vst [vmem:[#allocation2 + $0x4c] sm:$0xf] %v2533
        %2582 = vst [vmem:[#allocation2 + $0x50] sm:$0x1] %v2534
        %2583 = vst [vmem:[#allocation2 + $0x54] sm:$0xf] %v2535
        %2584 = vst [vmem:[#allocation2 + $0x58] sm:$0xf] %v2536
        %2585 = vst [vmem:[#allocation2 + $0x5c] sm:$0x1] %v2537
        %v2593 = vunpack.c.l.s4 1966171168
        %v2594 = vunpack.c.0.s8 %v2593
        %v2595 = vlaneseq
        %v2596 = vshrl.u32 %v2595, 7
        %v2597 = vsub.s32 %v2594, %v2596
        %v2598 = vrot.slane %v632, %v2597
        %v2599 = vcombine.high %v2598, %v2598
        %v2601 = vunpack.c.l.s4 1966171168
        %v2602 = vunpack.c.0.s8 %v2601
        %v2603 = vlaneseq
        %v2604 = vshrl.u32 %v2603, 7
        %v2605 = vsub.s32 %v2602, %v2604
        %v2606 = vrot.slane %v2598, %v2605
        %v2608 = vunpack.c.l.s4 1966171168
        %v2609 = vunpack.c.0.s8 %v2608
        %v2610 = vlaneseq
        %v2611 = vshrl.u32 %v2610, 7
        %v2612 = vsub.s32 %v2609, %v2611
        %v2613 = vrot.slane %v2599, %v2612
        %v2614 = vcombine.high %v2606, %v2606
        %v2615 = vcombine.high %v2613, %v2613
        %v2617 = vunpack.c.l.s4 1966171168
        %v2618 = vunpack.c.0.s8 %v2617
        %v2619 = vlaneseq
        %v2620 = vshrl.u32 %v2619, 7
        %v2621 = vsub.s32 %v2618, %v2620
        %v2622 = vrot.slane %v633, %v2621
        %v2623 = vcombine.high %v2622, %v2622
        %v2625 = vunpack.c.l.s4 1966171168
        %v2626 = vunpack.c.0.s8 %v2625
        %v2627 = vlaneseq
        %v2628 = vshrl.u32 %v2627, 7
        %v2629 = vsub.s32 %v2626, %v2628
        %v2630 = vrot.slane %v2622, %v2629
        %v2632 = vunpack.c.l.s4 1966171168
        %v2633 = vunpack.c.0.s8 %v2632
        %v2634 = vlaneseq
        %v2635 = vshrl.u32 %v2634, 7
        %v2636 = vsub.s32 %v2633, %v2635
        %v2637 = vrot.slane %v2623, %v2636
        %v2638 = vcombine.high %v2630, %v2630
        %v2639 = vcombine.high %v2637, %v2637
        %v2641 = vunpack.c.l.s4 1966171168
        %v2642 = vunpack.c.0.s8 %v2641
        %v2643 = vlaneseq
        %v2644 = vshrl.u32 %v2643, 7
        %v2645 = vsub.s32 %v2642, %v2644
        %v2646 = vrot.slane %v634, %v2645
        %v2648 = vunpack.c.l.s4 1966171168
        %v2649 = vunpack.c.0.s8 %v2648
        %v2650 = vlaneseq
        %v2651 = vshrl.u32 %v2650, 7
        %v2652 = vsub.s32 %v2649, %v2651
        %v2653 = vrot.slane %v2646, %v2652
        %v2655 = vunpack.c.l.s4 1966171168
        %v2656 = vunpack.c.0.s8 %v2655
        %v2657 = vlaneseq
        %v2658 = vshrl.u32 %v2657, 7
        %v2659 = vsub.s32 %v2656, %v2658
        %v2660 = vrot.slane %v635, %v2659
        %v2661 = vcombine.high %v2660, %v2660
        %v2663 = vunpack.c.l.s4 1966171168
        %v2664 = vunpack.c.0.s8 %v2663
        %v2665 = vlaneseq
        %v2666 = vshrl.u32 %v2665, 7
        %v2667 = vsub.s32 %v2664, %v2666
        %v2668 = vrot.slane %v2660, %v2667
        %v2670 = vunpack.c.l.s4 1966171168
        %v2671 = vunpack.c.0.s8 %v2670
        %v2672 = vlaneseq
        %v2673 = vshrl.u32 %v2672, 7
        %v2674 = vsub.s32 %v2671, %v2673
        %v2675 = vrot.slane %v2661, %v2674
        %v2676 = vcombine.high %v2668, %v2668
        %v2677 = vcombine.high %v2675, %v2675
        %v2679 = vunpack.c.l.s4 1966171168
        %v2680 = vunpack.c.0.s8 %v2679
        %v2681 = vlaneseq
        %v2682 = vshrl.u32 %v2681, 7
        %v2683 = vsub.s32 %v2680, %v2682
        %v2684 = vrot.slane %v636, %v2683
        %v2685 = vcombine.high %v2684, %v2684
        %v2687 = vunpack.c.l.s4 1966171168
        %v2688 = vunpack.c.0.s8 %v2687
        %v2689 = vlaneseq
        %v2690 = vshrl.u32 %v2689, 7
        %v2691 = vsub.s32 %v2688, %v2690
        %v2692 = vrot.slane %v2684, %v2691
        %v2694 = vunpack.c.l.s4 1966171168
        %v2695 = vunpack.c.0.s8 %v2694
        %v2696 = vlaneseq
        %v2697 = vshrl.u32 %v2696, 7
        %v2698 = vsub.s32 %v2695, %v2697
        %v2699 = vrot.slane %v2685, %v2698
        %v2700 = vcombine.high %v2692, %v2692
        %v2701 = vcombine.high %v2699, %v2699
        %v2703 = vunpack.c.l.s4 1966171168
        %v2704 = vunpack.c.0.s8 %v2703
        %v2705 = vlaneseq
        %v2706 = vshrl.u32 %v2705, 7
        %v2707 = vsub.s32 %v2704, %v2706
        %v2708 = vrot.slane %v637, %v2707
        %v2710 = vunpack.c.l.s4 1966171168
        %v2711 = vunpack.c.0.s8 %v2710
        %v2712 = vlaneseq
        %v2713 = vshrl.u32 %v2712, 7
        %v2714 = vsub.s32 %v2711, %v2713
        %v2715 = vrot.slane %v2708, %v2714
        %v2716 = vld [vmem:[#allocation3] sm:$0xff]
        %v2717 = vld [vmem:[#allocation3 + $0x8] sm:$0xff]
        %v2718 = vld [vmem:[#allocation3 + $0x10] sm:$0xff]
        %v2719 = vld [vmem:[#allocation3 + $0x18] sm:$0xff]
        %v2720 = vld [vmem:[#allocation3 + $0x20] sm:$0xff]
        %v2721 = vld [vmem:[#allocation3 + $0x28] sm:$0xff]
        %v2722 = vld [vmem:[#allocation3 + $0x30] sm:$0xff]
        %v2723 = vld [vmem:[#allocation3 + $0x38] sm:$0xff]
        %v2724 = vld [vmem:[%s4] sm:$0x1]
        %v2726 = vlaneseq
        %v2727 = vshrl.u32 %v2726, 7
        %v2728 = vsub.s32 0, %v2727
        %v2729 = vrot.slane %v2724, %v2728
        %v2731 = vcombine.low %v2606, %v2613
        %v2732 = vcombine.low %v2614, %v2615
        %v2733 = vcombine.low %v2630, %v2637
        %v2734 = vcombine.low %v2638, %v2639
        %v2736 = vunpack.c.l.s4 1966171168
        %v2737 = vunpack.c.0.s8 %v2736
        %v2738 = vlaneseq
        %v2739 = vshrl.u32 %v2738, 7
        %v2740 = vsub.s32 %v2737, %v2739
        %v2741 = vrot.slane %v2731, %v2740
        %v2743 = vunpack.c.l.s4 1966171168
        %v2744 = vunpack.c.0.s8 %v2743
        %v2745 = vlaneseq
        %v2746 = vshrl.u32 %v2745, 7
        %v2747 = vsub.s32 %v2744, %v2746
        %v2748 = vrot.slane %v2732, %v2747
        %v2750 = vunpack.c.l.s4 1966171168
        %v2751 = vunpack.c.0.s8 %v2750
        %v2752 = vlaneseq
        %v2753 = vshrl.u32 %v2752, 7
        %v2754 = vsub.s32 %v2751, %v2753
        %v2755 = vrot.slane %v2733, %v2754
        %v2757 = vunpack.c.l.s4 1966171168
        %v2758 = vunpack.c.0.s8 %v2757
        %v2759 = vlaneseq
        %v2760 = vshrl.u32 %v2759, 7
        %v2761 = vsub.s32 %v2758, %v2760
        %v2762 = vrot.slane %v2734, %v2761
        %v2763 = vcombine.low %v2741, %v2748
        %v2764 = vcombine.low %v2755, %v2762
        %v2766 = vunpack.c.l.s4 1966171168
        %v2767 = vunpack.c.0.s8 %v2766
        %v2768 = vlaneseq
        %v2769 = vshrl.u32 %v2768, 7
        %v2770 = vsub.s32 %v2767, %v2769
        %v2771 = vrot.slane %v2763, %v2770
        %v2773 = vunpack.c.l.s4 1966171168
        %v2774 = vunpack.c.0.s8 %v2773
        %v2775 = vlaneseq
        %v2776 = vshrl.u32 %v2775, 7
        %v2777 = vsub.s32 %v2774, %v2776
        %v2778 = vrot.slane %v2764, %v2777
        %v2779 = vcombine.low %v2771, %v2778
        %v2780 = vcombine.low %v2653, %v2668
        %v2781 = vcombine.low %v2675, %v2676
        %v2782 = vcombine.low %v2677, %v2692
        %v2783 = vcombine.low %v2699, %v2700
        %v2785 = vunpack.c.l.s4 1966171168
        %v2786 = vunpack.c.0.s8 %v2785
        %v2787 = vlaneseq
        %v2788 = vshrl.u32 %v2787, 7
        %v2789 = vsub.s32 %v2786, %v2788
        %v2790 = vrot.slane %v2780, %v2789
        %v2792 = vunpack.c.l.s4 1966171168
        %v2793 = vunpack.c.0.s8 %v2792
        %v2794 = vlaneseq
        %v2795 = vshrl.u32 %v2794, 7
        %v2796 = vsub.s32 %v2793, %v2795
        %v2797 = vrot.slane %v2781, %v2796
        %v2799 = vunpack.c.l.s4 1966171168
        %v2800 = vunpack.c.0.s8 %v2799
        %v2801 = vlaneseq
        %v2802 = vshrl.u32 %v2801, 7
        %v2803 = vsub.s32 %v2800, %v2802
        %v2804 = vrot.slane %v2782, %v2803
        %v2806 = vunpack.c.l.s4 1966171168
        %v2807 = vunpack.c.0.s8 %v2806
        %v2808 = vlaneseq
        %v2809 = vshrl.u32 %v2808, 7
        %v2810 = vsub.s32 %v2807, %v2809
        %v2811 = vrot.slane %v2783, %v2810
        %v2812 = vcombine.low %v2790, %v2797
        %v2813 = vcombine.low %v2804, %v2811
        %v2815 = vunpack.c.l.s4 1966171168
        %v2816 = vunpack.c.0.s8 %v2815
        %v2817 = vlaneseq
        %v2818 = vshrl.u32 %v2817, 7
        %v2819 = vsub.s32 %v2816, %v2818
        %v2820 = vrot.slane %v2812, %v2819
        %v2822 = vunpack.c.l.s4 1966171168
        %v2823 = vunpack.c.0.s8 %v2822
        %v2824 = vlaneseq
        %v2825 = vshrl.u32 %v2824, 7
        %v2826 = vsub.s32 %v2823, %v2825
        %v2827 = vrot.slane %v2813, %v2826
        %v2828 = vcombine.low %v2820, %v2827
        %v2829 = vcombine.low %v2701, %v2715
        %v2831 = vunpack.c.l.s4 1966171168
        %v2832 = vunpack.c.0.s8 %v2831
        %v2833 = vlaneseq
        %v2834 = vshrl.u32 %v2833, 7
        %v2835 = vsub.s32 %v2832, %v2834
        %v2836 = vrot.slane %v2829, %v2835
        %v2838 = vunpack.c.l.s4 1966171168
        %v2839 = vunpack.c.0.s8 %v2838
        %v2840 = vlaneseq
        %v2841 = vshrl.u32 %v2840, 7
        %v2842 = vsub.s32 %v2839, %v2841
        %v2843 = vrot.slane %v2836, %v2842
        %2847 = vmatprep.subr.bf16.mxu0 0
        %2848 = vmatpush1.bf16.msra.mxu0 %v2716
        %2849 = vmatprep.subr.bf16.mxu0 0
        %2850 = vmatpush1.bf16.msra.mxu0 %v2717
        %2851 = vmatprep.subr.bf16.mxu0 0
        %2852 = vmatpush1.bf16.msra.mxu0 %v2718
        %2853 = vmatprep.subr.bf16.mxu0 0
        %2854 = vmatpush1.bf16.msra.mxu0 %v2719
        %2855 = vmatprep.subr.bf16.mxu0 0
        %2856 = vmatpush1.bf16.msra.mxu0 %v2720
        %2857 = vmatprep.subr.bf16.mxu0 0
        %2858 = vmatpush1.bf16.msra.mxu0 %v2721
        %2859 = vmatprep.subr.bf16.mxu0 0
        %2860 = vmatpush1.bf16.msra.mxu0 %v2722
        %2861 = vmatprep.subr.bf16.mxu0 0
        %2862 = vmatpush1.bf16.msra.mxu0 %v2723
        %2863 = vmatprep.subr.bf16.mxu0 0
        %2864 = vmatpush1.bf16.msra.mxu0 0
        %2865 = vmatprep.subr.bf16.mxu0 0
        %2866 = vmatpush1.bf16.msra.mxu0 0
        %2867 = vmatprep.subr.bf16.mxu0 0
        %2868 = vmatpush1.bf16.msra.mxu0 0
        %2869 = vmatprep.subr.bf16.mxu0 0
        %2870 = vmatpush1.bf16.msra.mxu0 0
        %2871 = vmatprep.subr.bf16.mxu0 0
        %2872 = vmatpush1.bf16.msra.mxu0 0
        %2873 = vmatprep.subr.bf16.mxu0 0
        %2874 = vmatpush1.bf16.msra.mxu0 0
        %2875 = vmatprep.subr.bf16.mxu0 0
        %2876 = vmatpush1.bf16.msra.mxu0 0
        %2877 = vmatprep.subr.bf16.mxu0 0
        %2878 = vmatpush1.bf16.msra.mxu0 0
        %2879 = vmatprep.mubr.bf16.mxu0 0
        %2880 = vmatmul.mubr.bf16.gmra.mrb[0].mxu0 %v2779
        %v2881 = vpop.f32.mrb[0].mxu0
        %v2882 = vadd.f32 %v2729, %v2881
        %v2883 = vpop.f32.mrb[0].mxu0
        %v2884 = vpop.f32.mrb[0].mxu0
        %v2885 = vadd.f32 %v2729, %v2884
        %v2886 = vpop.f32.mrb[0].mxu0
        %2887 = vmatprep.mubr.bf16.mxu0 0
        %2888 = vmatmul.mubr.bf16.gmra.mrb[0].mxu0 %v2828
        %v2889 = vpop.f32.mrb[0].mxu0
        %v2890 = vadd.f32 %v2729, %v2889
        %v2891 = vpop.f32.mrb[0].mxu0
        %v2892 = vpop.f32.mrb[0].mxu0
        %v2893 = vadd.f32 %v2729, %v2892
        %v2894 = vpop.f32.mrb[0].mxu0
        %2895 = vmatprep.mubr.bf16.mxu0 0
        %2896 = vmatmul.mubr.bf16.gmra.mrb[0].mxu0 %v2843
        %v2897 = vpop.f32.mrb[0].mxu0
        %v2898 = vadd.f32 %v2729, %v2897
        %v2899 = vpop.f32.mrb[0].mxu0
        %v2900 = vpop.f32.mrb[0].mxu0
        %v2901 = vpop.f32.mrb[0].mxu0
        %2902 = vdwg.mxu0
        %vm2903 = vcmp.gt.f32.partialorder %v2882, 0.0
        %vm2904 = vcmp.gt.f32.partialorder %v2885, 0.0
        %vm2905 = vcmp.gt.f32.partialorder %v2890, 0.0
        %vm2906 = vcmp.gt.f32.partialorder %v2893, 0.0
        %vm2907 = vcmp.gt.f32.partialorder %v2898, 0.0
        %v2908 = vmul.f32 %v2882, 0.1
        %v2909 = vmul.f32 %v2885, 0.1
        %v2910 = vmul.f32 %v2890, 0.1
        %v2911 = vmul.f32 %v2893, 0.1
        %v2912 = vmul.f32 %v2898, 0.1
        %v2913 = vsel %vm2903, %v2882, %v2908
        %v2914 = vsel %vm2904, %v2885, %v2909
        %v2915 = vsel %vm2905, %v2890, %v2910
        %v2916 = vsel %vm2906, %v2893, %v2911
        %v2917 = vsel %vm2907, %v2898, %v2912
        %v2923 = vcombine.high %v2913, %v2913
        %v2925 = vunpack.c.l.s4 1983009808
        %v2926 = vunpack.c.0.s8 %v2925
        %v2927 = vlaneseq
        %v2928 = vshrl.u32 %v2927, 7
        %v2929 = vsub.s32 %v2926, %v2928
        %v2930 = vrot.slane %v2913, %v2929
        %v2932 = vunpack.c.l.s4 1983009808
        %v2933 = vunpack.c.0.s8 %v2932
        %v2934 = vlaneseq
        %v2935 = vshrl.u32 %v2934, 7
        %v2936 = vsub.s32 %v2933, %v2935
        %v2937 = vrot.slane %v2923, %v2936
        %v2938 = vcombine.high %v2930, %v2930
        %v2939 = vcombine.high %v2937, %v2937
        %v2940 = vcombine.high %v2914, %v2914
        %v2942 = vunpack.c.l.s4 1983009808
        %v2943 = vunpack.c.0.s8 %v2942
        %v2944 = vlaneseq
        %v2945 = vshrl.u32 %v2944, 7
        %v2946 = vsub.s32 %v2943, %v2945
        %v2947 = vrot.slane %v2914, %v2946
        %v2949 = vunpack.c.l.s4 1983009808
        %v2950 = vunpack.c.0.s8 %v2949
        %v2951 = vlaneseq
        %v2952 = vshrl.u32 %v2951, 7
        %v2953 = vsub.s32 %v2950, %v2952
        %v2954 = vrot.slane %v2940, %v2953
        %v2955 = vcombine.high %v2947, %v2947
        %v2956 = vcombine.high %v2954, %v2954
        %v2957 = vcombine.high %v2915, %v2915
        %v2959 = vunpack.c.l.s4 1983009808
        %v2960 = vunpack.c.0.s8 %v2959
        %v2961 = vlaneseq
        %v2962 = vshrl.u32 %v2961, 7
        %v2963 = vsub.s32 %v2960, %v2962
        %v2964 = vrot.slane %v2915, %v2963
        %v2966 = vunpack.c.l.s4 1983009808
        %v2967 = vunpack.c.0.s8 %v2966
        %v2968 = vlaneseq
        %v2969 = vshrl.u32 %v2968, 7
        %v2970 = vsub.s32 %v2967, %v2969
        %v2971 = vrot.slane %v2957, %v2970
        %v2972 = vcombine.high %v2964, %v2964
        %v2973 = vcombine.high %v2971, %v2971
        %v2974 = vcombine.high %v2916, %v2916
        %v2976 = vunpack.c.l.s4 1983009808
        %v2977 = vunpack.c.0.s8 %v2976
        %v2978 = vlaneseq
        %v2979 = vshrl.u32 %v2978, 7
        %v2980 = vsub.s32 %v2977, %v2979
        %v2981 = vrot.slane %v2916, %v2980
        %v2983 = vunpack.c.l.s4 1983009808
        %v2984 = vunpack.c.0.s8 %v2983
        %v2985 = vlaneseq
        %v2986 = vshrl.u32 %v2985, 7
        %v2987 = vsub.s32 %v2984, %v2986
        %v2988 = vrot.slane %v2974, %v2987
        %v2989 = vcombine.high %v2981, %v2981
        %v2990 = vcombine.high %v2988, %v2988
        %v2992 = vunpack.c.l.s4 1983009808
        %v2993 = vunpack.c.0.s8 %v2992
        %v2994 = vlaneseq
        %v2995 = vshrl.u32 %v2994, 7
        %v2996 = vsub.s32 %v2993, %v2995
        %v2997 = vrot.slane %v2917, %v2996
        %v2998 = vcombine.high %v2997, %v2997
        %v2999 = vcombine.low %v2930, %v2938
        %v3000 = vcombine.low %v2937, %v2939
        %v3002 = vunpack.c.l.s4 1983009808
        %v3003 = vunpack.c.0.s8 %v3002
        %v3004 = vlaneseq
        %v3005 = vshrl.u32 %v3004, 7
        %v3006 = vsub.s32 %v3003, %v3005
        %v3007 = vrot.slane %v2999, %v3006
        %v3009 = vunpack.c.l.s4 1983009808
        %v3010 = vunpack.c.0.s8 %v3009
        %v3011 = vlaneseq
        %v3012 = vshrl.u32 %v3011, 7
        %v3013 = vsub.s32 %v3010, %v3012
        %v3014 = vrot.slane %v3000, %v3013
        %v3015 = vcombine.low %v3007, %v3014
        %v3016 = vcombine.low %v2947, %v2955
        %v3017 = vcombine.low %v2954, %v2956
        %v3019 = vunpack.c.l.s4 1983009808
        %v3020 = vunpack.c.0.s8 %v3019
        %v3021 = vlaneseq
        %v3022 = vshrl.u32 %v3021, 7
        %v3023 = vsub.s32 %v3020, %v3022
        %v3024 = vrot.slane %v3016, %v3023
        %v3026 = vunpack.c.l.s4 1983009808
        %v3027 = vunpack.c.0.s8 %v3026
        %v3028 = vlaneseq
        %v3029 = vshrl.u32 %v3028, 7
        %v3030 = vsub.s32 %v3027, %v3029
        %v3031 = vrot.slane %v3017, %v3030
        %v3032 = vcombine.low %v3024, %v3031
        %v3034 = vunpack.c.l.s4 1983009808
        %v3035 = vunpack.c.0.s8 %v3034
        %v3036 = vlaneseq
        %v3037 = vshrl.u32 %v3036, 7
        %v3038 = vsub.s32 %v3035, %v3037
        %v3039 = vrot.slane %v2964, %v3038
        %v3040 = vcombine.low %v2972, %v2971
        %v3041 = vcombine.low %v2973, %v2981
        %v3043 = vunpack.c.l.s4 1983009808
        %v3044 = vunpack.c.0.s8 %v3043
        %v3045 = vlaneseq
        %v3046 = vshrl.u32 %v3045, 7
        %v3047 = vsub.s32 %v3044, %v3046
        %v3048 = vrot.slane %v3040, %v3047
        %v3050 = vunpack.c.l.s4 1983009808
        %v3051 = vunpack.c.0.s8 %v3050
        %v3052 = vlaneseq
        %v3053 = vshrl.u32 %v3052, 7
        %v3054 = vsub.s32 %v3051, %v3053
        %v3055 = vrot.slane %v3041, %v3054
        %v3056 = vcombine.low %v3048, %v3055
        %v3057 = vcombine.low %v2989, %v2988
        %v3058 = vcombine.low %v2990, %v2997
        %v3060 = vunpack.c.l.s4 1983009808
        %v3061 = vunpack.c.0.s8 %v3060
        %v3062 = vlaneseq
        %v3063 = vshrl.u32 %v3062, 7
        %v3064 = vsub.s32 %v3061, %v3063
        %v3065 = vrot.slane %v3057, %v3064
        %v3067 = vunpack.c.l.s4 1983009808
        %v3068 = vunpack.c.0.s8 %v3067
        %v3069 = vlaneseq
        %v3070 = vshrl.u32 %v3069, 7
        %v3071 = vsub.s32 %v3068, %v3070
        %v3072 = vrot.slane %v3058, %v3071
        %v3073 = vcombine.low %v3065, %v3072
        %v3075 = vunpack.c.l.s4 1983009808
        %v3076 = vunpack.c.0.s8 %v3075
        %v3077 = vlaneseq
        %v3078 = vshrl.u32 %v3077, 7
        %v3079 = vsub.s32 %v3076, %v3078
        %v3080 = vrot.slane %v2998, %v3079
        %v3087 = vpack.c.bf16 %v3032, %v3015
        %v3088 = vpack.c.bf16 %v3039, %v3039
        %v3089 = vpack.c.bf16 %v3073, %v3056
        %v3090 = vpack.c.bf16 %v3080, %v3080
        %v3095 = vunpack.c.l.b16 %v3087
        %v3096 = vunpack.c.h.b16 %v3087
        %v3097 = vunpack.c.l.b16 %v3088
        %v3098 = vunpack.c.l.b16 %v3089
        %v3099 = vunpack.c.h.b16 %v3089
        %v3100 = vunpack.c.l.b16 %v3090
        %v3101 = vpack.c.b16 %v3095, %v3095
        %v3102 = vpack.c.b16 %v3096, %v3096
        %v3103 = vpack.c.b16 %v3097, %v3097
        %v3104 = vpack.c.b16 %v3098, %v3098
        %v3105 = vpack.c.b16 %v3099, %v3099
        %v3106 = vpack.c.b16 %v3100, %v3100
        %s3113 = scalar_lea.vmem [#allocation2], 96
        %3114 = vst [vmem:[%s3113] sm:$0xf] %v3101
        %3115 = vst [vmem:[%s3113 + $0x4] sm:$0xf] %v3102
        %3116 = vst [vmem:[%s3113 + $0x8] sm:$0x1] %v3103
        %3117 = vst [vmem:[%s3113 + $0xc] sm:$0xf] %v3104
        %3118 = vst [vmem:[%s3113 + $0x10] sm:$0xf] %v3105
        %3119 = vst [vmem:[%s3113 + $0x14] sm:$0x1] %v3106
        %vm3120 = vcmask 1040384
        %vm3121 = vsmask.f32 256
        %vm3122 = vmand %vm3120, %vm3121
        %v3123 = vld [vmem:[#allocation2] sm:$0x1]
        %v3124 = vsel %vm3122, 0, %v3123
        %3125 = vst [vmem:[#allocation2] sm:$0x1] %v3124
        %v3126 = vld [vmem:[#allocation2 + $0xc] sm:$0x1]
        %v3127 = vsel %vm3122, 0, %v3126
        %3128 = vst [vmem:[#allocation2 + $0xc] sm:$0x1] %v3127
        %v3129 = vld [vmem:[#allocation2 + $0x18] sm:$0x1]
        %v3130 = vsel %vm3122, 0, %v3129
        %3131 = vst [vmem:[#allocation2 + $0x18] sm:$0x1] %v3130
        %v3132 = vld [vmem:[#allocation2 + $0x24] sm:$0x1]
        %v3133 = vsel %vm3122, 0, %v3132
        %3134 = vst [vmem:[#allocation2 + $0x24] sm:$0x1] %v3133
        %v3135 = vld [vmem:[#allocation2 + $0x30] sm:$0x1]
        %v3136 = vsel %vm3122, 0, %v3135
        %3137 = vst [vmem:[#allocation2 + $0x30] sm:$0x1] %v3136
        %v3138 = vld [vmem:[#allocation2 + $0x3c] sm:$0x1]
        %v3139 = vsel %vm3122, 0, %v3138
        %3140 = vst [vmem:[#allocation2 + $0x3c] sm:$0x1] %v3139
        %v3141 = vld [vmem:[#allocation2 + $0x48] sm:$0x1]
        %v3142 = vsel %vm3122, 0, %v3141
        %3143 = vst [vmem:[#allocation2 + $0x48] sm:$0x1] %v3142
        %v3144 = vld [vmem:[#allocation2 + $0x54] sm:$0x1]
        %v3145 = vsel %vm3122, 0, %v3144
        %3146 = vst [vmem:[#allocation2 + $0x54] sm:$0x1] %v3145
        %v3147 = vld [vmem:[#allocation2 + $0x60] sm:$0x1]
        %v3148 = vsel %vm3122, 0, %v3147
        %3149 = vst [vmem:[#allocation2 + $0x60] sm:$0x1] %v3148
        %v3150 = vld [vmem:[#allocation2 + $0x6c] sm:$0x1]
        %v3151 = vsel %vm3122, 0, %v3150
        %3152 = vst [vmem:[#allocation2 + $0x6c] sm:$0x1] %v3151
        %vm3153 = vsmask.f32 7938
        %vm3154 = vmand %vm3120, %vm3153
        %v3155 = vld [vmem:[#allocation2 + $0x8] sm:$0x1]
        %v3156 = vsel %vm3154, 0, %v3155
        %3157 = vst [vmem:[#allocation2 + $0x8] sm:$0x1] %v3156
        %v3158 = vld [vmem:[#allocation2 + $0x14] sm:$0x1]
        %v3159 = vsel %vm3154, 0, %v3158
        %3160 = vst [vmem:[#allocation2 + $0x14] sm:$0x1] %v3159
        %v3161 = vld [vmem:[#allocation2 + $0x20] sm:$0x1]
        %v3162 = vsel %vm3154, 0, %v3161
        %3163 = vst [vmem:[#allocation2 + $0x20] sm:$0x1] %v3162
        %v3164 = vld [vmem:[#allocation2 + $0x2c] sm:$0x1]
        %v3165 = vsel %vm3154, 0, %v3164
        %3166 = vst [vmem:[#allocation2 + $0x2c] sm:$0x1] %v3165
        %v3167 = vld [vmem:[#allocation2 + $0x38] sm:$0x1]
        %v3168 = vsel %vm3154, 0, %v3167
        %3169 = vst [vmem:[#allocation2 + $0x38] sm:$0x1] %v3168
        %v3170 = vld [vmem:[#allocation2 + $0x44] sm:$0x1]
        %v3171 = vsel %vm3154, 0, %v3170
        %3172 = vst [vmem:[#allocation2 + $0x44] sm:$0x1] %v3171
        %v3173 = vld [vmem:[#allocation2 + $0x50] sm:$0x1]
        %v3174 = vsel %vm3154, 0, %v3173
        %3175 = vst [vmem:[#allocation2 + $0x50] sm:$0x1] %v3174
        %v3176 = vld [vmem:[#allocation2 + $0x5c] sm:$0x1]
        %v3177 = vsel %vm3154, 0, %v3176
        %3178 = vst [vmem:[#allocation2 + $0x5c] sm:$0x1] %v3177
        %v3179 = vld [vmem:[#allocation2 + $0x68] sm:$0x1]
        %v3180 = vsel %vm3154, 0, %v3179
        %3181 = vst [vmem:[#allocation2 + $0x68] sm:$0x1] %v3180
        %v3182 = vld [vmem:[#allocation2 + $0x74] sm:$0x1]
        %v3183 = vsel %vm3154, 0, %v3182
        %3184 = vst [vmem:[#allocation2 + $0x74] sm:$0x1] %v3183
        %p3185 = scmp.eq.s32.totalorder %s353, 0
        // Predicated region
        $region109: #{tpu_custom_call.1} parent=35 // pred_check
          %p3186 = pneg %p3185
        $region110: #{tpu_custom_call.1} parent=35 // pred_check_branch
          %3188 = sbr.rel (%p3186) target = $region112
        $region111: #{tpu_custom_call.1} parent=35 // pred_region
          %3189 = vst [vmem:[#allocation2] sm:$0xf] 0
          %3190 = vst [vmem:[#allocation2 + $0x4] sm:$0xf] 0
          %3191 = vst [vmem:[#allocation2 + $0x8] sm:$0x1] 0
        $region112: #{tpu_custom_call.1} parent=35 // pred_fallthru
          _
        %p3192 = scmp.eq.s32.totalorder %s353, 1
        // Predicated region
        $region113: #{tpu_custom_call.1} parent=35 // pred_check
          %p3193 = pneg %p3192
        $region114: #{tpu_custom_call.1} parent=35 // pred_check_branch
          %3195 = sbr.rel (%p3193) target = $region116
        $region115: #{tpu_custom_call.1} parent=35 // pred_region
          %s3196 = scalar_lea.vmem [#allocation2], 108
          %3197 = vst [vmem:[%s3196] sm:$0xf] 0
          %3198 = vst [vmem:[%s3196 + $0x4] sm:$0xf] 0
          %3199 = vst [vmem:[%s3196 + $0x8] sm:$0x1] 0
        $region116: #{tpu_custom_call.1} parent=35 // pred_fallthru
          _
        %v3200 = vld [vmem:[#allocation2] sm:$0xf]
        %v3201 = vld [vmem:[#allocation2 + $0x4] sm:$0xf]
        %v3202 = vld [vmem:[#allocation2 + $0xc] sm:$0xf]
        %v3203 = vld [vmem:[#allocation2 + $0x10] sm:$0xf]
        %v3204 = vld [vmem:[#allocation2 + $0x18] sm:$0xf]
        %v3205 = vld [vmem:[#allocation2 + $0x1c] sm:$0xf]
        %v3206 = vld [vmem:[#allocation2 + $0x24] sm:$0xf]
        %v3207 = vld [vmem:[#allocation2 + $0x28] sm:$0xf]
        %v3208 = vld [vmem:[#allocation2 + $0x30] sm:$0xf]
        %v3209 = vld [vmem:[#allocation2 + $0x34] sm:$0xf]
        %v3210 = vld [vmem:[#allocation2 + $0x3c] sm:$0xf]
        %v3211 = vld [vmem:[#allocation2 + $0x40] sm:$0xf]
        %v3212 = vld [vmem:[#allocation2 + $0x48] sm:$0xf]
        %v3213 = vld [vmem:[#allocation2 + $0x4c] sm:$0xf]
        %v3214 = vld [vmem:[#allocation2 + $0x54] sm:$0xf]
        %v3215 = vld [vmem:[#allocation2 + $0x58] sm:$0xf]
        %v3216 = vld [vmem:[#allocation4] sm:$0xff]
        %v3217 = vld [vmem:[#allocation4 + $0x8] sm:$0xff]
        %v3218 = vld [vmem:[#allocation4 + $0x10] sm:$0xff]
        %v3219 = vld [vmem:[#allocation4 + $0x18] sm:$0xff]
        %v3220 = vld [vmem:[#allocation4 + $0x20] sm:$0xff]
        %v3221 = vld [vmem:[#allocation4 + $0x28] sm:$0xff]
        %v3222 = vld [vmem:[#allocation4 + $0x30] sm:$0xff]
        %v3223 = vld [vmem:[#allocation4 + $0x38] sm:$0xff]
        %v3224 = vld [vmem:[#allocation2 + $0x8] sm:$0x1]
        %v3225 = vld [vmem:[#allocation2 + $0x14] sm:$0x1]
        %v3226 = vld [vmem:[#allocation2 + $0x20] sm:$0x1]
        %v3227 = vld [vmem:[#allocation2 + $0x2c] sm:$0x1]
        %v3228 = vld [vmem:[#allocation2 + $0x38] sm:$0x1]
        %v3229 = vld [vmem:[#allocation2 + $0x44] sm:$0x1]
        %v3230 = vld [vmem:[#allocation2 + $0x50] sm:$0x1]
        %v3231 = vld [vmem:[#allocation2 + $0x5c] sm:$0x1]
        %vm3232 = vsmask.f32 3328
        %vm3233 = vsmask.f32 7440
        %vm3234 = vmor %vm3232, %vm3233
        %v3236 = vshrl.u32 %v3200, 16
        %v3238 = vrot.slane %v3236, 4
        %v3239 = vshll.u32 %v3200, 16
        %v3241 = vrot.slane %v3239, 5
        %v3242 = vor.u32 %v3238, %v3241
        %v3243 = vrot.slane %v3242, 4
        %v3245 = vshll.u32 %v3201, 16
        %v3247 = vrot.slane %v3245, 5
        %v3248 = vsel %vm3234, %v3243, %v3247
        %v3249 = vshrl.u32 %v3201, 16
        %v3251 = vrot.slane %v3249, 4
        %v3252 = vor.u32 %v3251, %v3247
        %v3253 = vrot.slane %v3252, 4
        %v3255 = vshll.u32 %v3224, 16
        %v3257 = vrot.slane %v3255, 5
        %v3258 = vsel %vm3234, %v3253, %v3257
        %v3260 = vshrl.u32 %v3202, 16
        %v3262 = vrot.slane %v3260, 4
        %v3263 = vshll.u32 %v3202, 16
        %v3265 = vrot.slane %v3263, 5
        %v3266 = vor.u32 %v3262, %v3265
        %v3267 = vrot.slane %v3266, 4
        %v3269 = vshll.u32 %v3203, 16
        %v3271 = vrot.slane %v3269, 5
        %v3272 = vsel %vm3234, %v3267, %v3271
        %v3273 = vshrl.u32 %v3203, 16
        %v3275 = vrot.slane %v3273, 4
        %v3276 = vor.u32 %v3275, %v3271
        %v3277 = vrot.slane %v3276, 4
        %v3279 = vshll.u32 %v3225, 16
        %v3281 = vrot.slane %v3279, 5
        %v3282 = vsel %vm3234, %v3277, %v3281
        %v3284 = vshrl.u32 %v3204, 16
        %v3286 = vrot.slane %v3284, 4
        %v3287 = vshll.u32 %v3204, 16
        %v3289 = vrot.slane %v3287, 5
        %v3290 = vor.u32 %v3286, %v3289
        %v3291 = vrot.slane %v3290, 4
        %v3293 = vshll.u32 %v3205, 16
        %v3295 = vrot.slane %v3293, 5
        %v3296 = vsel %vm3234, %v3291, %v3295
        %v3297 = vshrl.u32 %v3205, 16
        %v3299 = vrot.slane %v3297, 4
        %v3300 = vor.u32 %v3299, %v3295
        %v3301 = vrot.slane %v3300, 4
        %v3303 = vshll.u32 %v3226, 16
        %v3305 = vrot.slane %v3303, 5
        %v3306 = vsel %vm3234, %v3301, %v3305
        %v3308 = vshrl.u32 %v3206, 16
        %v3310 = vrot.slane %v3308, 4
        %v3311 = vshll.u32 %v3206, 16
        %v3313 = vrot.slane %v3311, 5
        %v3314 = vor.u32 %v3310, %v3313
        %v3315 = vrot.slane %v3314, 4
        %v3317 = vshll.u32 %v3207, 16
        %v3319 = vrot.slane %v3317, 5
        %v3320 = vsel %vm3234, %v3315, %v3319
        %v3321 = vshrl.u32 %v3207, 16
        %v3323 = vrot.slane %v3321, 4
        %v3324 = vor.u32 %v3323, %v3319
        %v3325 = vrot.slane %v3324, 4
        %v3327 = vshll.u32 %v3227, 16
        %v3329 = vrot.slane %v3327, 5
        %v3330 = vsel %vm3234, %v3325, %v3329
        %v3332 = vshrl.u32 %v3208, 16
        %v3334 = vrot.slane %v3332, 4
        %v3335 = vshll.u32 %v3208, 16
        %v3337 = vrot.slane %v3335, 5
        %v3338 = vor.u32 %v3334, %v3337
        %v3339 = vrot.slane %v3338, 4
        %v3341 = vshll.u32 %v3209, 16
        %v3343 = vrot.slane %v3341, 5
        %v3344 = vsel %vm3234, %v3339, %v3343
        %v3345 = vshrl.u32 %v3209, 16
        %v3347 = vrot.slane %v3345, 4
        %v3348 = vor.u32 %v3347, %v3343
        %v3349 = vrot.slane %v3348, 4
        %v3351 = vshll.u32 %v3228, 16
        %v3353 = vrot.slane %v3351, 5
        %v3354 = vsel %vm3234, %v3349, %v3353
        %v3356 = vshrl.u32 %v3210, 16
        %v3358 = vrot.slane %v3356, 4
        %v3359 = vshll.u32 %v3210, 16
        %v3361 = vrot.slane %v3359, 5
        %v3362 = vor.u32 %v3358, %v3361
        %v3363 = vrot.slane %v3362, 4
        %v3365 = vshll.u32 %v3211, 16
        %v3367 = vrot.slane %v3365, 5
        %v3368 = vsel %vm3234, %v3363, %v3367
        %v3369 = vshrl.u32 %v3211, 16
        %v3371 = vrot.slane %v3369, 4
        %v3372 = vor.u32 %v3371, %v3367
        %v3373 = vrot.slane %v3372, 4
        %v3375 = vshll.u32 %v3229, 16
        %v3377 = vrot.slane %v3375, 5
        %v3378 = vsel %vm3234, %v3373, %v3377
        %v3380 = vshrl.u32 %v3212, 16
        %v3382 = vrot.slane %v3380, 4
        %v3383 = vshll.u32 %v3212, 16
        %v3385 = vrot.slane %v3383, 5
        %v3386 = vor.u32 %v3382, %v3385
        %v3387 = vrot.slane %v3386, 4
        %v3389 = vshll.u32 %v3213, 16
        %v3391 = vrot.slane %v3389, 5
        %v3392 = vsel %vm3234, %v3387, %v3391
        %v3393 = vshrl.u32 %v3213, 16
        %v3395 = vrot.slane %v3393, 4
        %v3396 = vor.u32 %v3395, %v3391
        %v3397 = vrot.slane %v3396, 4
        %v3399 = vshll.u32 %v3230, 16
        %v3401 = vrot.slane %v3399, 5
        %v3402 = vsel %vm3234, %v3397, %v3401
        %v3404 = vshrl.u32 %v3214, 16
        %v3406 = vrot.slane %v3404, 4
        %v3407 = vshll.u32 %v3214, 16
        %v3409 = vrot.slane %v3407, 5
        %v3410 = vor.u32 %v3406, %v3409
        %v3411 = vrot.slane %v3410, 4
        %v3413 = vshll.u32 %v3215, 16
        %v3415 = vrot.slane %v3413, 5
        %v3416 = vsel %vm3234, %v3411, %v3415
        %v3417 = vshrl.u32 %v3215, 16
        %v3419 = vrot.slane %v3417, 4
        %v3420 = vor.u32 %v3419, %v3415
        %v3421 = vrot.slane %v3420, 4
        %v3423 = vshll.u32 %v3231, 16
        %v3425 = vrot.slane %v3423, 5
        %v3426 = vsel %vm3234, %v3421, %v3425
        %s3427 = scalar_lea.vmem [#allocation4], 64
        %v3428 = vld [vmem:[%s3427] sm:$0xff]
        %v3429 = vld [vmem:[%s3427 + $0x8] sm:$0xff]
        %v3430 = vld [vmem:[%s3427 + $0x10] sm:$0xff]
        %v3431 = vld [vmem:[%s3427 + $0x18] sm:$0xff]
        %v3432 = vld [vmem:[%s3427 + $0x20] sm:$0xff]
        %v3433 = vld [vmem:[%s3427 + $0x28] sm:$0xff]
        %v3434 = vld [vmem:[%s3427 + $0x30] sm:$0xff]
        %v3435 = vld [vmem:[%s3427 + $0x38] sm:$0xff]
        %v3436 = vunpack.c.l.b16 %v3248
        %v3437 = vunpack.c.l.b16 %v3258
        %v3438 = vunpack.c.l.b16 %v3272
        %v3439 = vunpack.c.l.b16 %v3282
        %v3440 = vunpack.c.l.b16 %v3296
        %v3441 = vunpack.c.l.b16 %v3306
        %v3442 = vunpack.c.l.b16 %v3320
        %v3443 = vunpack.c.l.b16 %v3330
        %v3444 = vunpack.c.l.b16 %v3344
        %v3445 = vunpack.c.l.b16 %v3354
        %v3446 = vunpack.c.l.b16 %v3368
        %v3447 = vunpack.c.l.b16 %v3378
        %v3448 = vunpack.c.l.b16 %v3392
        %v3449 = vunpack.c.l.b16 %v3402
        %v3450 = vunpack.c.l.b16 %v3416
        %v3451 = vunpack.c.l.b16 %v3426
        %v3452 = vpack.c.b16 %v3437, %v3436
        %v3453 = vpack.c.b16 %v3439, %v3438
        %v3454 = vpack.c.b16 %v3441, %v3440
        %v3455 = vpack.c.b16 %v3443, %v3442
        %v3456 = vpack.c.b16 %v3445, %v3444
        %v3457 = vpack.c.b16 %v3447, %v3446
        %v3458 = vpack.c.b16 %v3449, %v3448
        %v3459 = vpack.c.b16 %v3451, %v3450
        %3468 = vmatprep.subr.bf16.mxu0 0
        %3469 = vmatpush1.bf16.msra.mxu0 %v3428
        %3470 = vmatprep.subr.bf16.mxu0 0
        %3471 = vmatpush1.bf16.msra.mxu0 %v3429
        %3472 = vmatprep.subr.bf16.mxu0 0
        %3473 = vmatpush1.bf16.msra.mxu0 %v3430
        %3474 = vmatprep.subr.bf16.mxu0 0
        %3475 = vmatpush1.bf16.msra.mxu0 %v3431
        %3476 = vmatprep.subr.bf16.mxu0 0
        %3477 = vmatpush1.bf16.msra.mxu0 %v3432
        %3478 = vmatprep.subr.bf16.mxu0 0
        %3479 = vmatpush1.bf16.msra.mxu0 %v3433
        %3480 = vmatprep.subr.bf16.mxu0 0
        %3481 = vmatpush1.bf16.msra.mxu0 %v3434
        %3482 = vmatprep.subr.bf16.mxu0 0
        %3483 = vmatpush1.bf16.msra.mxu0 %v3435
        %3484 = vmatprep.subr.bf16.mxu0 0
        %3485 = vmatpush1.bf16.msra.mxu0 0
        %3486 = vmatprep.subr.bf16.mxu0 0
        %3487 = vmatpush1.bf16.msra.mxu0 0
        %3488 = vmatprep.subr.bf16.mxu0 0
        %3489 = vmatpush1.bf16.msra.mxu0 0
        %3490 = vmatprep.subr.bf16.mxu0 0
        %3491 = vmatpush1.bf16.msra.mxu0 0
        %3492 = vmatprep.subr.bf16.mxu0 0
        %3493 = vmatpush1.bf16.msra.mxu0 0
        %3494 = vmatprep.subr.bf16.mxu0 0
        %3495 = vmatpush1.bf16.msra.mxu0 0
        %3496 = vmatprep.subr.bf16.mxu0 0
        %3497 = vmatpush1.bf16.msra.mxu0 0
        %3498 = vmatprep.subr.bf16.mxu0 0
        %3499 = vmatpush1.bf16.msra.mxu0 0
        %3500 = vmatprep.mubr.bf16.mxu0 0
        %3501 = vmatmul.mubr.bf16.gmra.mrb[0].mxu0 %v3452
        %v3502 = vpop.f32.mrb[0].mxu0
        %v3503 = vadd.f32 0.0, %v3502
        %v3504 = vpop.f32.mrb[0].mxu0
        %v3505 = vpop.f32.mrb[0].mxu0
        %v3506 = vadd.f32 0.0, %v3505
        %v3507 = vpop.f32.mrb[0].mxu0
        %3508 = vmatprep.mubr.bf16.mxu0 0
        %3509 = vmatmul.mubr.bf16.gmra.mrb[0].mxu0 %v3453
        %v3510 = vpop.f32.mrb[0].mxu0
        %v3511 = vadd.f32 0.0, %v3510
        %v3512 = vpop.f32.mrb[0].mxu0
        %v3513 = vpop.f32.mrb[0].mxu0
        %v3514 = vadd.f32 0.0, %v3513
        %v3515 = vpop.f32.mrb[0].mxu0
        %3516 = vmatprep.mubr.bf16.mxu0 0
        %3517 = vmatmul.mubr.bf16.gmra.mrb[0].mxu0 %v3454
        %v3518 = vpop.f32.mrb[0].mxu0
        %v3519 = vadd.f32 0.0, %v3518
        %v3520 = vpop.f32.mrb[0].mxu0
        %v3521 = vpop.f32.mrb[0].mxu0
        %v3522 = vadd.f32 0.0, %v3521
        %v3523 = vpop.f32.mrb[0].mxu0
        %3524 = vmatprep.mubr.bf16.mxu0 0
        %3525 = vmatmul.mubr.bf16.gmra.mrb[0].mxu0 %v3455
        %v3526 = vpop.f32.mrb[0].mxu0
        %v3527 = vadd.f32 0.0, %v3526
        %v3528 = vpop.f32.mrb[0].mxu0
        %v3529 = vpop.f32.mrb[0].mxu0
        %v3530 = vadd.f32 0.0, %v3529
        %v3531 = vpop.f32.mrb[0].mxu0
        %3532 = vmatprep.mubr.bf16.mxu0 0
        %3533 = vmatmul.mubr.bf16.gmra.mrb[0].mxu0 %v3456
        %v3534 = vpop.f32.mrb[0].mxu0
        %v3535 = vadd.f32 0.0, %v3534
        %v3536 = vpop.f32.mrb[0].mxu0
        %v3537 = vpop.f32.mrb[0].mxu0
        %v3538 = vadd.f32 0.0, %v3537
        %v3539 = vpop.f32.mrb[0].mxu0
        %3540 = vmatprep.mubr.bf16.mxu0 0
        %3541 = vmatmul.mubr.bf16.gmra.mrb[0].mxu0 %v3457
        %v3542 = vpop.f32.mrb[0].mxu0
        %v3543 = vadd.f32 0.0, %v3542
        %v3544 = vpop.f32.mrb[0].mxu0
        %v3545 = vpop.f32.mrb[0].mxu0
        %v3546 = vadd.f32 0.0, %v3545
        %v3547 = vpop.f32.mrb[0].mxu0
        %3548 = vmatprep.mubr.bf16.mxu0 0
        %3549 = vmatmul.mubr.bf16.gmra.mrb[0].mxu0 %v3458
        %v3550 = vpop.f32.mrb[0].mxu0
        %v3551 = vadd.f32 0.0, %v3550
        %v3552 = vpop.f32.mrb[0].mxu0
        %v3553 = vpop.f32.mrb[0].mxu0
        %v3554 = vadd.f32 0.0, %v3553
        %v3555 = vpop.f32.mrb[0].mxu0
        %3556 = vmatprep.mubr.bf16.mxu0 0
        %3557 = vmatmul.mubr.bf16.gmra.mrb[0].mxu0 %v3459
        %v3558 = vpop.f32.mrb[0].mxu0
        %v3559 = vadd.f32 0.0, %v3558
        %v3560 = vpop.f32.mrb[0].mxu0
        %v3561 = vpop.f32.mrb[0].mxu0
        %v3562 = vadd.f32 0.0, %v3561
        %v3563 = vpop.f32.mrb[0].mxu0
        %3564 = vdwg.mxu0
        %v3581 = vunpack.c.l.b16 %v3200
        %v3582 = vunpack.c.l.b16 %v3201
        %v3583 = vunpack.c.l.b16 %v3202
        %v3584 = vunpack.c.l.b16 %v3203
        %v3585 = vunpack.c.l.b16 %v3204
        %v3586 = vunpack.c.l.b16 %v3205
        %v3587 = vunpack.c.l.b16 %v3206
        %v3588 = vunpack.c.l.b16 %v3207
        %v3589 = vunpack.c.l.b16 %v3208
        %v3590 = vunpack.c.l.b16 %v3209
        %v3591 = vunpack.c.l.b16 %v3210
        %v3592 = vunpack.c.l.b16 %v3211
        %v3593 = vunpack.c.l.b16 %v3212
        %v3594 = vunpack.c.l.b16 %v3213
        %v3595 = vunpack.c.l.b16 %v3214
        %v3596 = vunpack.c.l.b16 %v3215
        %v3597 = vpack.c.b16 %v3582, %v3581
        %v3598 = vpack.c.b16 %v3584, %v3583
        %v3599 = vpack.c.b16 %v3586, %v3585
        %v3600 = vpack.c.b16 %v3588, %v3587
        %v3601 = vpack.c.b16 %v3590, %v3589
        %v3602 = vpack.c.b16 %v3592, %v3591
        %v3603 = vpack.c.b16 %v3594, %v3593
        %v3604 = vpack.c.b16 %v3596, %v3595
        %3613 = vmatprep.subr.bf16.mxu0 0
        %3614 = vmatpush1.bf16.msra.mxu0 %v3216
        %3615 = vmatprep.subr.bf16.mxu0 0
        %3616 = vmatpush1.bf16.msra.mxu0 %v3217
        %3617 = vmatprep.subr.bf16.mxu0 0
        %3618 = vmatpush1.bf16.msra.mxu0 %v3218
        %3619 = vmatprep.subr.bf16.mxu0 0
        %3620 = vmatpush1.bf16.msra.mxu0 %v3219
        %3621 = vmatprep.subr.bf16.mxu0 0
        %3622 = vmatpush1.bf16.msra.mxu0 %v3220
        %3623 = vmatprep.subr.bf16.mxu0 0
        %3624 = vmatpush1.bf16.msra.mxu0 %v3221
        %3625 = vmatprep.subr.bf16.mxu0 0
        %3626 = vmatpush1.bf16.msra.mxu0 %v3222
        %3627 = vmatprep.subr.bf16.mxu0 0
        %3628 = vmatpush1.bf16.msra.mxu0 %v3223
        %3629 = vmatprep.subr.bf16.mxu0 0
        %3630 = vmatpush1.bf16.msra.mxu0 0
        %3631 = vmatprep.subr.bf16.mxu0 0
        %3632 = vmatpush1.bf16.msra.mxu0 0
        %3633 = vmatprep.subr.bf16.mxu0 0
        %3634 = vmatpush1.bf16.msra.mxu0 0
        %3635 = vmatprep.subr.bf16.mxu0 0
        %3636 = vmatpush1.bf16.msra.mxu0 0
        %3637 = vmatprep.subr.bf16.mxu0 0
        %3638 = vmatpush1.bf16.msra.mxu0 0
        %3639 = vmatprep.subr.bf16.mxu0 0
        %3640 = vmatpush1.bf16.msra.mxu0 0
        %3641 = vmatprep.subr.bf16.mxu0 0
        %3642 = vmatpush1.bf16.msra.mxu0 0
        %3643 = vmatprep.subr.bf16.mxu0 0
        %3644 = vmatpush1.bf16.msra.mxu0 0
        %3645 = vmatprep.mubr.bf16.mxu0 0
        %3646 = vmatmul.mubr.bf16.gmra.mrb[0].mxu0 %v3597
        %v3647 = vpop.f32.mrb[0].mxu0
        %v3648 = vadd.f32 %v3503, %v3647
        %v3649 = vpop.f32.mrb[0].mxu0
        %v3650 = vpop.f32.mrb[0].mxu0
        %v3651 = vadd.f32 %v3506, %v3650
        %v3652 = vpop.f32.mrb[0].mxu0
        %3653 = vmatprep.mubr.bf16.mxu0 0
        %3654 = vmatmul.mubr.bf16.gmra.mrb[0].mxu0 %v3598
        %v3655 = vpop.f32.mrb[0].mxu0
        %v3656 = vadd.f32 %v3511, %v3655
        %v3657 = vpop.f32.mrb[0].mxu0
        %v3658 = vpop.f32.mrb[0].mxu0
        %v3659 = vadd.f32 %v3514, %v3658
        %v3660 = vpop.f32.mrb[0].mxu0
        %3661 = vmatprep.mubr.bf16.mxu0 0
        %3662 = vmatmul.mubr.bf16.gmra.mrb[0].mxu0 %v3599
        %v3663 = vpop.f32.mrb[0].mxu0
        %v3664 = vadd.f32 %v3519, %v3663
        %v3665 = vpop.f32.mrb[0].mxu0
        %v3666 = vpop.f32.mrb[0].mxu0
        %v3667 = vadd.f32 %v3522, %v3666
        %v3668 = vpop.f32.mrb[0].mxu0
        %3669 = vmatprep.mubr.bf16.mxu0 0
        %3670 = vmatmul.mubr.bf16.gmra.mrb[0].mxu0 %v3600
        %v3671 = vpop.f32.mrb[0].mxu0
        %v3672 = vadd.f32 %v3527, %v3671
        %v3673 = vpop.f32.mrb[0].mxu0
        %v3674 = vpop.f32.mrb[0].mxu0
        %v3675 = vadd.f32 %v3530, %v3674
        %v3676 = vpop.f32.mrb[0].mxu0
        %3677 = vmatprep.mubr.bf16.mxu0 0
        %3678 = vmatmul.mubr.bf16.gmra.mrb[0].mxu0 %v3601
        %v3679 = vpop.f32.mrb[0].mxu0
        %v3680 = vadd.f32 %v3535, %v3679
        %v3681 = vpop.f32.mrb[0].mxu0
        %v3682 = vpop.f32.mrb[0].mxu0
        %v3683 = vadd.f32 %v3538, %v3682
        %v3684 = vpop.f32.mrb[0].mxu0
        %3685 = vmatprep.mubr.bf16.mxu0 0
        %3686 = vmatmul.mubr.bf16.gmra.mrb[0].mxu0 %v3602
        %v3687 = vpop.f32.mrb[0].mxu0
        %v3688 = vadd.f32 %v3543, %v3687
        %v3689 = vpop.f32.mrb[0].mxu0
        %v3690 = vpop.f32.mrb[0].mxu0
        %v3691 = vadd.f32 %v3546, %v3690
        %v3692 = vpop.f32.mrb[0].mxu0
        %3693 = vmatprep.mubr.bf16.mxu0 0
        %3694 = vmatmul.mubr.bf16.gmra.mrb[0].mxu0 %v3603
        %v3695 = vpop.f32.mrb[0].mxu0
        %v3696 = vadd.f32 %v3551, %v3695
        %v3697 = vpop.f32.mrb[0].mxu0
        %v3698 = vpop.f32.mrb[0].mxu0
        %v3699 = vadd.f32 %v3554, %v3698
        %v3700 = vpop.f32.mrb[0].mxu0
        %3701 = vmatprep.mubr.bf16.mxu0 0
        %3702 = vmatmul.mubr.bf16.gmra.mrb[0].mxu0 %v3604
        %v3703 = vpop.f32.mrb[0].mxu0
        %v3704 = vadd.f32 %v3559, %v3703
        %v3705 = vpop.f32.mrb[0].mxu0
        %v3706 = vpop.f32.mrb[0].mxu0
        %v3707 = vadd.f32 %v3562, %v3706
        %v3708 = vpop.f32.mrb[0].mxu0
        %3709 = vdwg.mxu0
        %v3710 = vld [vmem:[#allocation2] sm:$0xe]
        %v3711 = vld [vmem:[#allocation2 + $0xc] sm:$0xe]
        %v3712 = vld [vmem:[#allocation2 + $0x18] sm:$0xe]
        %v3713 = vld [vmem:[#allocation2 + $0x24] sm:$0xe]
        %v3714 = vld [vmem:[#allocation2 + $0x30] sm:$0xe]
        %v3715 = vld [vmem:[#allocation2 + $0x3c] sm:$0xe]
        %v3716 = vld [vmem:[#allocation2 + $0x48] sm:$0xe]
        %v3717 = vld [vmem:[#allocation2 + $0x54] sm:$0xe]
        %vm3734 = vcmask 1042432
        %vm3735 = vcmask 1046532
        %vm3736 = vmor %vm3734, %vm3735
        %v3737 = vrot.slane %v3710, 5
        %v3738 = vrot.slane %v3737, 4
        %v3739 = vrot.slane %v3201, 5
        %v3740 = vsel %vm3736, %v3738, %v3739
        %v3741 = vrot.slane %v3739, 4
        %v3742 = vrot.slane %v3224, 5
        %v3743 = vsel %vm3736, %v3741, %v3742
        %v3744 = vrot.slane %v3711, 5
        %v3745 = vrot.slane %v3744, 4
        %v3746 = vrot.slane %v3203, 5
        %v3747 = vsel %vm3736, %v3745, %v3746
        %v3748 = vrot.slane %v3746, 4
        %v3749 = vrot.slane %v3225, 5
        %v3750 = vsel %vm3736, %v3748, %v3749
        %v3751 = vrot.slane %v3712, 5
        %v3752 = vrot.slane %v3751, 4
        %v3753 = vrot.slane %v3205, 5
        %v3754 = vsel %vm3736, %v3752, %v3753
        %v3755 = vrot.slane %v3753, 4
        %v3756 = vrot.slane %v3226, 5
        %v3757 = vsel %vm3736, %v3755, %v3756
        %v3758 = vrot.slane %v3713, 5
        %v3759 = vrot.slane %v3758, 4
        %v3760 = vrot.slane %v3207, 5
        %v3761 = vsel %vm3736, %v3759, %v3760
        %v3762 = vrot.slane %v3760, 4
        %v3763 = vrot.slane %v3227, 5
        %v3764 = vsel %vm3736, %v3762, %v3763
        %v3765 = vrot.slane %v3714, 5
        %v3766 = vrot.slane %v3765, 4
        %v3767 = vrot.slane %v3209, 5
        %v3768 = vsel %vm3736, %v3766, %v3767
        %v3769 = vrot.slane %v3767, 4
        %v3770 = vrot.slane %v3228, 5
        %v3771 = vsel %vm3736, %v3769, %v3770
        %v3772 = vrot.slane %v3715, 5
        %v3773 = vrot.slane %v3772, 4
        %v3774 = vrot.slane %v3211, 5
        %v3775 = vsel %vm3736, %v3773, %v3774
        %v3776 = vrot.slane %v3774, 4
        %v3777 = vrot.slane %v3229, 5
        %v3778 = vsel %vm3736, %v3776, %v3777
        %v3779 = vrot.slane %v3716, 5
        %v3780 = vrot.slane %v3779, 4
        %v3781 = vrot.slane %v3213, 5
        %v3782 = vsel %vm3736, %v3780, %v3781
        %v3783 = vrot.slane %v3781, 4
        %v3784 = vrot.slane %v3230, 5
        %v3785 = vsel %vm3736, %v3783, %v3784
        %v3786 = vrot.slane %v3717, 5
        %v3787 = vrot.slane %v3786, 4
        %v3788 = vrot.slane %v3215, 5
        %v3789 = vsel %vm3736, %v3787, %v3788
        %v3790 = vrot.slane %v3788, 4
        %v3791 = vrot.slane %v3231, 5
        %v3792 = vsel %vm3736, %v3790, %v3791
        %s3793 = scalar_lea.vmem [#allocation4], 128
        %v3794 = vld [vmem:[%s3793] sm:$0xff]
        %v3795 = vld [vmem:[%s3793 + $0x8] sm:$0xff]
        %v3796 = vld [vmem:[%s3793 + $0x10] sm:$0xff]
        %v3797 = vld [vmem:[%s3793 + $0x18] sm:$0xff]
        %v3798 = vld [vmem:[%s3793 + $0x20] sm:$0xff]
        %v3799 = vld [vmem:[%s3793 + $0x28] sm:$0xff]
        %v3800 = vld [vmem:[%s3793 + $0x30] sm:$0xff]
        %v3801 = vld [vmem:[%s3793 + $0x38] sm:$0xff]
        %v3802 = vunpack.c.l.b16 %v3740
        %v3803 = vunpack.c.l.b16 %v3743
        %v3804 = vunpack.c.l.b16 %v3747
        %v3805 = vunpack.c.l.b16 %v3750
        %v3806 = vunpack.c.l.b16 %v3754
        %v3807 = vunpack.c.l.b16 %v3757
        %v3808 = vunpack.c.l.b16 %v3761
        %v3809 = vunpack.c.l.b16 %v3764
        %v3810 = vunpack.c.l.b16 %v3768
        %v3811 = vunpack.c.l.b16 %v3771
        %v3812 = vunpack.c.l.b16 %v3775
        %v3813 = vunpack.c.l.b16 %v3778
        %v3814 = vunpack.c.l.b16 %v3782
        %v3815 = vunpack.c.l.b16 %v3785
        %v3816 = vunpack.c.l.b16 %v3789
        %v3817 = vunpack.c.l.b16 %v3792
        %v3818 = vpack.c.b16 %v3803, %v3802
        %v3819 = vpack.c.b16 %v3805, %v3804
        %v3820 = vpack.c.b16 %v3807, %v3806
        %v3821 = vpack.c.b16 %v3809, %v3808
        %v3822 = vpack.c.b16 %v3811, %v3810
        %v3823 = vpack.c.b16 %v3813, %v3812
        %v3824 = vpack.c.b16 %v3815, %v3814
        %v3825 = vpack.c.b16 %v3817, %v3816
        %3834 = vmatprep.subr.bf16.mxu0 0
        %3835 = vmatpush1.bf16.msra.mxu0 %v3794
        %3836 = vmatprep.subr.bf16.mxu0 0
        %3837 = vmatpush1.bf16.msra.mxu0 %v3795
        %3838 = vmatprep.subr.bf16.mxu0 0
        %3839 = vmatpush1.bf16.msra.mxu0 %v3796
        %3840 = vmatprep.subr.bf16.mxu0 0
        %3841 = vmatpush1.bf16.msra.mxu0 %v3797
        %3842 = vmatprep.subr.bf16.mxu0 0
        %3843 = vmatpush1.bf16.msra.mxu0 %v3798
        %3844 = vmatprep.subr.bf16.mxu0 0
        %3845 = vmatpush1.bf16.msra.mxu0 %v3799
        %3846 = vmatprep.subr.bf16.mxu0 0
        %3847 = vmatpush1.bf16.msra.mxu0 %v3800
        %3848 = vmatprep.subr.bf16.mxu0 0
        %3849 = vmatpush1.bf16.msra.mxu0 %v3801
        %3850 = vmatprep.subr.bf16.mxu0 0
        %3851 = vmatpush1.bf16.msra.mxu0 0
        %3852 = vmatprep.subr.bf16.mxu0 0
        %3853 = vmatpush1.bf16.msra.mxu0 0
        %3854 = vmatprep.subr.bf16.mxu0 0
        %3855 = vmatpush1.bf16.msra.mxu0 0
        %3856 = vmatprep.subr.bf16.mxu0 0
        %3857 = vmatpush1.bf16.msra.mxu0 0
        %3858 = vmatprep.subr.bf16.mxu0 0
        %3859 = vmatpush1.bf16.msra.mxu0 0
        %3860 = vmatprep.subr.bf16.mxu0 0
        %3861 = vmatpush1.bf16.msra.mxu0 0
        %3862 = vmatprep.subr.bf16.mxu0 0
        %3863 = vmatpush1.bf16.msra.mxu0 0
        %3864 = vmatprep.subr.bf16.mxu0 0
        %3865 = vmatpush1.bf16.msra.mxu0 0
        %3866 = vmatprep.mubr.bf16.mxu0 0
        %3867 = vmatmul.mubr.bf16.gmra.mrb[0].mxu0 %v3818
        %v3868 = vpop.f32.mrb[0].mxu0
        %v3869 = vadd.f32 0.0, %v3868
        %v3870 = vpop.f32.mrb[0].mxu0
        %v3871 = vpop.f32.mrb[0].mxu0
        %v3872 = vadd.f32 0.0, %v3871
        %v3873 = vpop.f32.mrb[0].mxu0
        %3874 = vmatprep.mubr.bf16.mxu0 0
        %3875 = vmatmul.mubr.bf16.gmra.mrb[0].mxu0 %v3819
        %v3876 = vpop.f32.mrb[0].mxu0
        %v3877 = vadd.f32 0.0, %v3876
        %v3878 = vpop.f32.mrb[0].mxu0
        %v3879 = vpop.f32.mrb[0].mxu0
        %v3880 = vadd.f32 0.0, %v3879
        %v3881 = vpop.f32.mrb[0].mxu0
        %3882 = vmatprep.mubr.bf16.mxu0 0
        %3883 = vmatmul.mubr.bf16.gmra.mrb[0].mxu0 %v3820
        %v3884 = vpop.f32.mrb[0].mxu0
        %v3885 = vadd.f32 0.0, %v3884
        %v3886 = vpop.f32.mrb[0].mxu0
        %v3887 = vpop.f32.mrb[0].mxu0
        %v3888 = vadd.f32 0.0, %v3887
        %v3889 = vpop.f32.mrb[0].mxu0
        %3890 = vmatprep.mubr.bf16.mxu0 0
        %3891 = vmatmul.mubr.bf16.gmra.mrb[0].mxu0 %v3821
        %v3892 = vpop.f32.mrb[0].mxu0
        %v3893 = vadd.f32 0.0, %v3892
        %v3894 = vpop.f32.mrb[0].mxu0
        %v3895 = vpop.f32.mrb[0].mxu0
        %v3896 = vadd.f32 0.0, %v3895
        %v3897 = vpop.f32.mrb[0].mxu0
        %3898 = vmatprep.mubr.bf16.mxu0 0
        %3899 = vmatmul.mubr.bf16.gmra.mrb[0].mxu0 %v3822
        %v3900 = vpop.f32.mrb[0].mxu0
        %v3901 = vadd.f32 0.0, %v3900
        %v3902 = vpop.f32.mrb[0].mxu0
        %v3903 = vpop.f32.mrb[0].mxu0
        %v3904 = vadd.f32 0.0, %v3903
        %v3905 = vpop.f32.mrb[0].mxu0
        %3906 = vmatprep.mubr.bf16.mxu0 0
        %3907 = vmatmul.mubr.bf16.gmra.mrb[0].mxu0 %v3823
        %v3908 = vpop.f32.mrb[0].mxu0
        %v3909 = vadd.f32 0.0, %v3908
        %v3910 = vpop.f32.mrb[0].mxu0
        %v3911 = vpop.f32.mrb[0].mxu0
        %v3912 = vadd.f32 0.0, %v3911
        %v3913 = vpop.f32.mrb[0].mxu0
        %3914 = vmatprep.mubr.bf16.mxu0 0
        %3915 = vmatmul.mubr.bf16.gmra.mrb[0].mxu0 %v3824
        %v3916 = vpop.f32.mrb[0].mxu0
        %v3917 = vadd.f32 0.0, %v3916
        %v3918 = vpop.f32.mrb[0].mxu0
        %v3919 = vpop.f32.mrb[0].mxu0
        %v3920 = vadd.f32 0.0, %v3919
        %v3921 = vpop.f32.mrb[0].mxu0
        %3922 = vmatprep.mubr.bf16.mxu0 0
        %3923 = vmatmul.mubr.bf16.gmra.mrb[0].mxu0 %v3825
        %v3924 = vpop.f32.mrb[0].mxu0
        %v3925 = vadd.f32 0.0, %v3924
        %v3926 = vpop.f32.mrb[0].mxu0
        %v3927 = vpop.f32.mrb[0].mxu0
        %v3928 = vadd.f32 0.0, %v3927
        %v3929 = vpop.f32.mrb[0].mxu0
        %3930 = vdwg.mxu0
        %v3931 = vadd.f32 %v3648, %v3869
        %v3932 = vadd.f32 %v3651, %v3872
        %v3933 = vadd.f32 %v3656, %v3877
        %v3934 = vadd.f32 %v3659, %v3880
        %v3935 = vadd.f32 %v3664, %v3885
        %v3936 = vadd.f32 %v3667, %v3888
        %v3937 = vadd.f32 %v3672, %v3893
        %v3938 = vadd.f32 %v3675, %v3896
        %v3939 = vadd.f32 %v3680, %v3901
        %v3940 = vadd.f32 %v3683, %v3904
        %v3941 = vadd.f32 %v3688, %v3909
        %v3942 = vadd.f32 %v3691, %v3912
        %v3943 = vadd.f32 %v3696, %v3917
        %v3944 = vadd.f32 %v3699, %v3920
        %v3945 = vadd.f32 %v3704, %v3925
        %v3946 = vadd.f32 %v3707, %v3928
        %s3947 = scalar_lea.vmem [#allocation2], 12
        %v3948 = vld [vmem:[%s3947] sm:$0xf]
        %v3949 = vld [vmem:[%s3947 + $0x4] sm:$0xf]
        %v3950 = vld [vmem:[%s3947 + $0xc] sm:$0xf]
        %v3951 = vld [vmem:[%s3947 + $0x10] sm:$0xf]
        %v3952 = vld [vmem:[%s3947 + $0x18] sm:$0xf]
        %v3953 = vld [vmem:[%s3947 + $0x1c] sm:$0xf]
        %v3954 = vld [vmem:[%s3947 + $0x24] sm:$0xf]
        %v3955 = vld [vmem:[%s3947 + $0x28] sm:$0xf]
        %v3956 = vld [vmem:[%s3947 + $0x30] sm:$0xf]
        %v3957 = vld [vmem:[%s3947 + $0x34] sm:$0xf]
        %v3958 = vld [vmem:[%s3947 + $0x3c] sm:$0xf]
        %v3959 = vld [vmem:[%s3947 + $0x40] sm:$0xf]
        %v3960 = vld [vmem:[%s3947 + $0x48] sm:$0xf]
        %v3961 = vld [vmem:[%s3947 + $0x4c] sm:$0xf]
        %v3962 = vld [vmem:[%s3947 + $0x54] sm:$0xf]
        %v3963 = vld [vmem:[%s3947 + $0x58] sm:$0xf]
        %s3964 = scalar_lea.vmem [#allocation4], 192
        %v3965 = vld [vmem:[%s3964] sm:$0xff]
        %v3966 = vld [vmem:[%s3964 + $0x8] sm:$0xff]
        %v3967 = vld [vmem:[%s3964 + $0x10] sm:$0xff]
        %v3968 = vld [vmem:[%s3964 + $0x18] sm:$0xff]
        %v3969 = vld [vmem:[%s3964 + $0x20] sm:$0xff]
        %v3970 = vld [vmem:[%s3964 + $0x28] sm:$0xff]
        %v3971 = vld [vmem:[%s3964 + $0x30] sm:$0xff]
        %v3972 = vld [vmem:[%s3964 + $0x38] sm:$0xff]
        %v3989 = vunpack.c.l.b16 %v3948
        %v3990 = vunpack.c.l.b16 %v3949
        %v3991 = vunpack.c.l.b16 %v3950
        %v3992 = vunpack.c.l.b16 %v3951
        %v3993 = vunpack.c.l.b16 %v3952
        %v3994 = vunpack.c.l.b16 %v3953
        %v3995 = vunpack.c.l.b16 %v3954
        %v3996 = vunpack.c.l.b16 %v3955
        %v3997 = vunpack.c.l.b16 %v3956
        %v3998 = vunpack.c.l.b16 %v3957
        %v3999 = vunpack.c.l.b16 %v3958
        %v4000 = vunpack.c.l.b16 %v3959
        %v4001 = vunpack.c.l.b16 %v3960
        %v4002 = vunpack.c.l.b16 %v3961
        %v4003 = vunpack.c.l.b16 %v3962
        %v4004 = vunpack.c.l.b16 %v3963
        %v4005 = vpack.c.b16 %v3990, %v3989
        %v4006 = vpack.c.b16 %v3992, %v3991
        %v4007 = vpack.c.b16 %v3994, %v3993
        %v4008 = vpack.c.b16 %v3996, %v3995
        %v4009 = vpack.c.b16 %v3998, %v3997
        %v4010 = vpack.c.b16 %v4000, %v3999
        %v4011 = vpack.c.b16 %v4002, %v4001
        %v4012 = vpack.c.b16 %v4004, %v4003
        %4021 = vmatprep.subr.bf16.mxu0 0
        %4022 = vmatpush1.bf16.msra.mxu0 %v3965
        %4023 = vmatprep.subr.bf16.mxu0 0
        %4024 = vmatpush1.bf16.msra.mxu0 %v3966
        %4025 = vmatprep.subr.bf16.mxu0 0
        %4026 = vmatpush1.bf16.msra.mxu0 %v3967
        %4027 = vmatprep.subr.bf16.mxu0 0
        %4028 = vmatpush1.bf16.msra.mxu0 %v3968
        %4029 = vmatprep.subr.bf16.mxu0 0
        %4030 = vmatpush1.bf16.msra.mxu0 %v3969
        %4031 = vmatprep.subr.bf16.mxu0 0
        %4032 = vmatpush1.bf16.msra.mxu0 %v3970
        %4033 = vmatprep.subr.bf16.mxu0 0
        %4034 = vmatpush1.bf16.msra.mxu0 %v3971
        %4035 = vmatprep.subr.bf16.mxu0 0
        %4036 = vmatpush1.bf16.msra.mxu0 %v3972
        %4037 = vmatprep.subr.bf16.mxu0 0
        %4038 = vmatpush1.bf16.msra.mxu0 0
        %4039 = vmatprep.subr.bf16.mxu0 0
        %4040 = vmatpush1.bf16.msra.mxu0 0
        %4041 = vmatprep.subr.bf16.mxu0 0
        %4042 = vmatpush1.bf16.msra.mxu0 0
        %4043 = vmatprep.subr.bf16.mxu0 0
        %4044 = vmatpush1.bf16.msra.mxu0 0
        %4045 = vmatprep.subr.bf16.mxu0 0
        %4046 = vmatpush1.bf16.msra.mxu0 0
        %4047 = vmatprep.subr.bf16.mxu0 0
        %4048 = vmatpush1.bf16.msra.mxu0 0
        %4049 = vmatprep.subr.bf16.mxu0 0
        %4050 = vmatpush1.bf16.msra.mxu0 0
        %4051 = vmatprep.subr.bf16.mxu0 0
        %4052 = vmatpush1.bf16.msra.mxu0 0
        %4053 = vmatprep.mubr.bf16.mxu0 0
        %4054 = vmatmul.mubr.bf16.gmra.mrb[0].mxu0 %v4005
        %v4055 = vpop.f32.mrb[0].mxu0
        %v4056 = vadd.f32 0.0, %v4055
        %v4057 = vpop.f32.mrb[0].mxu0
        %v4058 = vpop.f32.mrb[0].mxu0
        %v4059 = vadd.f32 0.0, %v4058
        %v4060 = vpop.f32.mrb[0].mxu0
        %4061 = vmatprep.mubr.bf16.mxu0 0
        %4062 = vmatmul.mubr.bf16.gmra.mrb[0].mxu0 %v4006
        %v4063 = vpop.f32.mrb[0].mxu0
        %v4064 = vadd.f32 0.0, %v4063
        %v4065 = vpop.f32.mrb[0].mxu0
        %v4066 = vpop.f32.mrb[0].mxu0
        %v4067 = vadd.f32 0.0, %v4066
        %v4068 = vpop.f32.mrb[0].mxu0
        %4069 = vmatprep.mubr.bf16.mxu0 0
        %4070 = vmatmul.mubr.bf16.gmra.mrb[0].mxu0 %v4007
        %v4071 = vpop.f32.mrb[0].mxu0
        %v4072 = vadd.f32 0.0, %v4071
        %v4073 = vpop.f32.mrb[0].mxu0
        %v4074 = vpop.f32.mrb[0].mxu0
        %v4075 = vadd.f32 0.0, %v4074
        %v4076 = vpop.f32.mrb[0].mxu0
        %4077 = vmatprep.mubr.bf16.mxu0 0
        %4078 = vmatmul.mubr.bf16.gmra.mrb[0].mxu0 %v4008
        %v4079 = vpop.f32.mrb[0].mxu0
        %v4080 = vadd.f32 0.0, %v4079
        %v4081 = vpop.f32.mrb[0].mxu0
        %v4082 = vpop.f32.mrb[0].mxu0
        %v4083 = vadd.f32 0.0, %v4082
        %v4084 = vpop.f32.mrb[0].mxu0
        %4085 = vmatprep.mubr.bf16.mxu0 0
        %4086 = vmatmul.mubr.bf16.gmra.mrb[0].mxu0 %v4009
        %v4087 = vpop.f32.mrb[0].mxu0
        %v4088 = vadd.f32 0.0, %v4087
        %v4089 = vpop.f32.mrb[0].mxu0
        %v4090 = vpop.f32.mrb[0].mxu0
        %v4091 = vadd.f32 0.0, %v4090
        %v4092 = vpop.f32.mrb[0].mxu0
        %4093 = vmatprep.mubr.bf16.mxu0 0
        %4094 = vmatmul.mubr.bf16.gmra.mrb[0].mxu0 %v4010
        %v4095 = vpop.f32.mrb[0].mxu0
        %v4096 = vadd.f32 0.0, %v4095
        %v4097 = vpop.f32.mrb[0].mxu0
        %v4098 = vpop.f32.mrb[0].mxu0
        %v4099 = vadd.f32 0.0, %v4098
        %v4100 = vpop.f32.mrb[0].mxu0
        %4101 = vmatprep.mubr.bf16.mxu0 0
        %4102 = vmatmul.mubr.bf16.gmra.mrb[0].mxu0 %v4011
        %v4103 = vpop.f32.mrb[0].mxu0
        %v4104 = vadd.f32 0.0, %v4103
        %v4105 = vpop.f32.mrb[0].mxu0
        %v4106 = vpop.f32.mrb[0].mxu0
        %v4107 = vadd.f32 0.0, %v4106
        %v4108 = vpop.f32.mrb[0].mxu0
        %4109 = vmatprep.mubr.bf16.mxu0 0
        %4110 = vmatmul.mubr.bf16.gmra.mrb[0].mxu0 %v4012
        %v4111 = vpop.f32.mrb[0].mxu0
        %v4112 = vadd.f32 0.0, %v4111
        %v4113 = vpop.f32.mrb[0].mxu0
        %v4114 = vpop.f32.mrb[0].mxu0
        %v4115 = vadd.f32 0.0, %v4114
        %v4116 = vpop.f32.mrb[0].mxu0
        %4117 = vdwg.mxu0
        %v4118 = vadd.f32 %v3931, %v4056
        %v4119 = vadd.f32 %v3932, %v4059
        %v4120 = vadd.f32 %v3933, %v4064
        %v4121 = vadd.f32 %v3934, %v4067
        %v4122 = vadd.f32 %v3935, %v4072
        %v4123 = vadd.f32 %v3936, %v4075
        %v4124 = vadd.f32 %v3937, %v4080
        %v4125 = vadd.f32 %v3938, %v4083
        %v4126 = vadd.f32 %v3939, %v4088
        %v4127 = vadd.f32 %v3940, %v4091
        %v4128 = vadd.f32 %v3941, %v4096
        %v4129 = vadd.f32 %v3942, %v4099
        %v4130 = vadd.f32 %v3943, %v4104
        %v4131 = vadd.f32 %v3944, %v4107
        %v4132 = vadd.f32 %v3945, %v4112
        %v4133 = vadd.f32 %v3946, %v4115
        %v4134 = vld [vmem:[%s3947] sm:$0xf]
        %v4135 = vld [vmem:[%s3947 + $0x4] sm:$0xf]
        %v4136 = vld [vmem:[%s3947 + $0x8] sm:$0x1]
        %v4137 = vld [vmem:[%s3947 + $0xc] sm:$0xf]
        %v4138 = vld [vmem:[%s3947 + $0x10] sm:$0xf]
        %v4139 = vld [vmem:[%s3947 + $0x14] sm:$0x1]
        %v4140 = vld [vmem:[%s3947 + $0x18] sm:$0xf]
        %v4141 = vld [vmem:[%s3947 + $0x1c] sm:$0xf]
        %v4142 = vld [vmem:[%s3947 + $0x20] sm:$0x1]
        %v4143 = vld [vmem:[%s3947 + $0x24] sm:$0xf]
        %v4144 = vld [vmem:[%s3947 + $0x28] sm:$0xf]
        %v4145 = vld [vmem:[%s3947 + $0x2c] sm:$0x1]
        %v4146 = vld [vmem:[%s3947 + $0x30] sm:$0xf]
        %v4147 = vld [vmem:[%s3947 + $0x34] sm:$0xf]
        %v4148 = vld [vmem:[%s3947 + $0x38] sm:$0x1]
        %v4149 = vld [vmem:[%s3947 + $0x3c] sm:$0xf]
        %v4150 = vld [vmem:[%s3947 + $0x40] sm:$0xf]
        %v4151 = vld [vmem:[%s3947 + $0x44] sm:$0x1]
        %v4152 = vld [vmem:[%s3947 + $0x48] sm:$0xf]
        %v4153 = vld [vmem:[%s3947 + $0x4c] sm:$0xf]
        %v4154 = vld [vmem:[%s3947 + $0x50] sm:$0x1]
        %v4155 = vld [vmem:[%s3947 + $0x54] sm:$0xf]
        %v4156 = vld [vmem:[%s3947 + $0x58] sm:$0xf]
        %v4157 = vld [vmem:[%s3947 + $0x5c] sm:$0x1]
        %v4159 = vshrl.u32 %v4134, 16
        %v4161 = vrot.slane %v4159, 4
        %v4162 = vshll.u32 %v4134, 16
        %v4164 = vrot.slane %v4162, 5
        %v4165 = vor.u32 %v4161, %v4164
        %v4166 = vrot.slane %v4165, 4
        %v4168 = vshll.u32 %v4135, 16
        %v4170 = vrot.slane %v4168, 5
        %v4171 = vsel %vm3234, %v4166, %v4170
        %v4172 = vshrl.u32 %v4135, 16
        %v4174 = vrot.slane %v4172, 4
        %v4175 = vor.u32 %v4174, %v4170
        %v4176 = vrot.slane %v4175, 4
        %v4178 = vshll.u32 %v4136, 16
        %v4180 = vrot.slane %v4178, 5
        %v4181 = vsel %vm3234, %v4176, %v4180
        %v4183 = vshrl.u32 %v4137, 16
        %v4185 = vrot.slane %v4183, 4
        %v4186 = vshll.u32 %v4137, 16
        %v4188 = vrot.slane %v4186, 5
        %v4189 = vor.u32 %v4185, %v4188
        %v4190 = vrot.slane %v4189, 4
        %v4192 = vshll.u32 %v4138, 16
        %v4194 = vrot.slane %v4192, 5
        %v4195 = vsel %vm3234, %v4190, %v4194
        %v4196 = vshrl.u32 %v4138, 16
        %v4198 = vrot.slane %v4196, 4
        %v4199 = vor.u32 %v4198, %v4194
        %v4200 = vrot.slane %v4199, 4
        %v4202 = vshll.u32 %v4139, 16
        %v4204 = vrot.slane %v4202, 5
        %v4205 = vsel %vm3234, %v4200, %v4204
        %v4207 = vshrl.u32 %v4140, 16
        %v4209 = vrot.slane %v4207, 4
        %v4210 = vshll.u32 %v4140, 16
        %v4212 = vrot.slane %v4210, 5
        %v4213 = vor.u32 %v4209, %v4212
        %v4214 = vrot.slane %v4213, 4
        %v4216 = vshll.u32 %v4141, 16
        %v4218 = vrot.slane %v4216, 5
        %v4219 = vsel %vm3234, %v4214, %v4218
        %v4220 = vshrl.u32 %v4141, 16
        %v4222 = vrot.slane %v4220, 4
        %v4223 = vor.u32 %v4222, %v4218
        %v4224 = vrot.slane %v4223, 4
        %v4226 = vshll.u32 %v4142, 16
        %v4228 = vrot.slane %v4226, 5
        %v4229 = vsel %vm3234, %v4224, %v4228
        %v4231 = vshrl.u32 %v4143, 16
        %v4233 = vrot.slane %v4231, 4
        %v4234 = vshll.u32 %v4143, 16
        %v4236 = vrot.slane %v4234, 5
        %v4237 = vor.u32 %v4233, %v4236
        %v4238 = vrot.slane %v4237, 4
        %v4240 = vshll.u32 %v4144, 16
        %v4242 = vrot.slane %v4240, 5
        %v4243 = vsel %vm3234, %v4238, %v4242
        %v4244 = vshrl.u32 %v4144, 16
        %v4246 = vrot.slane %v4244, 4
        %v4247 = vor.u32 %v4246, %v4242
        %v4248 = vrot.slane %v4247, 4
        %v4250 = vshll.u32 %v4145, 16
        %v4252 = vrot.slane %v4250, 5
        %v4253 = vsel %vm3234, %v4248, %v4252
        %v4255 = vshrl.u32 %v4146, 16
        %v4257 = vrot.slane %v4255, 4
        %v4258 = vshll.u32 %v4146, 16
        %v4260 = vrot.slane %v4258, 5
        %v4261 = vor.u32 %v4257, %v4260
        %v4262 = vrot.slane %v4261, 4
        %v4264 = vshll.u32 %v4147, 16
        %v4266 = vrot.slane %v4264, 5
        %v4267 = vsel %vm3234, %v4262, %v4266
        %v4268 = vshrl.u32 %v4147, 16
        %v4270 = vrot.slane %v4268, 4
        %v4271 = vor.u32 %v4270, %v4266
        %v4272 = vrot.slane %v4271, 4
        %v4274 = vshll.u32 %v4148, 16
        %v4276 = vrot.slane %v4274, 5
        %v4277 = vsel %vm3234, %v4272, %v4276
        %v4279 = vshrl.u32 %v4149, 16
        %v4281 = vrot.slane %v4279, 4
        %v4282 = vshll.u32 %v4149, 16
        %v4284 = vrot.slane %v4282, 5
        %v4285 = vor.u32 %v4281, %v4284
        %v4286 = vrot.slane %v4285, 4
        %v4288 = vshll.u32 %v4150, 16
        %v4290 = vrot.slane %v4288, 5
        %v4291 = vsel %vm3234, %v4286, %v4290
        %v4292 = vshrl.u32 %v4150, 16
        %v4294 = vrot.slane %v4292, 4
        %v4295 = vor.u32 %v4294, %v4290
        %v4296 = vrot.slane %v4295, 4
        %v4298 = vshll.u32 %v4151, 16
        %v4300 = vrot.slane %v4298, 5
        %v4301 = vsel %vm3234, %v4296, %v4300
        %v4303 = vshrl.u32 %v4152, 16
        %v4305 = vrot.slane %v4303, 4
        %v4306 = vshll.u32 %v4152, 16
        %v4308 = vrot.slane %v4306, 5
        %v4309 = vor.u32 %v4305, %v4308
        %v4310 = vrot.slane %v4309, 4
        %v4312 = vshll.u32 %v4153, 16
        %v4314 = vrot.slane %v4312, 5
        %v4315 = vsel %vm3234, %v4310, %v4314
        %v4316 = vshrl.u32 %v4153, 16
        %v4318 = vrot.slane %v4316, 4
        %v4319 = vor.u32 %v4318, %v4314
        %v4320 = vrot.slane %v4319, 4
        %v4322 = vshll.u32 %v4154, 16
        %v4324 = vrot.slane %v4322, 5
        %v4325 = vsel %vm3234, %v4320, %v4324
        %v4327 = vshrl.u32 %v4155, 16
        %v4329 = vrot.slane %v4327, 4
        %v4330 = vshll.u32 %v4155, 16
        %v4332 = vrot.slane %v4330, 5
        %v4333 = vor.u32 %v4329, %v4332
        %v4334 = vrot.slane %v4333, 4
        %v4336 = vshll.u32 %v4156, 16
        %v4338 = vrot.slane %v4336, 5
        %v4339 = vsel %vm3234, %v4334, %v4338
        %v4340 = vshrl.u32 %v4156, 16
        %v4342 = vrot.slane %v4340, 4
        %v4343 = vor.u32 %v4342, %v4338
        %v4344 = vrot.slane %v4343, 4
        %v4346 = vshll.u32 %v4157, 16
        %v4348 = vrot.slane %v4346, 5
        %v4349 = vsel %vm3234, %v4344, %v4348
        %s4350 = scalar_lea.vmem [#allocation4], 256
        %v4351 = vld [vmem:[%s4350] sm:$0xff]
        %v4352 = vld [vmem:[%s4350 + $0x8] sm:$0xff]
        %v4353 = vld [vmem:[%s4350 + $0x10] sm:$0xff]
        %v4354 = vld [vmem:[%s4350 + $0x18] sm:$0xff]
        %v4355 = vld [vmem:[%s4350 + $0x20] sm:$0xff]
        %v4356 = vld [vmem:[%s4350 + $0x28] sm:$0xff]
        %v4357 = vld [vmem:[%s4350 + $0x30] sm:$0xff]
        %v4358 = vld [vmem:[%s4350 + $0x38] sm:$0xff]
        %v4359 = vunpack.c.l.b16 %v4171
        %v4360 = vunpack.c.l.b16 %v4181
        %v4361 = vunpack.c.l.b16 %v4195
        %v4362 = vunpack.c.l.b16 %v4205
        %v4363 = vunpack.c.l.b16 %v4219
        %v4364 = vunpack.c.l.b16 %v4229
        %v4365 = vunpack.c.l.b16 %v4243
        %v4366 = vunpack.c.l.b16 %v4253
        %v4367 = vunpack.c.l.b16 %v4267
        %v4368 = vunpack.c.l.b16 %v4277
        %v4369 = vunpack.c.l.b16 %v4291
        %v4370 = vunpack.c.l.b16 %v4301
        %v4371 = vunpack.c.l.b16 %v4315
        %v4372 = vunpack.c.l.b16 %v4325
        %v4373 = vunpack.c.l.b16 %v4339
        %v4374 = vunpack.c.l.b16 %v4349
        %v4375 = vpack.c.b16 %v4360, %v4359
        %v4376 = vpack.c.b16 %v4362, %v4361
        %v4377 = vpack.c.b16 %v4364, %v4363
        %v4378 = vpack.c.b16 %v4366, %v4365
        %v4379 = vpack.c.b16 %v4368, %v4367
        %v4380 = vpack.c.b16 %v4370, %v4369
        %v4381 = vpack.c.b16 %v4372, %v4371
        %v4382 = vpack.c.b16 %v4374, %v4373
        %4391 = vmatprep.subr.bf16.mxu0 0
        %4392 = vmatpush1.bf16.msra.mxu0 %v4351
        %4393 = vmatprep.subr.bf16.mxu0 0
        %4394 = vmatpush1.bf16.msra.mxu0 %v4352
        %4395 = vmatprep.subr.bf16.mxu0 0
        %4396 = vmatpush1.bf16.msra.mxu0 %v4353
        %4397 = vmatprep.subr.bf16.mxu0 0
        %4398 = vmatpush1.bf16.msra.mxu0 %v4354
        %4399 = vmatprep.subr.bf16.mxu0 0
        %4400 = vmatpush1.bf16.msra.mxu0 %v4355
        %4401 = vmatprep.subr.bf16.mxu0 0
        %4402 = vmatpush1.bf16.msra.mxu0 %v4356
        %4403 = vmatprep.subr.bf16.mxu0 0
        %4404 = vmatpush1.bf16.msra.mxu0 %v4357
        %4405 = vmatprep.subr.bf16.mxu0 0
        %4406 = vmatpush1.bf16.msra.mxu0 %v4358
        %4407 = vmatprep.subr.bf16.mxu0 0
        %4408 = vmatpush1.bf16.msra.mxu0 0
        %4409 = vmatprep.subr.bf16.mxu0 0
        %4410 = vmatpush1.bf16.msra.mxu0 0
        %4411 = vmatprep.subr.bf16.mxu0 0
        %4412 = vmatpush1.bf16.msra.mxu0 0
        %4413 = vmatprep.subr.bf16.mxu0 0
        %4414 = vmatpush1.bf16.msra.mxu0 0
        %4415 = vmatprep.subr.bf16.mxu0 0
        %4416 = vmatpush1.bf16.msra.mxu0 0
        %4417 = vmatprep.subr.bf16.mxu0 0
        %4418 = vmatpush1.bf16.msra.mxu0 0
        %4419 = vmatprep.subr.bf16.mxu0 0
        %4420 = vmatpush1.bf16.msra.mxu0 0
        %4421 = vmatprep.subr.bf16.mxu0 0
        %4422 = vmatpush1.bf16.msra.mxu0 0
        %4423 = vmatprep.mubr.bf16.mxu0 0
        %4424 = vmatmul.mubr.bf16.gmra.mrb[0].mxu0 %v4375
        %v4425 = vpop.f32.mrb[0].mxu0
        %v4426 = vadd.f32 0.0, %v4425
        %v4427 = vpop.f32.mrb[0].mxu0
        %v4428 = vpop.f32.mrb[0].mxu0
        %v4429 = vadd.f32 0.0, %v4428
        %v4430 = vpop.f32.mrb[0].mxu0
        %4431 = vmatprep.mubr.bf16.mxu0 0
        %4432 = vmatmul.mubr.bf16.gmra.mrb[0].mxu0 %v4376
        %v4433 = vpop.f32.mrb[0].mxu0
        %v4434 = vadd.f32 0.0, %v4433
        %v4435 = vpop.f32.mrb[0].mxu0
        %v4436 = vpop.f32.mrb[0].mxu0
        %v4437 = vadd.f32 0.0, %v4436
        %v4438 = vpop.f32.mrb[0].mxu0
        %4439 = vmatprep.mubr.bf16.mxu0 0
        %4440 = vmatmul.mubr.bf16.gmra.mrb[0].mxu0 %v4377
        %v4441 = vpop.f32.mrb[0].mxu0
        %v4442 = vadd.f32 0.0, %v4441
        %v4443 = vpop.f32.mrb[0].mxu0
        %v4444 = vpop.f32.mrb[0].mxu0
        %v4445 = vadd.f32 0.0, %v4444
        %v4446 = vpop.f32.mrb[0].mxu0
        %4447 = vmatprep.mubr.bf16.mxu0 0
        %4448 = vmatmul.mubr.bf16.gmra.mrb[0].mxu0 %v4378
        %v4449 = vpop.f32.mrb[0].mxu0
        %v4450 = vadd.f32 0.0, %v4449
        %v4451 = vpop.f32.mrb[0].mxu0
        %v4452 = vpop.f32.mrb[0].mxu0
        %v4453 = vadd.f32 0.0, %v4452
        %v4454 = vpop.f32.mrb[0].mxu0
        %4455 = vmatprep.mubr.bf16.mxu0 0
        %4456 = vmatmul.mubr.bf16.gmra.mrb[0].mxu0 %v4379
        %v4457 = vpop.f32.mrb[0].mxu0
        %v4458 = vadd.f32 0.0, %v4457
        %v4459 = vpop.f32.mrb[0].mxu0
        %v4460 = vpop.f32.mrb[0].mxu0
        %v4461 = vadd.f32 0.0, %v4460
        %v4462 = vpop.f32.mrb[0].mxu0
        %4463 = vmatprep.mubr.bf16.mxu0 0
        %4464 = vmatmul.mubr.bf16.gmra.mrb[0].mxu0 %v4380
        %v4465 = vpop.f32.mrb[0].mxu0
        %v4466 = vadd.f32 0.0, %v4465
        %v4467 = vpop.f32.mrb[0].mxu0
        %v4468 = vpop.f32.mrb[0].mxu0
        %v4469 = vadd.f32 0.0, %v4468
        %v4470 = vpop.f32.mrb[0].mxu0
        %4471 = vmatprep.mubr.bf16.mxu0 0
        %4472 = vmatmul.mubr.bf16.gmra.mrb[0].mxu0 %v4381
        %v4473 = vpop.f32.mrb[0].mxu0
        %v4474 = vadd.f32 0.0, %v4473
        %v4475 = vpop.f32.mrb[0].mxu0
        %v4476 = vpop.f32.mrb[0].mxu0
        %v4477 = vadd.f32 0.0, %v4476
        %v4478 = vpop.f32.mrb[0].mxu0
        %4479 = vmatprep.mubr.bf16.mxu0 0
        %4480 = vmatmul.mubr.bf16.gmra.mrb[0].mxu0 %v4382
        %v4481 = vpop.f32.mrb[0].mxu0
        %v4482 = vadd.f32 0.0, %v4481
        %v4483 = vpop.f32.mrb[0].mxu0
        %v4484 = vpop.f32.mrb[0].mxu0
        %v4485 = vadd.f32 0.0, %v4484
        %v4486 = vpop.f32.mrb[0].mxu0
        %4487 = vdwg.mxu0
        %v4488 = vadd.f32 %v4118, %v4426
        %v4489 = vadd.f32 %v4119, %v4429
        %v4490 = vadd.f32 %v4120, %v4434
        %v4491 = vadd.f32 %v4121, %v4437
        %v4492 = vadd.f32 %v4122, %v4442
        %v4493 = vadd.f32 %v4123, %v4445
        %v4494 = vadd.f32 %v4124, %v4450
        %v4495 = vadd.f32 %v4125, %v4453
        %v4496 = vadd.f32 %v4126, %v4458
        %v4497 = vadd.f32 %v4127, %v4461
        %v4498 = vadd.f32 %v4128, %v4466
        %v4499 = vadd.f32 %v4129, %v4469
        %v4500 = vadd.f32 %v4130, %v4474
        %v4501 = vadd.f32 %v4131, %v4477
        %v4502 = vadd.f32 %v4132, %v4482
        %v4503 = vadd.f32 %v4133, %v4485
        %v4504 = vld [vmem:[%s3947] sm:$0xe]
        %v4505 = vld [vmem:[%s3947 + $0xc] sm:$0xe]
        %v4506 = vld [vmem:[%s3947 + $0x18] sm:$0xe]
        %v4507 = vld [vmem:[%s3947 + $0x24] sm:$0xe]
        %v4508 = vld [vmem:[%s3947 + $0x30] sm:$0xe]
        %v4509 = vld [vmem:[%s3947 + $0x3c] sm:$0xe]
        %v4510 = vld [vmem:[%s3947 + $0x48] sm:$0xe]
        %v4511 = vld [vmem:[%s3947 + $0x54] sm:$0xe]
        %v4536 = vrot.slane %v4504, 5
        %v4537 = vrot.slane %v4536, 4
        %v4538 = vrot.slane %v4135, 5
        %v4539 = vsel %vm3736, %v4537, %v4538
        %v4540 = vrot.slane %v4538, 4
        %v4541 = vrot.slane %v4136, 5
        %v4542 = vsel %vm3736, %v4540, %v4541
        %v4543 = vrot.slane %v4505, 5
        %v4544 = vrot.slane %v4543, 4
        %v4545 = vrot.slane %v4138, 5
        %v4546 = vsel %vm3736, %v4544, %v4545
        %v4547 = vrot.slane %v4545, 4
        %v4548 = vrot.slane %v4139, 5
        %v4549 = vsel %vm3736, %v4547, %v4548
        %v4550 = vrot.slane %v4506, 5
        %v4551 = vrot.slane %v4550, 4
        %v4552 = vrot.slane %v4141, 5
        %v4553 = vsel %vm3736, %v4551, %v4552
        %v4554 = vrot.slane %v4552, 4
        %v4555 = vrot.slane %v4142, 5
        %v4556 = vsel %vm3736, %v4554, %v4555
        %v4557 = vrot.slane %v4507, 5
        %v4558 = vrot.slane %v4557, 4
        %v4559 = vrot.slane %v4144, 5
        %v4560 = vsel %vm3736, %v4558, %v4559
        %v4561 = vrot.slane %v4559, 4
        %v4562 = vrot.slane %v4145, 5
        %v4563 = vsel %vm3736, %v4561, %v4562
        %v4564 = vrot.slane %v4508, 5
        %v4565 = vrot.slane %v4564, 4
        %v4566 = vrot.slane %v4147, 5
        %v4567 = vsel %vm3736, %v4565, %v4566
        %v4568 = vrot.slane %v4566, 4
        %v4569 = vrot.slane %v4148, 5
        %v4570 = vsel %vm3736, %v4568, %v4569
        %v4571 = vrot.slane %v4509, 5
        %v4572 = vrot.slane %v4571, 4
        %v4573 = vrot.slane %v4150, 5
        %v4574 = vsel %vm3736, %v4572, %v4573
        %v4575 = vrot.slane %v4573, 4
        %v4576 = vrot.slane %v4151, 5
        %v4577 = vsel %vm3736, %v4575, %v4576
        %v4578 = vrot.slane %v4510, 5
        %v4579 = vrot.slane %v4578, 4
        %v4580 = vrot.slane %v4153, 5
        %v4581 = vsel %vm3736, %v4579, %v4580
        %v4582 = vrot.slane %v4580, 4
        %v4583 = vrot.slane %v4154, 5
        %v4584 = vsel %vm3736, %v4582, %v4583
        %v4585 = vrot.slane %v4511, 5
        %v4586 = vrot.slane %v4585, 4
        %v4587 = vrot.slane %v4156, 5
        %v4588 = vsel %vm3736, %v4586, %v4587
        %v4589 = vrot.slane %v4587, 4
        %v4590 = vrot.slane %v4157, 5
        %v4591 = vsel %vm3736, %v4589, %v4590
        %s4592 = scalar_lea.vmem [#allocation4], 320
        %v4593 = vld [vmem:[%s4592] sm:$0xff]
        %v4594 = vld [vmem:[%s4592 + $0x8] sm:$0xff]
        %v4595 = vld [vmem:[%s4592 + $0x10] sm:$0xff]
        %v4596 = vld [vmem:[%s4592 + $0x18] sm:$0xff]
        %v4597 = vld [vmem:[%s4592 + $0x20] sm:$0xff]
        %v4598 = vld [vmem:[%s4592 + $0x28] sm:$0xff]
        %v4599 = vld [vmem:[%s4592 + $0x30] sm:$0xff]
        %v4600 = vld [vmem:[%s4592 + $0x38] sm:$0xff]
        %v4601 = vunpack.c.l.b16 %v4539
        %v4602 = vunpack.c.l.b16 %v4542
        %v4603 = vunpack.c.l.b16 %v4546
        %v4604 = vunpack.c.l.b16 %v4549
        %v4605 = vunpack.c.l.b16 %v4553
        %v4606 = vunpack.c.l.b16 %v4556
        %v4607 = vunpack.c.l.b16 %v4560
        %v4608 = vunpack.c.l.b16 %v4563
        %v4609 = vunpack.c.l.b16 %v4567
        %v4610 = vunpack.c.l.b16 %v4570
        %v4611 = vunpack.c.l.b16 %v4574
        %v4612 = vunpack.c.l.b16 %v4577
        %v4613 = vunpack.c.l.b16 %v4581
        %v4614 = vunpack.c.l.b16 %v4584
        %v4615 = vunpack.c.l.b16 %v4588
        %v4616 = vunpack.c.l.b16 %v4591
        %v4617 = vpack.c.b16 %v4602, %v4601
        %v4618 = vpack.c.b16 %v4604, %v4603
        %v4619 = vpack.c.b16 %v4606, %v4605
        %v4620 = vpack.c.b16 %v4608, %v4607
        %v4621 = vpack.c.b16 %v4610, %v4609
        %v4622 = vpack.c.b16 %v4612, %v4611
        %v4623 = vpack.c.b16 %v4614, %v4613
        %v4624 = vpack.c.b16 %v4616, %v4615
        %4633 = vmatprep.subr.bf16.mxu0 0
        %4634 = vmatpush1.bf16.msra.mxu0 %v4593
        %4635 = vmatprep.subr.bf16.mxu0 0
        %4636 = vmatpush1.bf16.msra.mxu0 %v4594
        %4637 = vmatprep.subr.bf16.mxu0 0
        %4638 = vmatpush1.bf16.msra.mxu0 %v4595
        %4639 = vmatprep.subr.bf16.mxu0 0
        %4640 = vmatpush1.bf16.msra.mxu0 %v4596
        %4641 = vmatprep.subr.bf16.mxu0 0
        %4642 = vmatpush1.bf16.msra.mxu0 %v4597
        %4643 = vmatprep.subr.bf16.mxu0 0
        %4644 = vmatpush1.bf16.msra.mxu0 %v4598
        %4645 = vmatprep.subr.bf16.mxu0 0
        %4646 = vmatpush1.bf16.msra.mxu0 %v4599
        %4647 = vmatprep.subr.bf16.mxu0 0
        %4648 = vmatpush1.bf16.msra.mxu0 %v4600
        %4649 = vmatprep.subr.bf16.mxu0 0
        %4650 = vmatpush1.bf16.msra.mxu0 0
        %4651 = vmatprep.subr.bf16.mxu0 0
        %4652 = vmatpush1.bf16.msra.mxu0 0
        %4653 = vmatprep.subr.bf16.mxu0 0
        %4654 = vmatpush1.bf16.msra.mxu0 0
        %4655 = vmatprep.subr.bf16.mxu0 0
        %4656 = vmatpush1.bf16.msra.mxu0 0
        %4657 = vmatprep.subr.bf16.mxu0 0
        %4658 = vmatpush1.bf16.msra.mxu0 0
        %4659 = vmatprep.subr.bf16.mxu0 0
        %4660 = vmatpush1.bf16.msra.mxu0 0
        %4661 = vmatprep.subr.bf16.mxu0 0
        %4662 = vmatpush1.bf16.msra.mxu0 0
        %4663 = vmatprep.subr.bf16.mxu0 0
        %4664 = vmatpush1.bf16.msra.mxu0 0
        %4665 = vmatprep.mubr.bf16.mxu0 0
        %4666 = vmatmul.mubr.bf16.gmra.mrb[0].mxu0 %v4617
        %v4667 = vpop.f32.mrb[0].mxu0
        %v4668 = vadd.f32 0.0, %v4667
        %v4669 = vpop.f32.mrb[0].mxu0
        %v4670 = vpop.f32.mrb[0].mxu0
        %v4671 = vadd.f32 0.0, %v4670
        %v4672 = vpop.f32.mrb[0].mxu0
        %4673 = vmatprep.mubr.bf16.mxu0 0
        %4674 = vmatmul.mubr.bf16.gmra.mrb[0].mxu0 %v4618
        %v4675 = vpop.f32.mrb[0].mxu0
        %v4676 = vadd.f32 0.0, %v4675
        %v4677 = vpop.f32.mrb[0].mxu0
        %v4678 = vpop.f32.mrb[0].mxu0
        %v4679 = vadd.f32 0.0, %v4678
        %v4680 = vpop.f32.mrb[0].mxu0
        %4681 = vmatprep.mubr.bf16.mxu0 0
        %4682 = vmatmul.mubr.bf16.gmra.mrb[0].mxu0 %v4619
        %v4683 = vpop.f32.mrb[0].mxu0
        %v4684 = vadd.f32 0.0, %v4683
        %v4685 = vpop.f32.mrb[0].mxu0
        %v4686 = vpop.f32.mrb[0].mxu0
        %v4687 = vadd.f32 0.0, %v4686
        %v4688 = vpop.f32.mrb[0].mxu0
        %4689 = vmatprep.mubr.bf16.mxu0 0
        %4690 = vmatmul.mubr.bf16.gmra.mrb[0].mxu0 %v4620
        %v4691 = vpop.f32.mrb[0].mxu0
        %v4692 = vadd.f32 0.0, %v4691
        %v4693 = vpop.f32.mrb[0].mxu0
        %v4694 = vpop.f32.mrb[0].mxu0
        %v4695 = vadd.f32 0.0, %v4694
        %v4696 = vpop.f32.mrb[0].mxu0
        %4697 = vmatprep.mubr.bf16.mxu0 0
        %4698 = vmatmul.mubr.bf16.gmra.mrb[0].mxu0 %v4621
        %v4699 = vpop.f32.mrb[0].mxu0
        %v4700 = vadd.f32 0.0, %v4699
        %v4701 = vpop.f32.mrb[0].mxu0
        %v4702 = vpop.f32.mrb[0].mxu0
        %v4703 = vadd.f32 0.0, %v4702
        %v4704 = vpop.f32.mrb[0].mxu0
        %4705 = vmatprep.mubr.bf16.mxu0 0
        %4706 = vmatmul.mubr.bf16.gmra.mrb[0].mxu0 %v4622
        %v4707 = vpop.f32.mrb[0].mxu0
        %v4708 = vadd.f32 0.0, %v4707
        %v4709 = vpop.f32.mrb[0].mxu0
        %v4710 = vpop.f32.mrb[0].mxu0
        %v4711 = vadd.f32 0.0, %v4710
        %v4712 = vpop.f32.mrb[0].mxu0
        %4713 = vmatprep.mubr.bf16.mxu0 0
        %4714 = vmatmul.mubr.bf16.gmra.mrb[0].mxu0 %v4623
        %v4715 = vpop.f32.mrb[0].mxu0
        %v4716 = vadd.f32 0.0, %v4715
        %v4717 = vpop.f32.mrb[0].mxu0
        %v4718 = vpop.f32.mrb[0].mxu0
        %v4719 = vadd.f32 0.0, %v4718
        %v4720 = vpop.f32.mrb[0].mxu0
        %4721 = vmatprep.mubr.bf16.mxu0 0
        %4722 = vmatmul.mubr.bf16.gmra.mrb[0].mxu0 %v4624
        %v4723 = vpop.f32.mrb[0].mxu0
        %v4724 = vadd.f32 0.0, %v4723
        %v4725 = vpop.f32.mrb[0].mxu0
        %v4726 = vpop.f32.mrb[0].mxu0
        %v4727 = vadd.f32 0.0, %v4726
        %v4728 = vpop.f32.mrb[0].mxu0
        %4729 = vdwg.mxu0
        %v4730 = vadd.f32 %v4488, %v4668
        %v4731 = vadd.f32 %v4489, %v4671
        %v4732 = vadd.f32 %v4490, %v4676
        %v4733 = vadd.f32 %v4491, %v4679
        %v4734 = vadd.f32 %v4492, %v4684
        %v4735 = vadd.f32 %v4493, %v4687
        %v4736 = vadd.f32 %v4494, %v4692
        %v4737 = vadd.f32 %v4495, %v4695
        %v4738 = vadd.f32 %v4496, %v4700
        %v4739 = vadd.f32 %v4497, %v4703
        %v4740 = vadd.f32 %v4498, %v4708
        %v4741 = vadd.f32 %v4499, %v4711
        %v4742 = vadd.f32 %v4500, %v4716
        %v4743 = vadd.f32 %v4501, %v4719
        %v4744 = vadd.f32 %v4502, %v4724
        %v4745 = vadd.f32 %v4503, %v4727
        %s4746 = scalar_lea.vmem [#allocation2], 24
        %v4747 = vld [vmem:[%s4746] sm:$0xf]
        %v4748 = vld [vmem:[%s4746 + $0x4] sm:$0xf]
        %v4749 = vld [vmem:[%s4746 + $0xc] sm:$0xf]
        %v4750 = vld [vmem:[%s4746 + $0x10] sm:$0xf]
        %v4751 = vld [vmem:[%s4746 + $0x18] sm:$0xf]
        %v4752 = vld [vmem:[%s4746 + $0x1c] sm:$0xf]
        %v4753 = vld [vmem:[%s4746 + $0x24] sm:$0xf]
        %v4754 = vld [vmem:[%s4746 + $0x28] sm:$0xf]
        %v4755 = vld [vmem:[%s4746 + $0x30] sm:$0xf]
        %v4756 = vld [vmem:[%s4746 + $0x34] sm:$0xf]
        %v4757 = vld [vmem:[%s4746 + $0x3c] sm:$0xf]
        %v4758 = vld [vmem:[%s4746 + $0x40] sm:$0xf]
        %v4759 = vld [vmem:[%s4746 + $0x48] sm:$0xf]
        %v4760 = vld [vmem:[%s4746 + $0x4c] sm:$0xf]
        %v4761 = vld [vmem:[%s4746 + $0x54] sm:$0xf]
        %v4762 = vld [vmem:[%s4746 + $0x58] sm:$0xf]
        %s4763 = scalar_lea.vmem [#allocation4], 384
        %v4764 = vld [vmem:[%s4763] sm:$0xff]
        %v4765 = vld [vmem:[%s4763 + $0x8] sm:$0xff]
        %v4766 = vld [vmem:[%s4763 + $0x10] sm:$0xff]
        %v4767 = vld [vmem:[%s4763 + $0x18] sm:$0xff]
        %v4768 = vld [vmem:[%s4763 + $0x20] sm:$0xff]
        %v4769 = vld [vmem:[%s4763 + $0x28] sm:$0xff]
        %v4770 = vld [vmem:[%s4763 + $0x30] sm:$0xff]
        %v4771 = vld [vmem:[%s4763 + $0x38] sm:$0xff]
        %v4788 = vunpack.c.l.b16 %v4747
        %v4789 = vunpack.c.l.b16 %v4748
        %v4790 = vunpack.c.l.b16 %v4749
        %v4791 = vunpack.c.l.b16 %v4750
        %v4792 = vunpack.c.l.b16 %v4751
        %v4793 = vunpack.c.l.b16 %v4752
        %v4794 = vunpack.c.l.b16 %v4753
        %v4795 = vunpack.c.l.b16 %v4754
        %v4796 = vunpack.c.l.b16 %v4755
        %v4797 = vunpack.c.l.b16 %v4756
        %v4798 = vunpack.c.l.b16 %v4757
        %v4799 = vunpack.c.l.b16 %v4758
        %v4800 = vunpack.c.l.b16 %v4759
        %v4801 = vunpack.c.l.b16 %v4760
        %v4802 = vunpack.c.l.b16 %v4761
        %v4803 = vunpack.c.l.b16 %v4762
        %v4804 = vpack.c.b16 %v4789, %v4788
        %v4805 = vpack.c.b16 %v4791, %v4790
        %v4806 = vpack.c.b16 %v4793, %v4792
        %v4807 = vpack.c.b16 %v4795, %v4794
        %v4808 = vpack.c.b16 %v4797, %v4796
        %v4809 = vpack.c.b16 %v4799, %v4798
        %v4810 = vpack.c.b16 %v4801, %v4800
        %v4811 = vpack.c.b16 %v4803, %v4802
        %4820 = vmatprep.subr.bf16.mxu0 0
        %4821 = vmatpush1.bf16.msra.mxu0 %v4764
        %4822 = vmatprep.subr.bf16.mxu0 0
        %4823 = vmatpush1.bf16.msra.mxu0 %v4765
        %4824 = vmatprep.subr.bf16.mxu0 0
        %4825 = vmatpush1.bf16.msra.mxu0 %v4766
        %4826 = vmatprep.subr.bf16.mxu0 0
        %4827 = vmatpush1.bf16.msra.mxu0 %v4767
        %4828 = vmatprep.subr.bf16.mxu0 0
        %4829 = vmatpush1.bf16.msra.mxu0 %v4768
        %4830 = vmatprep.subr.bf16.mxu0 0
        %4831 = vmatpush1.bf16.msra.mxu0 %v4769
        %4832 = vmatprep.subr.bf16.mxu0 0
        %4833 = vmatpush1.bf16.msra.mxu0 %v4770
        %4834 = vmatprep.subr.bf16.mxu0 0
        %4835 = vmatpush1.bf16.msra.mxu0 %v4771
        %4836 = vmatprep.subr.bf16.mxu0 0
        %4837 = vmatpush1.bf16.msra.mxu0 0
        %4838 = vmatprep.subr.bf16.mxu0 0
        %4839 = vmatpush1.bf16.msra.mxu0 0
        %4840 = vmatprep.subr.bf16.mxu0 0
        %4841 = vmatpush1.bf16.msra.mxu0 0
        %4842 = vmatprep.subr.bf16.mxu0 0
        %4843 = vmatpush1.bf16.msra.mxu0 0
        %4844 = vmatprep.subr.bf16.mxu0 0
        %4845 = vmatpush1.bf16.msra.mxu0 0
        %4846 = vmatprep.subr.bf16.mxu0 0
        %4847 = vmatpush1.bf16.msra.mxu0 0
        %4848 = vmatprep.subr.bf16.mxu0 0
        %4849 = vmatpush1.bf16.msra.mxu0 0
        %4850 = vmatprep.subr.bf16.mxu0 0
        %4851 = vmatpush1.bf16.msra.mxu0 0
        %4852 = vmatprep.mubr.bf16.mxu0 0
        %4853 = vmatmul.mubr.bf16.gmra.mrb[0].mxu0 %v4804
        %v4854 = vpop.f32.mrb[0].mxu0
        %v4855 = vadd.f32 0.0, %v4854
        %v4856 = vpop.f32.mrb[0].mxu0
        %v4857 = vpop.f32.mrb[0].mxu0
        %v4858 = vadd.f32 0.0, %v4857
        %v4859 = vpop.f32.mrb[0].mxu0
        %4860 = vmatprep.mubr.bf16.mxu0 0
        %4861 = vmatmul.mubr.bf16.gmra.mrb[0].mxu0 %v4805
        %v4862 = vpop.f32.mrb[0].mxu0
        %v4863 = vadd.f32 0.0, %v4862
        %v4864 = vpop.f32.mrb[0].mxu0
        %v4865 = vpop.f32.mrb[0].mxu0
        %v4866 = vadd.f32 0.0, %v4865
        %v4867 = vpop.f32.mrb[0].mxu0
        %4868 = vmatprep.mubr.bf16.mxu0 0
        %4869 = vmatmul.mubr.bf16.gmra.mrb[0].mxu0 %v4806
        %v4870 = vpop.f32.mrb[0].mxu0
        %v4871 = vadd.f32 0.0, %v4870
        %v4872 = vpop.f32.mrb[0].mxu0
        %v4873 = vpop.f32.mrb[0].mxu0
        %v4874 = vadd.f32 0.0, %v4873
        %v4875 = vpop.f32.mrb[0].mxu0
        %4876 = vmatprep.mubr.bf16.mxu0 0
        %4877 = vmatmul.mubr.bf16.gmra.mrb[0].mxu0 %v4807
        %v4878 = vpop.f32.mrb[0].mxu0
        %v4879 = vadd.f32 0.0, %v4878
        %v4880 = vpop.f32.mrb[0].mxu0
        %v4881 = vpop.f32.mrb[0].mxu0
        %v4882 = vadd.f32 0.0, %v4881
        %v4883 = vpop.f32.mrb[0].mxu0
        %4884 = vmatprep.mubr.bf16.mxu0 0
        %4885 = vmatmul.mubr.bf16.gmra.mrb[0].mxu0 %v4808
        %v4886 = vpop.f32.mrb[0].mxu0
        %v4887 = vadd.f32 0.0, %v4886
        %v4888 = vpop.f32.mrb[0].mxu0
        %v4889 = vpop.f32.mrb[0].mxu0
        %v4890 = vadd.f32 0.0, %v4889
        %v4891 = vpop.f32.mrb[0].mxu0
        %4892 = vmatprep.mubr.bf16.mxu0 0
        %4893 = vmatmul.mubr.bf16.gmra.mrb[0].mxu0 %v4809
        %v4894 = vpop.f32.mrb[0].mxu0
        %v4895 = vadd.f32 0.0, %v4894
        %v4896 = vpop.f32.mrb[0].mxu0
        %v4897 = vpop.f32.mrb[0].mxu0
        %v4898 = vadd.f32 0.0, %v4897
        %v4899 = vpop.f32.mrb[0].mxu0
        %4900 = vmatprep.mubr.bf16.mxu0 0
        %4901 = vmatmul.mubr.bf16.gmra.mrb[0].mxu0 %v4810
        %v4902 = vpop.f32.mrb[0].mxu0
        %v4903 = vadd.f32 0.0, %v4902
        %v4904 = vpop.f32.mrb[0].mxu0
        %v4905 = vpop.f32.mrb[0].mxu0
        %v4906 = vadd.f32 0.0, %v4905
        %v4907 = vpop.f32.mrb[0].mxu0
        %4908 = vmatprep.mubr.bf16.mxu0 0
        %4909 = vmatmul.mubr.bf16.gmra.mrb[0].mxu0 %v4811
        %v4910 = vpop.f32.mrb[0].mxu0
        %v4911 = vadd.f32 0.0, %v4910
        %v4912 = vpop.f32.mrb[0].mxu0
        %v4913 = vpop.f32.mrb[0].mxu0
        %v4914 = vadd.f32 0.0, %v4913
        %v4915 = vpop.f32.mrb[0].mxu0
        %4916 = vdwg.mxu0
        %v4917 = vadd.f32 %v4730, %v4855
        %v4918 = vadd.f32 %v4731, %v4858
        %v4919 = vadd.f32 %v4732, %v4863
        %v4920 = vadd.f32 %v4733, %v4866
        %v4921 = vadd.f32 %v4734, %v4871
        %v4922 = vadd.f32 %v4735, %v4874
        %v4923 = vadd.f32 %v4736, %v4879
        %v4924 = vadd.f32 %v4737, %v4882
        %v4925 = vadd.f32 %v4738, %v4887
        %v4926 = vadd.f32 %v4739, %v4890
        %v4927 = vadd.f32 %v4740, %v4895
        %v4928 = vadd.f32 %v4741, %v4898
        %v4929 = vadd.f32 %v4742, %v4903
        %v4930 = vadd.f32 %v4743, %v4906
        %v4931 = vadd.f32 %v4744, %v4911
        %v4932 = vadd.f32 %v4745, %v4914
        %v4933 = vld [vmem:[%s4746] sm:$0xf]
        %v4934 = vld [vmem:[%s4746 + $0x4] sm:$0xf]
        %v4935 = vld [vmem:[%s4746 + $0x8] sm:$0x1]
        %v4936 = vld [vmem:[%s4746 + $0xc] sm:$0xf]
        %v4937 = vld [vmem:[%s4746 + $0x10] sm:$0xf]
        %v4938 = vld [vmem:[%s4746 + $0x14] sm:$0x1]
        %v4939 = vld [vmem:[%s4746 + $0x18] sm:$0xf]
        %v4940 = vld [vmem:[%s4746 + $0x1c] sm:$0xf]
        %v4941 = vld [vmem:[%s4746 + $0x20] sm:$0x1]
        %v4942 = vld [vmem:[%s4746 + $0x24] sm:$0xf]
        %v4943 = vld [vmem:[%s4746 + $0x28] sm:$0xf]
        %v4944 = vld [vmem:[%s4746 + $0x2c] sm:$0x1]
        %v4945 = vld [vmem:[%s4746 + $0x30] sm:$0xf]
        %v4946 = vld [vmem:[%s4746 + $0x34] sm:$0xf]
        %v4947 = vld [vmem:[%s4746 + $0x38] sm:$0x1]
        %v4948 = vld [vmem:[%s4746 + $0x3c] sm:$0xf]
        %v4949 = vld [vmem:[%s4746 + $0x40] sm:$0xf]
        %v4950 = vld [vmem:[%s4746 + $0x44] sm:$0x1]
        %v4951 = vld [vmem:[%s4746 + $0x48] sm:$0xf]
        %v4952 = vld [vmem:[%s4746 + $0x4c] sm:$0xf]
        %v4953 = vld [vmem:[%s4746 + $0x50] sm:$0x1]
        %v4954 = vld [vmem:[%s4746 + $0x54] sm:$0xf]
        %v4955 = vld [vmem:[%s4746 + $0x58] sm:$0xf]
        %v4956 = vld [vmem:[%s4746 + $0x5c] sm:$0x1]
        %v4958 = vshrl.u32 %v4933, 16
        %v4960 = vrot.slane %v4958, 4
        %v4961 = vshll.u32 %v4933, 16
        %v4963 = vrot.slane %v4961, 5
        %v4964 = vor.u32 %v4960, %v4963
        %v4965 = vrot.slane %v4964, 4
        %v4967 = vshll.u32 %v4934, 16
        %v4969 = vrot.slane %v4967, 5
        %v4970 = vsel %vm3234, %v4965, %v4969
        %v4971 = vshrl.u32 %v4934, 16
        %v4973 = vrot.slane %v4971, 4
        %v4974 = vor.u32 %v4973, %v4969
        %v4975 = vrot.slane %v4974, 4
        %v4977 = vshll.u32 %v4935, 16
        %v4979 = vrot.slane %v4977, 5
        %v4980 = vsel %vm3234, %v4975, %v4979
        %v4982 = vshrl.u32 %v4936, 16
        %v4984 = vrot.slane %v4982, 4
        %v4985 = vshll.u32 %v4936, 16
        %v4987 = vrot.slane %v4985, 5
        %v4988 = vor.u32 %v4984, %v4987
        %v4989 = vrot.slane %v4988, 4
        %v4991 = vshll.u32 %v4937, 16
        %v4993 = vrot.slane %v4991, 5
        %v4994 = vsel %vm3234, %v4989, %v4993
        %v4995 = vshrl.u32 %v4937, 16
        %v4997 = vrot.slane %v4995, 4
        %v4998 = vor.u32 %v4997, %v4993
        %v4999 = vrot.slane %v4998, 4
        %v5001 = vshll.u32 %v4938, 16
        %v5003 = vrot.slane %v5001, 5
        %v5004 = vsel %vm3234, %v4999, %v5003
        %v5006 = vshrl.u32 %v4939, 16
        %v5008 = vrot.slane %v5006, 4
        %v5009 = vshll.u32 %v4939, 16
        %v5011 = vrot.slane %v5009, 5
        %v5012 = vor.u32 %v5008, %v5011
        %v5013 = vrot.slane %v5012, 4
        %v5015 = vshll.u32 %v4940, 16
        %v5017 = vrot.slane %v5015, 5
        %v5018 = vsel %vm3234, %v5013, %v5017
        %v5019 = vshrl.u32 %v4940, 16
        %v5021 = vrot.slane %v5019, 4
        %v5022 = vor.u32 %v5021, %v5017
        %v5023 = vrot.slane %v5022, 4
        %v5025 = vshll.u32 %v4941, 16
        %v5027 = vrot.slane %v5025, 5
        %v5028 = vsel %vm3234, %v5023, %v5027
        %v5030 = vshrl.u32 %v4942, 16
        %v5032 = vrot.slane %v5030, 4
        %v5033 = vshll.u32 %v4942, 16
        %v5035 = vrot.slane %v5033, 5
        %v5036 = vor.u32 %v5032, %v5035
        %v5037 = vrot.slane %v5036, 4
        %v5039 = vshll.u32 %v4943, 16
        %v5041 = vrot.slane %v5039, 5
        %v5042 = vsel %vm3234, %v5037, %v5041
        %v5043 = vshrl.u32 %v4943, 16
        %v5045 = vrot.slane %v5043, 4
        %v5046 = vor.u32 %v5045, %v5041
        %v5047 = vrot.slane %v5046, 4
        %v5049 = vshll.u32 %v4944, 16
        %v5051 = vrot.slane %v5049, 5
        %v5052 = vsel %vm3234, %v5047, %v5051
        %v5054 = vshrl.u32 %v4945, 16
        %v5056 = vrot.slane %v5054, 4
        %v5057 = vshll.u32 %v4945, 16
        %v5059 = vrot.slane %v5057, 5
        %v5060 = vor.u32 %v5056, %v5059
        %v5061 = vrot.slane %v5060, 4
        %v5063 = vshll.u32 %v4946, 16
        %v5065 = vrot.slane %v5063, 5
        %v5066 = vsel %vm3234, %v5061, %v5065
        %v5067 = vshrl.u32 %v4946, 16
        %v5069 = vrot.slane %v5067, 4
        %v5070 = vor.u32 %v5069, %v5065
        %v5071 = vrot.slane %v5070, 4
        %v5073 = vshll.u32 %v4947, 16
        %v5075 = vrot.slane %v5073, 5
        %v5076 = vsel %vm3234, %v5071, %v5075
        %v5078 = vshrl.u32 %v4948, 16
        %v5080 = vrot.slane %v5078, 4
        %v5081 = vshll.u32 %v4948, 16
        %v5083 = vrot.slane %v5081, 5
        %v5084 = vor.u32 %v5080, %v5083
        %v5085 = vrot.slane %v5084, 4
        %v5087 = vshll.u32 %v4949, 16
        %v5089 = vrot.slane %v5087, 5
        %v5090 = vsel %vm3234, %v5085, %v5089
        %v5091 = vshrl.u32 %v4949, 16
        %v5093 = vrot.slane %v5091, 4
        %v5094 = vor.u32 %v5093, %v5089
        %v5095 = vrot.slane %v5094, 4
        %v5097 = vshll.u32 %v4950, 16
        %v5099 = vrot.slane %v5097, 5
        %v5100 = vsel %vm3234, %v5095, %v5099
        %v5102 = vshrl.u32 %v4951, 16
        %v5104 = vrot.slane %v5102, 4
        %v5105 = vshll.u32 %v4951, 16
        %v5107 = vrot.slane %v5105, 5
        %v5108 = vor.u32 %v5104, %v5107
        %v5109 = vrot.slane %v5108, 4
        %v5111 = vshll.u32 %v4952, 16
        %v5113 = vrot.slane %v5111, 5
        %v5114 = vsel %vm3234, %v5109, %v5113
        %v5115 = vshrl.u32 %v4952, 16
        %v5117 = vrot.slane %v5115, 4
        %v5118 = vor.u32 %v5117, %v5113
        %v5119 = vrot.slane %v5118, 4
        %v5121 = vshll.u32 %v4953, 16
        %v5123 = vrot.slane %v5121, 5
        %v5124 = vsel %vm3234, %v5119, %v5123
        %v5126 = vshrl.u32 %v4954, 16
        %v5128 = vrot.slane %v5126, 4
        %v5129 = vshll.u32 %v4954, 16
        %v5131 = vrot.slane %v5129, 5
        %v5132 = vor.u32 %v5128, %v5131
        %v5133 = vrot.slane %v5132, 4
        %v5135 = vshll.u32 %v4955, 16
        %v5137 = vrot.slane %v5135, 5
        %v5138 = vsel %vm3234, %v5133, %v5137
        %v5139 = vshrl.u32 %v4955, 16
        %v5141 = vrot.slane %v5139, 4
        %v5142 = vor.u32 %v5141, %v5137
        %v5143 = vrot.slane %v5142, 4
        %v5145 = vshll.u32 %v4956, 16
        %v5147 = vrot.slane %v5145, 5
        %v5148 = vsel %vm3234, %v5143, %v5147
        %s5149 = scalar_lea.vmem [#allocation4], 448
        %v5150 = vld [vmem:[%s5149] sm:$0xff]
        %v5151 = vld [vmem:[%s5149 + $0x8] sm:$0xff]
        %v5152 = vld [vmem:[%s5149 + $0x10] sm:$0xff]
        %v5153 = vld [vmem:[%s5149 + $0x18] sm:$0xff]
        %v5154 = vld [vmem:[%s5149 + $0x20] sm:$0xff]
        %v5155 = vld [vmem:[%s5149 + $0x28] sm:$0xff]
        %v5156 = vld [vmem:[%s5149 + $0x30] sm:$0xff]
        %v5157 = vld [vmem:[%s5149 + $0x38] sm:$0xff]
        %v5158 = vunpack.c.l.b16 %v4970
        %v5159 = vunpack.c.l.b16 %v4980
        %v5160 = vunpack.c.l.b16 %v4994
        %v5161 = vunpack.c.l.b16 %v5004
        %v5162 = vunpack.c.l.b16 %v5018
        %v5163 = vunpack.c.l.b16 %v5028
        %v5164 = vunpack.c.l.b16 %v5042
        %v5165 = vunpack.c.l.b16 %v5052
        %v5166 = vunpack.c.l.b16 %v5066
        %v5167 = vunpack.c.l.b16 %v5076
        %v5168 = vunpack.c.l.b16 %v5090
        %v5169 = vunpack.c.l.b16 %v5100
        %v5170 = vunpack.c.l.b16 %v5114
        %v5171 = vunpack.c.l.b16 %v5124
        %v5172 = vunpack.c.l.b16 %v5138
        %v5173 = vunpack.c.l.b16 %v5148
        %v5174 = vpack.c.b16 %v5159, %v5158
        %v5175 = vpack.c.b16 %v5161, %v5160
        %v5176 = vpack.c.b16 %v5163, %v5162
        %v5177 = vpack.c.b16 %v5165, %v5164
        %v5178 = vpack.c.b16 %v5167, %v5166
        %v5179 = vpack.c.b16 %v5169, %v5168
        %v5180 = vpack.c.b16 %v5171, %v5170
        %v5181 = vpack.c.b16 %v5173, %v5172
        %5190 = vmatprep.subr.bf16.mxu0 0
        %5191 = vmatpush1.bf16.msra.mxu0 %v5150
        %5192 = vmatprep.subr.bf16.mxu0 0
        %5193 = vmatpush1.bf16.msra.mxu0 %v5151
        %5194 = vmatprep.subr.bf16.mxu0 0
        %5195 = vmatpush1.bf16.msra.mxu0 %v5152
        %5196 = vmatprep.subr.bf16.mxu0 0
        %5197 = vmatpush1.bf16.msra.mxu0 %v5153
        %5198 = vmatprep.subr.bf16.mxu0 0
        %5199 = vmatpush1.bf16.msra.mxu0 %v5154
        %5200 = vmatprep.subr.bf16.mxu0 0
        %5201 = vmatpush1.bf16.msra.mxu0 %v5155
        %5202 = vmatprep.subr.bf16.mxu0 0
        %5203 = vmatpush1.bf16.msra.mxu0 %v5156
        %5204 = vmatprep.subr.bf16.mxu0 0
        %5205 = vmatpush1.bf16.msra.mxu0 %v5157
        %5206 = vmatprep.subr.bf16.mxu0 0
        %5207 = vmatpush1.bf16.msra.mxu0 0
        %5208 = vmatprep.subr.bf16.mxu0 0
        %5209 = vmatpush1.bf16.msra.mxu0 0
        %5210 = vmatprep.subr.bf16.mxu0 0
        %5211 = vmatpush1.bf16.msra.mxu0 0
        %5212 = vmatprep.subr.bf16.mxu0 0
        %5213 = vmatpush1.bf16.msra.mxu0 0
        %5214 = vmatprep.subr.bf16.mxu0 0
        %5215 = vmatpush1.bf16.msra.mxu0 0
        %5216 = vmatprep.subr.bf16.mxu0 0
        %5217 = vmatpush1.bf16.msra.mxu0 0
        %5218 = vmatprep.subr.bf16.mxu0 0
        %5219 = vmatpush1.bf16.msra.mxu0 0
        %5220 = vmatprep.subr.bf16.mxu0 0
        %5221 = vmatpush1.bf16.msra.mxu0 0
        %5222 = vmatprep.mubr.bf16.mxu0 0
        %5223 = vmatmul.mubr.bf16.gmra.mrb[0].mxu0 %v5174
        %v5224 = vpop.f32.mrb[0].mxu0
        %v5225 = vadd.f32 0.0, %v5224
        %v5226 = vpop.f32.mrb[0].mxu0
        %v5227 = vpop.f32.mrb[0].mxu0
        %v5228 = vadd.f32 0.0, %v5227
        %v5229 = vpop.f32.mrb[0].mxu0
        %5230 = vmatprep.mubr.bf16.mxu0 0
        %5231 = vmatmul.mubr.bf16.gmra.mrb[0].mxu0 %v5175
        %v5232 = vpop.f32.mrb[0].mxu0
        %v5233 = vadd.f32 0.0, %v5232
        %v5234 = vpop.f32.mrb[0].mxu0
        %v5235 = vpop.f32.mrb[0].mxu0
        %v5236 = vadd.f32 0.0, %v5235
        %v5237 = vpop.f32.mrb[0].mxu0
        %5238 = vmatprep.mubr.bf16.mxu0 0
        %5239 = vmatmul.mubr.bf16.gmra.mrb[0].mxu0 %v5176
        %v5240 = vpop.f32.mrb[0].mxu0
        %v5241 = vadd.f32 0.0, %v5240
        %v5242 = vpop.f32.mrb[0].mxu0
        %v5243 = vpop.f32.mrb[0].mxu0
        %v5244 = vadd.f32 0.0, %v5243
        %v5245 = vpop.f32.mrb[0].mxu0
        %5246 = vmatprep.mubr.bf16.mxu0 0
        %5247 = vmatmul.mubr.bf16.gmra.mrb[0].mxu0 %v5177
        %v5248 = vpop.f32.mrb[0].mxu0
        %v5249 = vadd.f32 0.0, %v5248
        %v5250 = vpop.f32.mrb[0].mxu0
        %v5251 = vpop.f32.mrb[0].mxu0
        %v5252 = vadd.f32 0.0, %v5251
        %v5253 = vpop.f32.mrb[0].mxu0
        %5254 = vmatprep.mubr.bf16.mxu0 0
        %5255 = vmatmul.mubr.bf16.gmra.mrb[0].mxu0 %v5178
        %v5256 = vpop.f32.mrb[0].mxu0
        %v5257 = vadd.f32 0.0, %v5256
        %v5258 = vpop.f32.mrb[0].mxu0
        %v5259 = vpop.f32.mrb[0].mxu0
        %v5260 = vadd.f32 0.0, %v5259
        %v5261 = vpop.f32.mrb[0].mxu0
        %5262 = vmatprep.mubr.bf16.mxu0 0
        %5263 = vmatmul.mubr.bf16.gmra.mrb[0].mxu0 %v5179
        %v5264 = vpop.f32.mrb[0].mxu0
        %v5265 = vadd.f32 0.0, %v5264
        %v5266 = vpop.f32.mrb[0].mxu0
        %v5267 = vpop.f32.mrb[0].mxu0
        %v5268 = vadd.f32 0.0, %v5267
        %v5269 = vpop.f32.mrb[0].mxu0
        %5270 = vmatprep.mubr.bf16.mxu0 0
        %5271 = vmatmul.mubr.bf16.gmra.mrb[0].mxu0 %v5180
        %v5272 = vpop.f32.mrb[0].mxu0
        %v5273 = vadd.f32 0.0, %v5272
        %v5274 = vpop.f32.mrb[0].mxu0
        %v5275 = vpop.f32.mrb[0].mxu0
        %v5276 = vadd.f32 0.0, %v5275
        %v5277 = vpop.f32.mrb[0].mxu0
        %5278 = vmatprep.mubr.bf16.mxu0 0
        %5279 = vmatmul.mubr.bf16.gmra.mrb[0].mxu0 %v5181
        %v5280 = vpop.f32.mrb[0].mxu0
        %v5281 = vadd.f32 0.0, %v5280
        %v5282 = vpop.f32.mrb[0].mxu0
        %v5283 = vpop.f32.mrb[0].mxu0
        %v5284 = vadd.f32 0.0, %v5283
        %v5285 = vpop.f32.mrb[0].mxu0
        %5286 = vdwg.mxu0
        %v5287 = vadd.f32 %v4917, %v5225
        %v5288 = vadd.f32 %v4918, %v5228
        %v5289 = vadd.f32 %v4919, %v5233
        %v5290 = vadd.f32 %v4920, %v5236
        %v5291 = vadd.f32 %v4921, %v5241
        %v5292 = vadd.f32 %v4922, %v5244
        %v5293 = vadd.f32 %v4923, %v5249
        %v5294 = vadd.f32 %v4924, %v5252
        %v5295 = vadd.f32 %v4925, %v5257
        %v5296 = vadd.f32 %v4926, %v5260
        %v5297 = vadd.f32 %v4927, %v5265
        %v5298 = vadd.f32 %v4928, %v5268
        %v5299 = vadd.f32 %v4929, %v5273
        %v5300 = vadd.f32 %v4930, %v5276
        %v5301 = vadd.f32 %v4931, %v5281
        %v5302 = vadd.f32 %v4932, %v5284
        %v5303 = vld [vmem:[%s4746] sm:$0xe]
        %v5304 = vld [vmem:[%s4746 + $0xc] sm:$0xe]
        %v5305 = vld [vmem:[%s4746 + $0x18] sm:$0xe]
        %v5306 = vld [vmem:[%s4746 + $0x24] sm:$0xe]
        %v5307 = vld [vmem:[%s4746 + $0x30] sm:$0xe]
        %v5308 = vld [vmem:[%s4746 + $0x3c] sm:$0xe]
        %v5309 = vld [vmem:[%s4746 + $0x48] sm:$0xe]
        %v5310 = vld [vmem:[%s4746 + $0x54] sm:$0xe]
        %v5335 = vrot.slane %v5303, 5
        %v5336 = vrot.slane %v5335, 4
        %v5337 = vrot.slane %v4934, 5
        %v5338 = vsel %vm3736, %v5336, %v5337
        %v5339 = vrot.slane %v5337, 4
        %v5340 = vrot.slane %v4935, 5
        %v5341 = vsel %vm3736, %v5339, %v5340
        %v5342 = vrot.slane %v5304, 5
        %v5343 = vrot.slane %v5342, 4
        %v5344 = vrot.slane %v4937, 5
        %v5345 = vsel %vm3736, %v5343, %v5344
        %v5346 = vrot.slane %v5344, 4
        %v5347 = vrot.slane %v4938, 5
        %v5348 = vsel %vm3736, %v5346, %v5347
        %v5349 = vrot.slane %v5305, 5
        %v5350 = vrot.slane %v5349, 4
        %v5351 = vrot.slane %v4940, 5
        %v5352 = vsel %vm3736, %v5350, %v5351
        %v5353 = vrot.slane %v5351, 4
        %v5354 = vrot.slane %v4941, 5
        %v5355 = vsel %vm3736, %v5353, %v5354
        %v5356 = vrot.slane %v5306, 5
        %v5357 = vrot.slane %v5356, 4
        %v5358 = vrot.slane %v4943, 5
        %v5359 = vsel %vm3736, %v5357, %v5358
        %v5360 = vrot.slane %v5358, 4
        %v5361 = vrot.slane %v4944, 5
        %v5362 = vsel %vm3736, %v5360, %v5361
        %v5363 = vrot.slane %v5307, 5
        %v5364 = vrot.slane %v5363, 4
        %v5365 = vrot.slane %v4946, 5
        %v5366 = vsel %vm3736, %v5364, %v5365
        %v5367 = vrot.slane %v5365, 4
        %v5368 = vrot.slane %v4947, 5
        %v5369 = vsel %vm3736, %v5367, %v5368
        %v5370 = vrot.slane %v5308, 5
        %v5371 = vrot.slane %v5370, 4
        %v5372 = vrot.slane %v4949, 5
        %v5373 = vsel %vm3736, %v5371, %v5372
        %v5374 = vrot.slane %v5372, 4
        %v5375 = vrot.slane %v4950, 5
        %v5376 = vsel %vm3736, %v5374, %v5375
        %v5377 = vrot.slane %v5309, 5
        %v5378 = vrot.slane %v5377, 4
        %v5379 = vrot.slane %v4952, 5
        %v5380 = vsel %vm3736, %v5378, %v5379
        %v5381 = vrot.slane %v5379, 4
        %v5382 = vrot.slane %v4953, 5
        %v5383 = vsel %vm3736, %v5381, %v5382
        %v5384 = vrot.slane %v5310, 5
        %v5385 = vrot.slane %v5384, 4
        %v5386 = vrot.slane %v4955, 5
        %v5387 = vsel %vm3736, %v5385, %v5386
        %v5388 = vrot.slane %v5386, 4
        %v5389 = vrot.slane %v4956, 5
        %v5390 = vsel %vm3736, %v5388, %v5389
        %s5391 = scalar_lea.vmem [#allocation4], 512
        %v5392 = vld [vmem:[%s5391] sm:$0xff]
        %v5393 = vld [vmem:[%s5391 + $0x8] sm:$0xff]
        %v5394 = vld [vmem:[%s5391 + $0x10] sm:$0xff]
        %v5395 = vld [vmem:[%s5391 + $0x18] sm:$0xff]
        %v5396 = vld [vmem:[%s5391 + $0x20] sm:$0xff]
        %v5397 = vld [vmem:[%s5391 + $0x28] sm:$0xff]
        %v5398 = vld [vmem:[%s5391 + $0x30] sm:$0xff]
        %v5399 = vld [vmem:[%s5391 + $0x38] sm:$0xff]
        %v5400 = vunpack.c.l.b16 %v5338
        %v5401 = vunpack.c.l.b16 %v5341
        %v5402 = vunpack.c.l.b16 %v5345
        %v5403 = vunpack.c.l.b16 %v5348
        %v5404 = vunpack.c.l.b16 %v5352
        %v5405 = vunpack.c.l.b16 %v5355
        %v5406 = vunpack.c.l.b16 %v5359
        %v5407 = vunpack.c.l.b16 %v5362
        %v5408 = vunpack.c.l.b16 %v5366
        %v5409 = vunpack.c.l.b16 %v5369
        %v5410 = vunpack.c.l.b16 %v5373
        %v5411 = vunpack.c.l.b16 %v5376
        %v5412 = vunpack.c.l.b16 %v5380
        %v5413 = vunpack.c.l.b16 %v5383
        %v5414 = vunpack.c.l.b16 %v5387
        %v5415 = vunpack.c.l.b16 %v5390
        %v5416 = vpack.c.b16 %v5401, %v5400
        %v5417 = vpack.c.b16 %v5403, %v5402
        %v5418 = vpack.c.b16 %v5405, %v5404
        %v5419 = vpack.c.b16 %v5407, %v5406
        %v5420 = vpack.c.b16 %v5409, %v5408
        %v5421 = vpack.c.b16 %v5411, %v5410
        %v5422 = vpack.c.b16 %v5413, %v5412
        %v5423 = vpack.c.b16 %v5415, %v5414
        %5432 = vmatprep.subr.bf16.mxu0 0
        %5433 = vmatpush1.bf16.msra.mxu0 %v5392
        %5434 = vmatprep.subr.bf16.mxu0 0
        %5435 = vmatpush1.bf16.msra.mxu0 %v5393
        %5436 = vmatprep.subr.bf16.mxu0 0
        %5437 = vmatpush1.bf16.msra.mxu0 %v5394
        %5438 = vmatprep.subr.bf16.mxu0 0
        %5439 = vmatpush1.bf16.msra.mxu0 %v5395
        %5440 = vmatprep.subr.bf16.mxu0 0
        %5441 = vmatpush1.bf16.msra.mxu0 %v5396
        %5442 = vmatprep.subr.bf16.mxu0 0
        %5443 = vmatpush1.bf16.msra.mxu0 %v5397
        %5444 = vmatprep.subr.bf16.mxu0 0
        %5445 = vmatpush1.bf16.msra.mxu0 %v5398
        %5446 = vmatprep.subr.bf16.mxu0 0
        %5447 = vmatpush1.bf16.msra.mxu0 %v5399
        %5448 = vmatprep.subr.bf16.mxu0 0
        %5449 = vmatpush1.bf16.msra.mxu0 0
        %5450 = vmatprep.subr.bf16.mxu0 0
        %5451 = vmatpush1.bf16.msra.mxu0 0
        %5452 = vmatprep.subr.bf16.mxu0 0
        %5453 = vmatpush1.bf16.msra.mxu0 0
        %5454 = vmatprep.subr.bf16.mxu0 0
        %5455 = vmatpush1.bf16.msra.mxu0 0
        %5456 = vmatprep.subr.bf16.mxu0 0
        %5457 = vmatpush1.bf16.msra.mxu0 0
        %5458 = vmatprep.subr.bf16.mxu0 0
        %5459 = vmatpush1.bf16.msra.mxu0 0
        %5460 = vmatprep.subr.bf16.mxu0 0
        %5461 = vmatpush1.bf16.msra.mxu0 0
        %5462 = vmatprep.subr.bf16.mxu0 0
        %5463 = vmatpush1.bf16.msra.mxu0 0
        %5464 = vmatprep.mubr.bf16.mxu0 0
        %5465 = vmatmul.mubr.bf16.gmra.mrb[0].mxu0 %v5416
        %v5466 = vpop.f32.mrb[0].mxu0
        %v5467 = vadd.f32 0.0, %v5466
        %v5468 = vpop.f32.mrb[0].mxu0
        %v5469 = vpop.f32.mrb[0].mxu0
        %v5470 = vadd.f32 0.0, %v5469
        %v5471 = vpop.f32.mrb[0].mxu0
        %5472 = vmatprep.mubr.bf16.mxu0 0
        %5473 = vmatmul.mubr.bf16.gmra.mrb[0].mxu0 %v5417
        %v5474 = vpop.f32.mrb[0].mxu0
        %v5475 = vadd.f32 0.0, %v5474
        %v5476 = vpop.f32.mrb[0].mxu0
        %v5477 = vpop.f32.mrb[0].mxu0
        %v5478 = vadd.f32 0.0, %v5477
        %v5479 = vpop.f32.mrb[0].mxu0
        %5480 = vmatprep.mubr.bf16.mxu0 0
        %5481 = vmatmul.mubr.bf16.gmra.mrb[0].mxu0 %v5418
        %v5482 = vpop.f32.mrb[0].mxu0
        %v5483 = vadd.f32 0.0, %v5482
        %v5484 = vpop.f32.mrb[0].mxu0
        %v5485 = vpop.f32.mrb[0].mxu0
        %v5486 = vadd.f32 0.0, %v5485
        %v5487 = vpop.f32.mrb[0].mxu0
        %5488 = vmatprep.mubr.bf16.mxu0 0
        %5489 = vmatmul.mubr.bf16.gmra.mrb[0].mxu0 %v5419
        %v5490 = vpop.f32.mrb[0].mxu0
        %v5491 = vadd.f32 0.0, %v5490
        %v5492 = vpop.f32.mrb[0].mxu0
        %v5493 = vpop.f32.mrb[0].mxu0
        %v5494 = vadd.f32 0.0, %v5493
        %v5495 = vpop.f32.mrb[0].mxu0
        %5496 = vmatprep.mubr.bf16.mxu0 0
        %5497 = vmatmul.mubr.bf16.gmra.mrb[0].mxu0 %v5420
        %v5498 = vpop.f32.mrb[0].mxu0
        %v5499 = vadd.f32 0.0, %v5498
        %v5500 = vpop.f32.mrb[0].mxu0
        %v5501 = vpop.f32.mrb[0].mxu0
        %v5502 = vadd.f32 0.0, %v5501
        %v5503 = vpop.f32.mrb[0].mxu0
        %5504 = vmatprep.mubr.bf16.mxu0 0
        %5505 = vmatmul.mubr.bf16.gmra.mrb[0].mxu0 %v5421
        %v5506 = vpop.f32.mrb[0].mxu0
        %v5507 = vadd.f32 0.0, %v5506
        %v5508 = vpop.f32.mrb[0].mxu0
        %v5509 = vpop.f32.mrb[0].mxu0
        %v5510 = vadd.f32 0.0, %v5509
        %v5511 = vpop.f32.mrb[0].mxu0
        %5512 = vmatprep.mubr.bf16.mxu0 0
        %5513 = vmatmul.mubr.bf16.gmra.mrb[0].mxu0 %v5422
        %v5514 = vpop.f32.mrb[0].mxu0
        %v5515 = vadd.f32 0.0, %v5514
        %v5516 = vpop.f32.mrb[0].mxu0
        %v5517 = vpop.f32.mrb[0].mxu0
        %v5518 = vadd.f32 0.0, %v5517
        %v5519 = vpop.f32.mrb[0].mxu0
        %5520 = vmatprep.mubr.bf16.mxu0 0
        %5521 = vmatmul.mubr.bf16.gmra.mrb[0].mxu0 %v5423
        %v5522 = vpop.f32.mrb[0].mxu0
        %v5523 = vadd.f32 0.0, %v5522
        %v5524 = vpop.f32.mrb[0].mxu0
        %v5525 = vpop.f32.mrb[0].mxu0
        %v5526 = vadd.f32 0.0, %v5525
        %v5527 = vpop.f32.mrb[0].mxu0
        %5528 = vdwg.mxu0
        %v5529 = vadd.f32 %v5287, %v5467
        %v5530 = vadd.f32 %v5288, %v5470
        %v5531 = vadd.f32 %v5289, %v5475
        %v5532 = vadd.f32 %v5290, %v5478
        %v5533 = vadd.f32 %v5291, %v5483
        %v5534 = vadd.f32 %v5292, %v5486
        %v5535 = vadd.f32 %v5293, %v5491
        %v5536 = vadd.f32 %v5294, %v5494
        %v5537 = vadd.f32 %v5295, %v5499
        %v5538 = vadd.f32 %v5296, %v5502
        %v5539 = vadd.f32 %v5297, %v5507
        %v5540 = vadd.f32 %v5298, %v5510
        %v5541 = vadd.f32 %v5299, %v5515
        %v5542 = vadd.f32 %v5300, %v5518
        %v5543 = vadd.f32 %v5301, %v5523
        %v5544 = vadd.f32 %v5302, %v5526
        %v5545 = vld [vmem:[%s5] sm:$0x1]
        %v5547 = vlaneseq
        %v5548 = vshrl.u32 %v5547, 7
        %v5549 = vsub.s32 0, %v5548
        %v5550 = vrot.slane %v5545, %v5549
        %v5552 = vadd.f32 %v5529, %v5550
        %v5553 = vadd.f32 %v5530, %v5550
        %v5554 = vadd.f32 %v5531, %v5550
        %v5555 = vadd.f32 %v5532, %v5550
        %v5556 = vadd.f32 %v5533, %v5550
        %v5557 = vadd.f32 %v5534, %v5550
        %v5558 = vadd.f32 %v5535, %v5550
        %v5559 = vadd.f32 %v5536, %v5550
        %v5560 = vadd.f32 %v5537, %v5550
        %v5561 = vadd.f32 %v5538, %v5550
        %v5562 = vadd.f32 %v5539, %v5550
        %v5563 = vadd.f32 %v5540, %v5550
        %v5564 = vadd.f32 %v5541, %v5550
        %v5565 = vadd.f32 %v5542, %v5550
        %v5566 = vadd.f32 %v5543, %v5550
        %v5567 = vadd.f32 %v5544, %v5550
        %vm5568 = vcmp.gt.f32.partialorder %v5552, 0.0
        %vm5569 = vcmp.gt.f32.partialorder %v5553, 0.0
        %vm5570 = vcmp.gt.f32.partialorder %v5554, 0.0
        %vm5571 = vcmp.gt.f32.partialorder %v5555, 0.0
        %vm5572 = vcmp.gt.f32.partialorder %v5556, 0.0
        %vm5573 = vcmp.gt.f32.partialorder %v5557, 0.0
        %vm5574 = vcmp.gt.f32.partialorder %v5558, 0.0
        %vm5575 = vcmp.gt.f32.partialorder %v5559, 0.0
        %vm5576 = vcmp.gt.f32.partialorder %v5560, 0.0
        %vm5577 = vcmp.gt.f32.partialorder %v5561, 0.0
        %vm5578 = vcmp.gt.f32.partialorder %v5562, 0.0
        %vm5579 = vcmp.gt.f32.partialorder %v5563, 0.0
        %vm5580 = vcmp.gt.f32.partialorder %v5564, 0.0
        %vm5581 = vcmp.gt.f32.partialorder %v5565, 0.0
        %vm5582 = vcmp.gt.f32.partialorder %v5566, 0.0
        %vm5583 = vcmp.gt.f32.partialorder %v5567, 0.0
        %v5584 = vmul.f32 %v5552, 0.1
        %v5585 = vmul.f32 %v5553, 0.1
        %v5586 = vmul.f32 %v5554, 0.1
        %v5587 = vmul.f32 %v5555, 0.1
        %v5588 = vmul.f32 %v5556, 0.1
        %v5589 = vmul.f32 %v5557, 0.1
        %v5590 = vmul.f32 %v5558, 0.1
        %v5591 = vmul.f32 %v5559, 0.1
        %v5592 = vmul.f32 %v5560, 0.1
        %v5593 = vmul.f32 %v5561, 0.1
        %v5594 = vmul.f32 %v5562, 0.1
        %v5595 = vmul.f32 %v5563, 0.1
        %v5596 = vmul.f32 %v5564, 0.1
        %v5597 = vmul.f32 %v5565, 0.1
        %v5598 = vmul.f32 %v5566, 0.1
        %v5599 = vmul.f32 %v5567, 0.1
        %v5600 = vsel %vm5568, %v5552, %v5584
        %v5601 = vsel %vm5569, %v5553, %v5585
        %v5602 = vsel %vm5570, %v5554, %v5586
        %v5603 = vsel %vm5571, %v5555, %v5587
        %v5604 = vsel %vm5572, %v5556, %v5588
        %v5605 = vsel %vm5573, %v5557, %v5589
        %v5606 = vsel %vm5574, %v5558, %v5590
        %v5607 = vsel %vm5575, %v5559, %v5591
        %v5608 = vsel %vm5576, %v5560, %v5592
        %v5609 = vsel %vm5577, %v5561, %v5593
        %v5610 = vsel %vm5578, %v5562, %v5594
        %v5611 = vsel %vm5579, %v5563, %v5595
        %v5612 = vsel %vm5580, %v5564, %v5596
        %v5613 = vsel %vm5581, %v5565, %v5597
        %v5614 = vsel %vm5582, %v5566, %v5598
        %v5615 = vsel %vm5583, %v5567, %v5599
        %v5616 = vunpack.c.l.bf16 %v611
        %v5617 = vunpack.c.l.bf16 %v612
        %v5618 = vunpack.c.l.bf16 %v613
        %v5619 = vunpack.c.l.bf16 %v614
        %v5620 = vunpack.c.l.bf16 %v615
        %v5621 = vunpack.c.l.bf16 %v616
        %v5622 = vunpack.c.l.bf16 %v617
        %v5623 = vunpack.c.l.bf16 %v618
        %v5624 = vunpack.c.l.bf16 %v619
        %v5625 = vunpack.c.l.bf16 %v620
        %v5626 = vunpack.c.l.bf16 %v621
        %v5627 = vunpack.c.l.bf16 %v622
        %v5628 = vunpack.c.l.bf16 %v623
        %v5629 = vunpack.c.l.bf16 %v624
        %v5630 = vunpack.c.l.bf16 %v625
        %v5631 = vunpack.c.l.bf16 %v626
        %v5632 = vunpack.c.l.bf16 %v627
        %v5633 = vunpack.c.l.bf16 %v628
        %v5634 = vunpack.c.l.bf16 %v629
        %v5635 = vunpack.c.l.bf16 %v630
        %v5636 = vunpack.c.l.bf16 %v631
        %v5637 = vunpack.c.l.bf16 %v632
        %v5638 = vunpack.c.l.bf16 %v633
        %v5639 = vunpack.c.l.bf16 %v634
        %vm5664 = vcmask 1046528
        %v5665 = vrot.slane %v5616, 1
        %v5666 = vrot.slane %v5617, 1
        %v5667 = vsel %vm5664, %v5665, %v5666
        %v5668 = vrot.slane %v5618, 1
        %v5669 = vsel %vm5664, %v5666, %v5668
        %v5670 = vrot.slane %v5619, 1
        %v5671 = vrot.slane %v5620, 1
        %v5672 = vsel %vm5664, %v5670, %v5671
        %v5673 = vrot.slane %v5621, 1
        %v5674 = vsel %vm5664, %v5671, %v5673
        %v5675 = vrot.slane %v5622, 1
        %v5676 = vrot.slane %v5623, 1
        %v5677 = vsel %vm5664, %v5675, %v5676
        %v5678 = vrot.slane %v5624, 1
        %v5679 = vsel %vm5664, %v5676, %v5678
        %v5680 = vrot.slane %v5625, 1
        %v5681 = vrot.slane %v5626, 1
        %v5682 = vsel %vm5664, %v5680, %v5681
        %v5683 = vrot.slane %v5627, 1
        %v5684 = vsel %vm5664, %v5681, %v5683
        %v5685 = vrot.slane %v5628, 1
        %v5686 = vrot.slane %v5629, 1
        %v5687 = vsel %vm5664, %v5685, %v5686
        %v5688 = vrot.slane %v5630, 1
        %v5689 = vsel %vm5664, %v5686, %v5688
        %v5690 = vrot.slane %v5631, 1
        %v5691 = vrot.slane %v5632, 1
        %v5692 = vsel %vm5664, %v5690, %v5691
        %v5693 = vrot.slane %v5633, 1
        %v5694 = vsel %vm5664, %v5691, %v5693
        %v5695 = vrot.slane %v5634, 1
        %v5696 = vrot.slane %v5635, 1
        %v5697 = vsel %vm5664, %v5695, %v5696
        %v5698 = vrot.slane %v5636, 1
        %v5699 = vsel %vm5664, %v5696, %v5698
        %v5700 = vrot.slane %v5637, 1
        %v5701 = vrot.slane %v5638, 1
        %v5702 = vsel %vm5664, %v5700, %v5701
        %v5703 = vrot.slane %v5639, 1
        %v5704 = vsel %vm5664, %v5701, %v5703
        %v5721 = vadd.f32 %v5600, %v5667
        %v5722 = vadd.f32 %v5601, %v5669
        %v5723 = vadd.f32 %v5602, %v5672
        %v5724 = vadd.f32 %v5603, %v5674
        %v5725 = vadd.f32 %v5604, %v5677
        %v5726 = vadd.f32 %v5605, %v5679
        %v5727 = vadd.f32 %v5606, %v5682
        %v5728 = vadd.f32 %v5607, %v5684
        %v5729 = vadd.f32 %v5608, %v5687
        %v5730 = vadd.f32 %v5609, %v5689
        %v5731 = vadd.f32 %v5610, %v5692
        %v5732 = vadd.f32 %v5611, %v5694
        %v5733 = vadd.f32 %v5612, %v5697
        %v5734 = vadd.f32 %v5613, %v5699
        %v5735 = vadd.f32 %v5614, %v5702
        %v5736 = vadd.f32 %v5615, %v5704
        %5737 = vst [vmem:[%s303] sm:$0xff] %v5721
        %5738 = vst [vmem:[%s303 + $0x8] sm:$0xff] %v5722
        %5739 = vst [vmem:[%s303 + $0x10] sm:$0xff] %v5723
        %5740 = vst [vmem:[%s303 + $0x18] sm:$0xff] %v5724
        %5741 = vst [vmem:[%s303 + $0x20] sm:$0xff] %v5725
        %5742 = vst [vmem:[%s303 + $0x28] sm:$0xff] %v5726
        %5743 = vst [vmem:[%s303 + $0x30] sm:$0xff] %v5727
        %5744 = vst [vmem:[%s303 + $0x38] sm:$0xff] %v5728
        %5745 = vst [vmem:[%s303 + $0x40] sm:$0xff] %v5729
        %5746 = vst [vmem:[%s303 + $0x48] sm:$0xff] %v5730
        %5747 = vst [vmem:[%s303 + $0x50] sm:$0xff] %v5731
        %5748 = vst [vmem:[%s303 + $0x58] sm:$0xff] %v5732
        %5749 = vst [vmem:[%s303 + $0x60] sm:$0xff] %v5733
        %5750 = vst [vmem:[%s303 + $0x68] sm:$0xff] %v5734
        %5751 = vst [vmem:[%s303 + $0x70] sm:$0xff] %v5735
        %5752 = vst [vmem:[%s303 + $0x78] sm:$0xff] %v5736
        %s5753 = sand.u32 %s163, 1
        %s5754 = scalar_lea.sflag [#allocation7], %s5753
        %s5755 = sand.u32 %s163, 1
        %s5756 = smul.addr %s5755, 128
        %s5757 = scalar_lea.vmem [#allocation6], %s5756
        // Predicated region
        $region117: #{tpu_custom_call.1} parent=35 // pred_check
          %p5758 = pneg %p173
        $region118: #{tpu_custom_call.1} parent=35 // pred_check_branch
          %5760 = sbr.rel (%p5758) target = $region120
        $region119: #{tpu_custom_call.1} parent=35 // pred_region
          %s5761 = smul.u32 %s26, 2
          %s5762 = sadd.s32 %s5761, %s27
          %s5763 = smul.u32 8, %s5762
          %s5765 = ssub.s32 2048, 2048
          %5766 = vsyncadd %s5754, %s5765
          %s5767 = smul.addr %s5763, 2
          %s5768 = smul.addr %s25, 32
          %s5769 = sadd.s32 %s5767, %s5768
          %s5770 = smul.addr %s5769, 128
          %s5771 = scalar_lea.hbm %s6, %s5770
          %s5772 = sshll.u32 %s5757, 4
          %s5773 = int_to_ptr.vmem [resolvable:$true] %s5772
          %5778 = dma.vmem_to_hbm [thread:$0]  %s5773, 2048, %s5771, %s5754, 128, 128, 8
        $region120: #{tpu_custom_call.1} parent=35 // pred_fallthru
          _
      $region36: #{tpu_custom_call.1} parent=5 // pred_fallthru
        _
      %p5779 = scmp.le.s32.totalorder 2, %s15
      // Predicated region
      $region121: #{tpu_custom_call.1} parent=5 // pred_check
        %p5780 = pneg %p5779
      $region122: #{tpu_custom_call.1} parent=5 // pred_check_branch
        %5782 = sbr.rel (%p5780) target = $region124
      $region123: #{tpu_custom_call.1} parent=5 // pred_region
        %s5783 = ssub.s32 %s15, 2
        // Predicated region
        $region125: #{tpu_custom_call.1} parent=123 // pred_check
          %p5784 = pneg %p179
        $region126: #{tpu_custom_call.1} parent=123 // pred_check_branch
          %5786 = sbr.rel (%p5784) target = $region128
        $region127: #{tpu_custom_call.1} parent=123 // pred_region
          %s5787 = sand.u32 %s164, 1
          %s5788 = scalar_lea.sflag [#allocation7], %s5787
          %s5789 = sand.u32 %s164, 1
          %s5790 = smul.addr %s5789, 128
          %s5791 = scalar_lea.vmem [#allocation6], %s5790
          %5792 = dma.done %s5788, 2048
        $region128: #{tpu_custom_call.1} parent=123 // pred_fallthru
          _
      $region124: #{tpu_custom_call.1} parent=5 // pred_fallthru
        _
    $region6: #{tpu_custom_call.1} parent=1 // loop_footer
      %s19 = sadd.s32 1, %s15
    $region7: #{tpu_custom_call.1} parent=1 // loop_footer_branch
      %14 = sbr.rel target = $region3
    $region8: #{tpu_custom_call.1} parent=1 // loop_exit
      _
    %5793 = vsyncpa [#allocation7], 1
    %s5794 = scalar_lea.sflag [#allocation7], 1
    %5795 = vsyncpa %s5794, 1
  %5796 = vsyncmov [#allocation5]
  %s5797 = vpop.sfrf %5796
  %p5798 = scmp.eq.s32.totalorder %s5797, 0
  %p5799 = pneg %p5798
  %5801 = shalt.err (%p5799)
  %s5802 = scalar_lea.sflag [#allocation5], 1
  %5803 = vsyncmov %s5802
  %s5804 = vpop.sfrf %5803
  %p5805 = scmp.eq.s32.totalorder %s5804, 0
  %p5806 = pneg %p5805
  %5808 = shalt.err (%p5806)

</llo_original>
